<compile_context>
chip_gen: v7x
topology: tpu7x:2x2x1
jax: 0.10.0
libtpu: 0.0.40
codegen_flags: <defaults>
</compile_context>

<pallas_src>
import functools
import math

import numpy as np
import jax
import jax.numpy as jnp
from jax.experimental import pallas as pl
from jax.experimental.pallas import tpu as pltpu

LANE = 128
SUBLANE = 8


def _round_up(x, m):
    return ((x + m - 1) // m) * m


# ---------------------------------------------------------------------------
# Pallas kernel: full forward pass (2 stacked LSTM layers + final Linear)
# ---------------------------------------------------------------------------
def lstm_fc_kernel(x2d_ref,      # (T*B, Dp)   bf16, time-major, flattened, padded
                   wih0_ref,     # (Dp, 4H)    bf16, W_ih_l0.T (gate-permuted, padded rows)
                   b0_ref,       # (1, 4H)     f32,  b_ih_l0 + b_hh_l0 (gate-permuted)
                   wfused_ref,   # (3H, 4H)    bf16, [W_hh_l0.T ; W_ih_l1.T ; W_hh_l1.T]
                   b1_ref,       # (1, 4H)     f32,  b_ih_l1 + b_hh_l1 (gate-permuted)
                   wfc_ref,      # (H, Dop)    bf16, fc.weight.T (padded cols)
                   bfc_ref,      # (1, Dop)    f32,  fc.bias (padded)
                   out_ref,      # (B, Dop)    f32
                   gx0_ref,      # (T*B, 4H)   f32 VMEM scratch
                   *, T, B, H):
    # ---- Hoisted layer-0 input projection, chunked + staged in VMEM -------
    n_chunks = 2 if T % 2 == 0 else 1
    rows = (T * B) // n_chunks
    for c in range(n_chunks):
        r0 = c * rows
        gx0_ref[pl.ds(r0, rows), :] = (
            jnp.dot(x2d_ref[pl.ds(r0, rows), :], wih0_ref[...],
                    preferred_element_type=jnp.float32) + b0_ref[...])

    # ---- Hoisted constants (not re-broadcast per unrolled step) -----------
    b1b = jnp.broadcast_to(b1_ref[...], (B, 4 * H))
    zeros_bh = jnp.zeros((B, H), jnp.float32)

    def act(g):
        # gate layout (permuted at weight-prep time): [i | f | o | g]
        s = jax.nn.sigmoid(g[:, :3 * H])            # one EUP slab for i, f, o
        i = s[:, 0 * H:1 * H]
        f = s[:, 1 * H:2 * H]
        o = s[:, 2 * H:3 * H]
        gg = jnp.tanh(g[:, 3 * H:4 * H])            # one EUP slab for g
        return i, f, o, gg

    # ---- Prologue: layer-0 step 0 (h0/c0 start at zero -> no matmul) ------
    i0, f0, o0, gg0 = act(gx0_ref[pl.ds(0, B), :])
    c0 = i0 * gg0
    h0 = o0 * jnp.tanh(c0)
    h1 = jnp.zeros((B, H), jnp.float32)
    c1 = jnp.zeros((B, H), jnp.float32)

    # ---- Wavefronted recurrence (fully unrolled, static slices) -----------
    # One fused MXU matmul per step:
    #   rows 0..B-1  : h0(t) @ whh0                    -> recurrent part of g0(t+1)
    #   rows B..2B-1 : h0(t) @ wih1 + h1(t-1) @ whh1   -> matmul part of g1(t)
    for t in range(T - 1):
        lhs = jnp.concatenate(
            [jnp.concatenate([h0, zeros_bh, zeros_bh], axis=1),
             jnp.concatenate([zeros_bh, h0, h1], axis=1)],
            axis=0).astype(jnp.bfloat16)                              # (2B, 3H)
        res = jnp.dot(lhs, wfused_ref[...],
                      preferred_element_type=jnp.float32)             # (2B, 4H)

        # layer 1, step t (off the next-matmul critical path)
        i1, f1, o1, gg1 = act(res[B:2 * B, :] + b1b)
        c1 = f1 * c1 + i1 * gg1
        h1 = o1 * jnp.tanh(c1)

        # layer 0, step t+1 (critical path for the next fused matmul)
        g0 = gx0_ref[pl.ds((t + 1) * B, B), :] + res[0:B, :]
        i0, f0, o0, gg0 = act(g0)
        c0 = f0 * c0 + i0 * gg0
        h0 = o0 * jnp.tanh(c0)

    # ---- Epilogue: layer-1 last step ---------------------------------------
    lhs_last = jnp.concatenate([h0, h1], axis=1).astype(jnp.bfloat16)  # (B, 2H)
    g1 = jnp.dot(lhs_last, wfused_ref[H:3 * H, :],
                 preferred_element_type=jnp.float32) + b1b
    i1, f1, o1, gg1 = act(g1)
    c1 = f1 * c1 + i1 * gg1
    h1 = o1 * jnp.tanh(c1)

    # ---- Final Linear on the last timestep's top-layer hidden state -------
    out_ref[...] = (jnp.dot(h1.astype(jnp.bfloat16), wfc_ref[...],
                            preferred_element_type=jnp.float32)
                    + bfc_ref[...])


# ---------------------------------------------------------------------------
# One-time weight preparation (transpose, gate-permute, fuse, pad, cast)
# ---------------------------------------------------------------------------
def _permute_gates_cols(w4h):
    """Permute last-axis gate blocks from PyTorch [i|f|g|o] to kernel [i|f|o|g]."""
    H = w4h.shape[-1] // 4
    return jnp.concatenate(
        [w4h[..., :2 * H], w4h[..., 3 * H:], w4h[..., 2 * H:3 * H]], axis=-1)


def prepare_params(p):
    H = p["w_hh0"].shape[1]
    D_in = p["w_ih0"].shape[1]
    D_out = p["w_fc"].shape[0]
    Dp = _round_up(D_in, LANE)
    Dop = _round_up(D_out, LANE)

    wih0 = _permute_gates_cols(p["w_ih0"].T)                      # (D_in, 4H)
    wih0 = jnp.pad(wih0, ((0, Dp - D_in), (0, 0))).astype(jnp.bfloat16)

    whh0 = _permute_gates_cols(p["w_hh0"].T)                      # (H, 4H)
    wih1 = _permute_gates_cols(p["w_ih1"].T)                      # (H, 4H)
    whh1 = _permute_gates_cols(p["w_hh1"].T)                      # (H, 4H)
    wfused = jnp.concatenate([whh0, wih1, whh1], axis=0).astype(jnp.bfloat16)

    b0 = _permute_gates_cols((p["b_ih0"] + p["b_hh0"])[None, :])  # (1, 4H) f32
    b1 = _permute_gates_cols((p["b_ih1"] + p["b_hh1"])[None, :])  # (1, 4H) f32

    wfc = jnp.pad(p["w_fc"].T, ((0, 0), (0, Dop - D_out))).astype(jnp.bfloat16)
    bfc = jnp.pad(p["b_fc"][None, :], ((0, 0), (0, Dop - D_out)))  # (1, Dop) f32

    return {"wih0": wih0, "b0": b0, "wfused": wfused, "b1": b1,
            "wfc": wfc, "bfc": bfc,
            "H": H, "D_in": D_in, "D_out": D_out, "Dp": Dp, "Dop": Dop}


# ---------------------------------------------------------------------------
# Per-call wrapper (only x prep + pallas_call in the hot, jitted path)
# ---------------------------------------------------------------------------
def make_forward(prepped):
    H, D_in, D_out = prepped["H"], prepped["D_in"], prepped["D_out"]
    Dp, Dop = prepped["Dp"], prepped["Dop"]
    wih0, b0 = prepped["wih0"], prepped["b0"]
    wfused, b1 = prepped["wfused"], prepped["b1"]
    wfc, bfc = prepped["wfc"], prepped["bfc"]

    @jax.jit
    def forward(x):
        B, T, _ = x.shape
        Bp = _round_up(B, SUBLANE)

        # time-major, padded, flattened, bf16 (MXU-native) input
        x_tm = jnp.transpose(x, (1, 0, 2))                          # (T, B, D_in)
        x_tm = jnp.pad(x_tm, ((0, 0), (0, Bp - B), (0, Dp - D_in)))
        x2d = x_tm.reshape(T * Bp, Dp).astype(jnp.bfloat16)

        operands = (x2d, wih0, b0, wfused, b1, wfc, bfc)

        def full_spec(arr):
            n = arr.ndim
            return pl.BlockSpec(arr.shape, lambda i, _n=n: (0,) * _n)

        kernel = functools.partial(lstm_fc_kernel, T=T, B=Bp, H=H)
        out = pl.pallas_call(
            kernel,
            out_shape=jax.ShapeDtypeStruct((Bp, Dop), jnp.float32),
            grid=(1,),
            in_specs=[full_spec(a) for a in operands],
            out_specs=pl.BlockSpec((Bp, Dop), lambda i: (0, 0)),
            scratch_shapes=[pltpu.VMEM((T * Bp, 4 * H), jnp.float32)],
        )(*operands)

        return out[:B, :D_out]

    return forward


# ---------------------------------------------------------------------------
# Deterministic parameter init (raw PyTorch nn.LSTM / nn.Linear layout)
# ---------------------------------------------------------------------------
def init_params(key, input_dim, hidden_dim, output_dim):
    H = hidden_dim
    k = 1.0 / math.sqrt(H)
    keys = jax.random.split(key, 10)

    def u(k_, shape):
        return jax.random.uniform(k_, shape, jnp.float32, minval=-k, maxval=k)

    return {
        "w_ih0": u(keys[0], (4 * H, input_dim)),
        "w_hh0": u(keys[1], (4 * H, H)),
        "b_ih0": u(keys[2], (4 * H,)),
        "b_hh0": u(keys[3], (4 * H,)),
        "w_ih1": u(keys[4], (4 * H, H)),
        "w_hh1": u(keys[5], (4 * H, H)),
        "b_ih1": u(keys[6], (4 * H,)),
        "b_hh1": u(keys[7], (4 * H,)),
        "w_fc":  u(keys[8], (output_dim, H)),
        "b_fc":  u(keys[9], (output_dim,)),
    }


# ---------------------------------------------------------------------------
# Pure-JAX f32 reference (mirrors torch.nn.LSTM semantics) for verification
# ---------------------------------------------------------------------------
def reference_forward(x, p):
    B, T, _ = x.shape
    H = p["w_hh0"].shape[1]

    def cell(x_t, h, c, w_ih, w_hh, b_ih, b_hh):
        g = x_t @ w_ih.T + h @ w_hh.T + b_ih + b_hh
        i = jax.nn.sigmoid(g[:, 0 * H:1 * H])
        f = jax.nn.sigmoid(g[:, 1 * H:2 * H])
        gg = jnp.tanh(g[:, 2 * H:3 * H])
        o = jax.nn.sigmoid(g[:, 3 * H:4 * H])
        c = f * c + i * gg
        return o * jnp.tanh(c), c

    h0 = c0 = h1 = c1 = jnp.zeros((B, H), jnp.float32)
    for t in range(T):
        h0, c0 = cell(x[:, t, :], h0, c0,
                      p["w_ih0"], p["w_hh0"], p["b_ih0"], p["b_hh0"])
        h1, c1 = cell(h0, h1, c1,
                      p["w_ih1"], p["w_hh1"], p["b_ih1"], p["b_hh1"])
    return h1 @ p["w_fc"].T + p["b_fc"]


# ---------------------------------------------------------------------------
if __name__ == "__main__":
    # Shapes consistent with the module:
    #   target_h = target_w = 4, output_channels = 5 -> input_dim = 80
    target_h, target_w, output_channels = 4, 4, 5
    input_dim = target_h * target_w * output_channels   # 80
    hidden_dim = 128
    output_dim = input_dim                               # 80
    batch, seq = 2, 8

    key = jax.random.PRNGKey(0)
    kx, kp = jax.random.split(key)
    x = jax.random.normal(kx, (batch, seq, input_dim), jnp.float32)

    raw_params = init_params(kp, input_dim, hidden_dim, output_dim)
    prepped = prepare_params(raw_params)
    forward = make_forward(prepped)

    out = jax.block_until_ready(forward(x))
    ref = reference_forward(x, raw_params)

    assert out.shape == (batch, output_dim)
    # bf16 weights/activations into the MXU (f32 accumulation) -> relaxed
    # tolerance vs the pure-f32 reference (precision tradeoff, not a bug).
    np.testing.assert_allclose(np.asarray(out), np.asarray(ref),
                               rtol=2e-2, atol=2e-2)

    print("KERNEL_OK")
</pallas_src>

<mosaic_0001>
module attributes {stable_mosaic.version = 11 : i64} {
  func.func @lstm_fc_kernel(%arg0: i32, %arg1: memref<64x128xbf16, #tpu.memory_space<vmem>>, %arg2: memref<128x512xbf16, #tpu.memory_space<vmem>>, %arg3: memref<1x512xf32, #tpu.memory_space<vmem>>, %arg4: memref<384x512xbf16, #tpu.memory_space<vmem>>, %arg5: memref<1x512xf32, #tpu.memory_space<vmem>>, %arg6: memref<128x128xbf16, #tpu.memory_space<vmem>>, %arg7: memref<1x128xf32, #tpu.memory_space<vmem>>, %arg8: memref<8x128xf32, #tpu.memory_space<vmem>>, %arg9: memref<64x512xf32, #tpu.memory_space<vmem>>) attributes {dimension_semantics = [#tpu.dimension_semantics<arbitrary>], iteration_bounds = array<i64: 1>, scalar_prefetch = 0 : i64, scratch_operands = 1 : i64, tpu.core_type = #tpu.core_type<tc>, window_params = [{pipeline_mode = #tpu.pipeline_mode<synchronous>, transform_indices = @transform_0, window_bounds = array<i64: 64, 128>}, {pipeline_mode = #tpu.pipeline_mode<synchronous>, transform_indices = @transform_1, window_bounds = array<i64: 128, 512>}, {pipeline_mode = #tpu.pipeline_mode<synchronous>, transform_indices = @transform_2, window_bounds = array<i64: 1, 512>}, {pipeline_mode = #tpu.pipeline_mode<synchronous>, transform_indices = @transform_3, window_bounds = array<i64: 384, 512>}, {pipeline_mode = #tpu.pipeline_mode<synchronous>, transform_indices = @transform_4, window_bounds = array<i64: 1, 512>}, {pipeline_mode = #tpu.pipeline_mode<synchronous>, transform_indices = @transform_5, window_bounds = array<i64: 128, 128>}, {pipeline_mode = #tpu.pipeline_mode<synchronous>, transform_indices = @transform_6, window_bounds = array<i64: 1, 128>}, {pipeline_mode = #tpu.pipeline_mode<synchronous>, transform_indices = @transform_7, window_bounds = array<i64: 8, 128>}]} {
    %c0 = arith.constant 0 : index
    %c0_0 = arith.constant 0 : index
    %0 = vector.load %arg1[%c0, %c0_0] : memref<64x128xbf16, #tpu.memory_space<vmem>>, vector<32x128xbf16>
    %c0_1 = arith.constant 0 : index
    %c0_2 = arith.constant 0 : index
    %1 = vector.load %arg2[%c0_1, %c0_2] : memref<128x512xbf16, #tpu.memory_space<vmem>>, vector<128x512xbf16>
    %cst = arith.constant dense<0.000000e+00> : vector<32x512xf32>
    %2 = tpu.matmul %0, %1, %cst {dimension_numbers = #tpu.dot_dimension_numbers<[1], [0], [0], [1], [0, 0, 1, 1], [], []>} : vector<32x128xbf16>, vector<128x512xbf16>, vector<32x512xf32> -> vector<32x512xf32>
    %c0_3 = arith.constant 0 : index
    %c0_4 = arith.constant 0 : index
    %3 = vector.load %arg3[%c0_3, %c0_4] : memref<1x512xf32, #tpu.memory_space<vmem>>, vector<1x512xf32>
    %4 = vector.broadcast %3 : vector<1x512xf32> to vector<32x512xf32>
    %5 = arith.addf %2, %4 : vector<32x512xf32>
    %c0_5 = arith.constant 0 : index
    %c0_6 = arith.constant 0 : index
    %6 = vector.load %arg9[%c0_5, %c0_6] : memref<64x512xf32, #tpu.memory_space<vmem>>, vector<32x512xf32>
    tpu.vector_store %arg9[%c0_5, %c0_6], %5 {strides = array<i32>} : memref<64x512xf32, #tpu.memory_space<vmem>>, vector<32x512xf32>,
    %c32 = arith.constant 32 : index
    %c0_7 = arith.constant 0 : index
    %7 = vector.load %arg1[%c32, %c0_7] : memref<64x128xbf16, #tpu.memory_space<vmem>>, vector<32x128xbf16>
    %c0_8 = arith.constant 0 : index
    %c0_9 = arith.constant 0 : index
    %8 = vector.load %arg2[%c0_8, %c0_9] : memref<128x512xbf16, #tpu.memory_space<vmem>>, vector<128x512xbf16>
    %cst_10 = arith.constant dense<0.000000e+00> : vector<32x512xf32>
    %9 = tpu.matmul %7, %8, %cst_10 {dimension_numbers = #tpu.dot_dimension_numbers<[1], [0], [0], [1], [0, 0, 1, 1], [], []>} : vector<32x128xbf16>, vector<128x512xbf16>, vector<32x512xf32> -> vector<32x512xf32>
    %c0_11 = arith.constant 0 : index
    %c0_12 = arith.constant 0 : index
    %10 = vector.load %arg3[%c0_11, %c0_12] : memref<1x512xf32, #tpu.memory_space<vmem>>, vector<1x512xf32>
    %11 = vector.broadcast %10 : vector<1x512xf32> to vector<32x512xf32>
    %12 = arith.addf %9, %11 : vector<32x512xf32>
    %c32_13 = arith.constant 32 : index
    %c0_14 = arith.constant 0 : index
    %13 = vector.load %arg9[%c32_13, %c0_14] : memref<64x512xf32, #tpu.memory_space<vmem>>, vector<32x512xf32>
    tpu.vector_store %arg9[%c32_13, %c0_14], %12 {strides = array<i32>} : memref<64x512xf32, #tpu.memory_space<vmem>>, vector<32x512xf32>,
    %c0_15 = arith.constant 0 : index
    %c0_16 = arith.constant 0 : index
    %14 = vector.load %arg5[%c0_15, %c0_16] : memref<1x512xf32, #tpu.memory_space<vmem>>, vector<1x512xf32>
    %15 = vector.shape_cast %14 : vector<1x512xf32> to vector<1x512xf32>
    %16 = vector.broadcast %15 : vector<1x512xf32> to vector<8x512xf32>
    %cst_17 = arith.constant 0.000000e+00 : f32
    %17 = vector.broadcast %cst_17 : f32 to vector<8x128xf32>
    %c0_18 = arith.constant 0 : index
    %c0_19 = arith.constant 0 : index
    %18 = vector.load %arg9[%c0_18, %c0_19] : memref<64x512xf32, #tpu.memory_space<vmem>>, vector<8x512xf32>
    %19 = vector.extract_strided_slice %18 {offsets = [0, 0], sizes = [8, 384], strides = [1, 1]} : vector<8x512xf32> to vector<8x384xf32>
    %20 = arith.negf %19 : vector<8x384xf32>
    %21 = math.exp %20 : vector<8x384xf32>
    %cst_20 = arith.constant 1.000000e+00 : f32
    %22 = vector.broadcast %cst_20 : f32 to vector<8x384xf32>
    %23 = arith.addf %22, %21 : vector<8x384xf32>
    %24 = arith.divf %22, %23 : vector<8x384xf32>
    %25 = vector.extract_strided_slice %24 {offsets = [0, 0], sizes = [8, 128], strides = [1, 1]} : vector<8x384xf32> to vector<8x128xf32>
    %26 = vector.extract_strided_slice %24 {offsets = [0, 256], sizes = [8, 128], strides = [1, 1]} : vector<8x384xf32> to vector<8x128xf32>
    %27 = vector.extract_strided_slice %18 {offsets = [0, 384], sizes = [8, 128], strides = [1, 1]} : vector<8x512xf32> to vector<8x128xf32>
    %28 = math.tanh %27 : vector<8x128xf32>
    %29 = arith.mulf %25, %28 : vector<8x128xf32>
    %30 = math.tanh %29 : vector<8x128xf32>
    %31 = arith.mulf %26, %30 : vector<8x128xf32>
    %cst_21 = arith.constant 0.000000e+00 : f32
    %32 = vector.broadcast %cst_21 : f32 to vector<8x128xf32>
    %cst_22 = arith.constant 0.000000e+00 : f32
    %33 = vector.broadcast %cst_22 : f32 to vector<8x128xf32>
    %34 = tpu.concatenate %31, %17, %17 in 1 : vector<8x128xf32>, vector<8x128xf32>, vector<8x128xf32> -> vector<8x384xf32>
    %35 = tpu.concatenate %17, %31, %32 in 1 : vector<8x128xf32>, vector<8x128xf32>, vector<8x128xf32> -> vector<8x384xf32>
    %36 = tpu.concatenate %34, %35 in 0 : vector<8x384xf32>, vector<8x384xf32> -> vector<16x384xf32>
    %37 = arith.truncf %36 : vector<16x384xf32> to vector<16x384xbf16>
    %c0_23 = arith.constant 0 : index
    %c0_24 = arith.constant 0 : index
    %38 = vector.load %arg4[%c0_23, %c0_24] : memref<384x512xbf16, #tpu.memory_space<vmem>>, vector<384x512xbf16>
    %cst_25 = arith.constant dense<0.000000e+00> : vector<16x512xf32>
    %39 = tpu.matmul %37, %38, %cst_25 {dimension_numbers = #tpu.dot_dimension_numbers<[1], [0], [0], [1], [0, 0, 1, 1], [], []>} : vector<16x384xbf16>, vector<384x512xbf16>, vector<16x512xf32> -> vector<16x512xf32>
    %40 = vector.extract_strided_slice %39 {offsets = [8, 0], sizes = [8, 512], strides = [1, 1]} : vector<16x512xf32> to vector<8x512xf32>
    %41 = arith.addf %40, %16 : vector<8x512xf32>
    %42 = vector.extract_strided_slice %41 {offsets = [0, 0], sizes = [8, 384], strides = [1, 1]} : vector<8x512xf32> to vector<8x384xf32>
    %43 = arith.negf %42 : vector<8x384xf32>
    %44 = math.exp %43 : vector<8x384xf32>
    %cst_26 = arith.constant 1.000000e+00 : f32
    %45 = vector.broadcast %cst_26 : f32 to vector<8x384xf32>
    %46 = arith.addf %45, %44 : vector<8x384xf32>
    %47 = arith.divf %45, %46 : vector<8x384xf32>
    %48 = vector.extract_strided_slice %47 {offsets = [0, 0], sizes = [8, 128], strides = [1, 1]} : vector<8x384xf32> to vector<8x128xf32>
    %49 = vector.extract_strided_slice %47 {offsets = [0, 128], sizes = [8, 128], strides = [1, 1]} : vector<8x384xf32> to vector<8x128xf32>
    %50 = vector.extract_strided_slice %47 {offsets = [0, 256], sizes = [8, 128], strides = [1, 1]} : vector<8x384xf32> to vector<8x128xf32>
    %51 = vector.extract_strided_slice %41 {offsets = [0, 384], sizes = [8, 128], strides = [1, 1]} : vector<8x512xf32> to vector<8x128xf32>
    %52 = math.tanh %51 : vector<8x128xf32>
    %53 = arith.mulf %49, %33 : vector<8x128xf32>
    %54 = arith.mulf %48, %52 : vector<8x128xf32>
    %55 = arith.addf %53, %54 : vector<8x128xf32>
    %56 = math.tanh %55 : vector<8x128xf32>
    %57 = arith.mulf %50, %56 : vector<8x128xf32>
    %c8 = arith.constant 8 : index
    %c0_27 = arith.constant 0 : index
    %58 = vector.load %arg9[%c8, %c0_27] : memref<64x512xf32, #tpu.memory_space<vmem>>, vector<8x512xf32>
    %59 = vector.extract_strided_slice %39 {offsets = [0, 0], sizes = [8, 512], strides = [1, 1]} : vector<16x512xf32> to vector<8x512xf32>
    %60 = arith.addf %58, %59 : vector<8x512xf32>
    %61 = vector.extract_strided_slice %60 {offsets = [0, 0], sizes = [8, 384], strides = [1, 1]} : vector<8x512xf32> to vector<8x384xf32>
    %62 = arith.negf %61 : vector<8x384xf32>
    %63 = math.exp %62 : vector<8x384xf32>
    %cst_28 = arith.constant 1.000000e+00 : f32
    %64 = vector.broadcast %cst_28 : f32 to vector<8x384xf32>
    %65 = arith.addf %64, %63 : vector<8x384xf32>
    %66 = arith.divf %64, %65 : vector<8x384xf32>
    %67 = vector.extract_strided_slice %66 {offsets = [0, 0], sizes = [8, 128], strides = [1, 1]} : vector<8x384xf32> to vector<8x128xf32>
    %68 = vector.extract_strided_slice %66 {offsets = [0, 128], sizes = [8, 128], strides = [1, 1]} : vector<8x384xf32> to vector<8x128xf32>
    %69 = vector.extract_strided_slice %66 {offsets = [0, 256], sizes = [8, 128], strides = [1, 1]} : vector<8x384xf32> to vector<8x128xf32>
    %70 = vector.extract_strided_slice %60 {offsets = [0, 384], sizes = [8, 128], strides = [1, 1]} : vector<8x512xf32> to vector<8x128xf32>
    %71 = math.tanh %70 : vector<8x128xf32>
    %72 = arith.mulf %68, %29 : vector<8x128xf32>
    %73 = arith.mulf %67, %71 : vector<8x128xf32>
    %74 = arith.addf %72, %73 : vector<8x128xf32>
    %75 = math.tanh %74 : vector<8x128xf32>
    %76 = arith.mulf %69, %75 : vector<8x128xf32>
    %77 = tpu.concatenate %76, %17, %17 in 1 : vector<8x128xf32>, vector<8x128xf32>, vector<8x128xf32> -> vector<8x384xf32>
    %78 = tpu.concatenate %17, %76, %57 in 1 : vector<8x128xf32>, vector<8x128xf32>, vector<8x128xf32> -> vector<8x384xf32>
    %79 = tpu.concatenate %77, %78 in 0 : vector<8x384xf32>, vector<8x384xf32> -> vector<16x384xf32>
    %80 = arith.truncf %79 : vector<16x384xf32> to vector<16x384xbf16>
    %c0_29 = arith.constant 0 : index
    %c0_30 = arith.constant 0 : index
    %81 = vector.load %arg4[%c0_29, %c0_30] : memref<384x512xbf16, #tpu.memory_space<vmem>>, vector<384x512xbf16>
    %cst_31 = arith.constant dense<0.000000e+00> : vector<16x512xf32>
    %82 = tpu.matmul %80, %81, %cst_31 {dimension_numbers = #tpu.dot_dimension_numbers<[1], [0], [0], [1], [0, 0, 1, 1], [], []>} : vector<16x384xbf16>, vector<384x512xbf16>, vector<16x512xf32> -> vector<16x512xf32>
    %83 = vector.extract_strided_slice %82 {offsets = [8, 0], sizes = [8, 512], strides = [1, 1]} : vector<16x512xf32> to vector<8x512xf32>
    %84 = arith.addf %83, %16 : vector<8x512xf32>
    %85 = vector.extract_strided_slice %84 {offsets = [0, 0], sizes = [8, 384], strides = [1, 1]} : vector<8x512xf32> to vector<8x384xf32>
    %86 = arith.negf %85 : vector<8x384xf32>
    %87 = math.exp %86 : vector<8x384xf32>
    %cst_32 = arith.constant 1.000000e+00 : f32
    %88 = vector.broadcast %cst_32 : f32 to vector<8x384xf32>
    %89 = arith.addf %88, %87 : vector<8x384xf32>
    %90 = arith.divf %88, %89 : vector<8x384xf32>
    %91 = vector.extract_strided_slice %90 {offsets = [0, 0], sizes = [8, 128], strides = [1, 1]} : vector<8x384xf32> to vector<8x128xf32>
    %92 = vector.extract_strided_slice %90 {offsets = [0, 128], sizes = [8, 128], strides = [1, 1]} : vector<8x384xf32> to vector<8x128xf32>
    %93 = vector.extract_strided_slice %90 {offsets = [0, 256], sizes = [8, 128], strides = [1, 1]} : vector<8x384xf32> to vector<8x128xf32>
    %94 = vector.extract_strided_slice %84 {offsets = [0, 384], sizes = [8, 128], strides = [1, 1]} : vector<8x512xf32> to vector<8x128xf32>
    %95 = math.tanh %94 : vector<8x128xf32>
    %96 = arith.mulf %92, %55 : vector<8x128xf32>
    %97 = arith.mulf %91, %95 : vector<8x128xf32>
    %98 = arith.addf %96, %97 : vector<8x128xf32>
    %99 = math.tanh %98 : vector<8x128xf32>
    %100 = arith.mulf %93, %99 : vector<8x128xf32>
    %c16 = arith.constant 16 : index
    %c0_33 = arith.constant 0 : index
    %101 = vector.load %arg9[%c16, %c0_33] : memref<64x512xf32, #tpu.memory_space<vmem>>, vector<8x512xf32>
    %102 = vector.extract_strided_slice %82 {offsets = [0, 0], sizes = [8, 512], strides = [1, 1]} : vector<16x512xf32> to vector<8x512xf32>
    %103 = arith.addf %101, %102 : vector<8x512xf32>
    %104 = vector.extract_strided_slice %103 {offsets = [0, 0], sizes = [8, 384], strides = [1, 1]} : vector<8x512xf32> to vector<8x384xf32>
    %105 = arith.negf %104 : vector<8x384xf32>
    %106 = math.exp %105 : vector<8x384xf32>
    %cst_34 = arith.constant 1.000000e+00 : f32
    %107 = vector.broadcast %cst_34 : f32 to vector<8x384xf32>
    %108 = arith.addf %107, %106 : vector<8x384xf32>
    %109 = arith.divf %107, %108 : vector<8x384xf32>
    %110 = vector.extract_strided_slice %109 {offsets = [0, 0], sizes = [8, 128], strides = [1, 1]} : vector<8x384xf32> to vector<8x128xf32>
    %111 = vector.extract_strided_slice %109 {offsets = [0, 128], sizes = [8, 128], strides = [1, 1]} : vector<8x384xf32> to vector<8x128xf32>
    %112 = vector.extract_strided_slice %109 {offsets = [0, 256], sizes = [8, 128], strides = [1, 1]} : vector<8x384xf32> to vector<8x128xf32>
    %113 = vector.extract_strided_slice %103 {offsets = [0, 384], sizes = [8, 128], strides = [1, 1]} : vector<8x512xf32> to vector<8x128xf32>
    %114 = math.tanh %113 : vector<8x128xf32>
    %115 = arith.mulf %111, %74 : vector<8x128xf32>
    %116 = arith.mulf %110, %114 : vector<8x128xf32>
    %117 = arith.addf %115, %116 : vector<8x128xf32>
    %118 = math.tanh %117 : vector<8x128xf32>
    %119 = arith.mulf %112, %118 : vector<8x128xf32>
    %120 = tpu.concatenate %119, %17, %17 in 1 : vector<8x128xf32>, vector<8x128xf32>, vector<8x128xf32> -> vector<8x384xf32>
    %121 = tpu.concatenate %17, %119, %100 in 1 : vector<8x128xf32>, vector<8x128xf32>, vector<8x128xf32> -> vector<8x384xf32>
    %122 = tpu.concatenate %120, %121 in 0 : vector<8x384xf32>, vector<8x384xf32> -> vector<16x384xf32>
    %123 = arith.truncf %122 : vector<16x384xf32> to vector<16x384xbf16>
    %c0_35 = arith.constant 0 : index
    %c0_36 = arith.constant 0 : index
    %124 = vector.load %arg4[%c0_35, %c0_36] : memref<384x512xbf16, #tpu.memory_space<vmem>>, vector<384x512xbf16>
    %cst_37 = arith.constant dense<0.000000e+00> : vector<16x512xf32>
    %125 = tpu.matmul %123, %124, %cst_37 {dimension_numbers = #tpu.dot_dimension_numbers<[1], [0], [0], [1], [0, 0, 1, 1], [], []>} : vector<16x384xbf16>, vector<384x512xbf16>, vector<16x512xf32> -> vector<16x512xf32>
    %126 = vector.extract_strided_slice %125 {offsets = [8, 0], sizes = [8, 512], strides = [1, 1]} : vector<16x512xf32> to vector<8x512xf32>
    %127 = arith.addf %126, %16 : vector<8x512xf32>
    %128 = vector.extract_strided_slice %127 {offsets = [0, 0], sizes = [8, 384], strides = [1, 1]} : vector<8x512xf32> to vector<8x384xf32>
    %129 = arith.negf %128 : vector<8x384xf32>
    %130 = math.exp %129 : vector<8x384xf32>
    %cst_38 = arith.constant 1.000000e+00 : f32
    %131 = vector.broadcast %cst_38 : f32 to vector<8x384xf32>
    %132 = arith.addf %131, %130 : vector<8x384xf32>
    %133 = arith.divf %131, %132 : vector<8x384xf32>
    %134 = vector.extract_strided_slice %133 {offsets = [0, 0], sizes = [8, 128], strides = [1, 1]} : vector<8x384xf32> to vector<8x128xf32>
    %135 = vector.extract_strided_slice %133 {offsets = [0, 128], sizes = [8, 128], strides = [1, 1]} : vector<8x384xf32> to vector<8x128xf32>
    %136 = vector.extract_strided_slice %133 {offsets = [0, 256], sizes = [8, 128], strides = [1, 1]} : vector<8x384xf32> to vector<8x128xf32>
    %137 = vector.extract_strided_slice %127 {offsets = [0, 384], sizes = [8, 128], strides = [1, 1]} : vector<8x512xf32> to vector<8x128xf32>
    %138 = math.tanh %137 : vector<8x128xf32>
    %139 = arith.mulf %135, %98 : vector<8x128xf32>
    %140 = arith.mulf %134, %138 : vector<8x128xf32>
    %141 = arith.addf %139, %140 : vector<8x128xf32>
    %142 = math.tanh %141 : vector<8x128xf32>
    %143 = arith.mulf %136, %142 : vector<8x128xf32>
    %c24 = arith.constant 24 : index
    %c0_39 = arith.constant 0 : index
    %144 = vector.load %arg9[%c24, %c0_39] : memref<64x512xf32, #tpu.memory_space<vmem>>, vector<8x512xf32>
    %145 = vector.extract_strided_slice %125 {offsets = [0, 0], sizes = [8, 512], strides = [1, 1]} : vector<16x512xf32> to vector<8x512xf32>
    %146 = arith.addf %144, %145 : vector<8x512xf32>
    %147 = vector.extract_strided_slice %146 {offsets = [0, 0], sizes = [8, 384], strides = [1, 1]} : vector<8x512xf32> to vector<8x384xf32>
    %148 = arith.negf %147 : vector<8x384xf32>
    %149 = math.exp %148 : vector<8x384xf32>
    %cst_40 = arith.constant 1.000000e+00 : f32
    %150 = vector.broadcast %cst_40 : f32 to vector<8x384xf32>
    %151 = arith.addf %150, %149 : vector<8x384xf32>
    %152 = arith.divf %150, %151 : vector<8x384xf32>
    %153 = vector.extract_strided_slice %152 {offsets = [0, 0], sizes = [8, 128], strides = [1, 1]} : vector<8x384xf32> to vector<8x128xf32>
    %154 = vector.extract_strided_slice %152 {offsets = [0, 128], sizes = [8, 128], strides = [1, 1]} : vector<8x384xf32> to vector<8x128xf32>
    %155 = vector.extract_strided_slice %152 {offsets = [0, 256], sizes = [8, 128], strides = [1, 1]} : vector<8x384xf32> to vector<8x128xf32>
    %156 = vector.extract_strided_slice %146 {offsets = [0, 384], sizes = [8, 128], strides = [1, 1]} : vector<8x512xf32> to vector<8x128xf32>
    %157 = math.tanh %156 : vector<8x128xf32>
    %158 = arith.mulf %154, %117 : vector<8x128xf32>
    %159 = arith.mulf %153, %157 : vector<8x128xf32>
    %160 = arith.addf %158, %159 : vector<8x128xf32>
    %161 = math.tanh %160 : vector<8x128xf32>
    %162 = arith.mulf %155, %161 : vector<8x128xf32>
    %163 = tpu.concatenate %162, %17, %17 in 1 : vector<8x128xf32>, vector<8x128xf32>, vector<8x128xf32> -> vector<8x384xf32>
    %164 = tpu.concatenate %17, %162, %143 in 1 : vector<8x128xf32>, vector<8x128xf32>, vector<8x128xf32> -> vector<8x384xf32>
    %165 = tpu.concatenate %163, %164 in 0 : vector<8x384xf32>, vector<8x384xf32> -> vector<16x384xf32>
    %166 = arith.truncf %165 : vector<16x384xf32> to vector<16x384xbf16>
    %c0_41 = arith.constant 0 : index
    %c0_42 = arith.constant 0 : index
    %167 = vector.load %arg4[%c0_41, %c0_42] : memref<384x512xbf16, #tpu.memory_space<vmem>>, vector<384x512xbf16>
    %cst_43 = arith.constant dense<0.000000e+00> : vector<16x512xf32>
    %168 = tpu.matmul %166, %167, %cst_43 {dimension_numbers = #tpu.dot_dimension_numbers<[1], [0], [0], [1], [0, 0, 1, 1], [], []>} : vector<16x384xbf16>, vector<384x512xbf16>, vector<16x512xf32> -> vector<16x512xf32>
    %169 = vector.extract_strided_slice %168 {offsets = [8, 0], sizes = [8, 512], strides = [1, 1]} : vector<16x512xf32> to vector<8x512xf32>
    %170 = arith.addf %169, %16 : vector<8x512xf32>
    %171 = vector.extract_strided_slice %170 {offsets = [0, 0], sizes = [8, 384], strides = [1, 1]} : vector<8x512xf32> to vector<8x384xf32>
    %172 = arith.negf %171 : vector<8x384xf32>
    %173 = math.exp %172 : vector<8x384xf32>
    %cst_44 = arith.constant 1.000000e+00 : f32
    %174 = vector.broadcast %cst_44 : f32 to vector<8x384xf32>
    %175 = arith.addf %174, %173 : vector<8x384xf32>
    %176 = arith.divf %174, %175 : vector<8x384xf32>
    %177 = vector.extract_strided_slice %176 {offsets = [0, 0], sizes = [8, 128], strides = [1, 1]} : vector<8x384xf32> to vector<8x128xf32>
    %178 = vector.extract_strided_slice %176 {offsets = [0, 128], sizes = [8, 128], strides = [1, 1]} : vector<8x384xf32> to vector<8x128xf32>
    %179 = vector.extract_strided_slice %176 {offsets = [0, 256], sizes = [8, 128], strides = [1, 1]} : vector<8x384xf32> to vector<8x128xf32>
    %180 = vector.extract_strided_slice %170 {offsets = [0, 384], sizes = [8, 128], strides = [1, 1]} : vector<8x512xf32> to vector<8x128xf32>
    %181 = math.tanh %180 : vector<8x128xf32>
    %182 = arith.mulf %178, %141 : vector<8x128xf32>
    %183 = arith.mulf %177, %181 : vector<8x128xf32>
    %184 = arith.addf %182, %183 : vector<8x128xf32>
    %185 = math.tanh %184 : vector<8x128xf32>
    %186 = arith.mulf %179, %185 : vector<8x128xf32>
    %c32_45 = arith.constant 32 : index
    %c0_46 = arith.constant 0 : index
    %187 = vector.load %arg9[%c32_45, %c0_46] : memref<64x512xf32, #tpu.memory_space<vmem>>, vector<8x512xf32>
    %188 = vector.extract_strided_slice %168 {offsets = [0, 0], sizes = [8, 512], strides = [1, 1]} : vector<16x512xf32> to vector<8x512xf32>
    %189 = arith.addf %187, %188 : vector<8x512xf32>
    %190 = vector.extract_strided_slice %189 {offsets = [0, 0], sizes = [8, 384], strides = [1, 1]} : vector<8x512xf32> to vector<8x384xf32>
    %191 = arith.negf %190 : vector<8x384xf32>
    %192 = math.exp %191 : vector<8x384xf32>
    %cst_47 = arith.constant 1.000000e+00 : f32
    %193 = vector.broadcast %cst_47 : f32 to vector<8x384xf32>
    %194 = arith.addf %193, %192 : vector<8x384xf32>
    %195 = arith.divf %193, %194 : vector<8x384xf32>
    %196 = vector.extract_strided_slice %195 {offsets = [0, 0], sizes = [8, 128], strides = [1, 1]} : vector<8x384xf32> to vector<8x128xf32>
    %197 = vector.extract_strided_slice %195 {offsets = [0, 128], sizes = [8, 128], strides = [1, 1]} : vector<8x384xf32> to vector<8x128xf32>
    %198 = vector.extract_strided_slice %195 {offsets = [0, 256], sizes = [8, 128], strides = [1, 1]} : vector<8x384xf32> to vector<8x128xf32>
    %199 = vector.extract_strided_slice %189 {offsets = [0, 384], sizes = [8, 128], strides = [1, 1]} : vector<8x512xf32> to vector<8x128xf32>
    %200 = math.tanh %199 : vector<8x128xf32>
    %201 = arith.mulf %197, %160 : vector<8x128xf32>
    %202 = arith.mulf %196, %200 : vector<8x128xf32>
    %203 = arith.addf %201, %202 : vector<8x128xf32>
    %204 = math.tanh %203 : vector<8x128xf32>
    %205 = arith.mulf %198, %204 : vector<8x128xf32>
    %206 = tpu.concatenate %205, %17, %17 in 1 : vector<8x128xf32>, vector<8x128xf32>, vector<8x128xf32> -> vector<8x384xf32>
    %207 = tpu.concatenate %17, %205, %186 in 1 : vector<8x128xf32>, vector<8x128xf32>, vector<8x128xf32> -> vector<8x384xf32>
    %208 = tpu.concatenate %206, %207 in 0 : vector<8x384xf32>, vector<8x384xf32> -> vector<16x384xf32>
    %209 = arith.truncf %208 : vector<16x384xf32> to vector<16x384xbf16>
    %c0_48 = arith.constant 0 : index
    %c0_49 = arith.constant 0 : index
    %210 = vector.load %arg4[%c0_48, %c0_49] : memref<384x512xbf16, #tpu.memory_space<vmem>>, vector<384x512xbf16>
    %cst_50 = arith.constant dense<0.000000e+00> : vector<16x512xf32>
    %211 = tpu.matmul %209, %210, %cst_50 {dimension_numbers = #tpu.dot_dimension_numbers<[1], [0], [0], [1], [0, 0, 1, 1], [], []>} : vector<16x384xbf16>, vector<384x512xbf16>, vector<16x512xf32> -> vector<16x512xf32>
    %212 = vector.extract_strided_slice %211 {offsets = [8, 0], sizes = [8, 512], strides = [1, 1]} : vector<16x512xf32> to vector<8x512xf32>
    %213 = arith.addf %212, %16 : vector<8x512xf32>
    %214 = vector.extract_strided_slice %213 {offsets = [0, 0], sizes = [8, 384], strides = [1, 1]} : vector<8x512xf32> to vector<8x384xf32>
    %215 = arith.negf %214 : vector<8x384xf32>
    %216 = math.exp %215 : vector<8x384xf32>
    %cst_51 = arith.constant 1.000000e+00 : f32
    %217 = vector.broadcast %cst_51 : f32 to vector<8x384xf32>
    %218 = arith.addf %217, %216 : vector<8x384xf32>
    %219 = arith.divf %217, %218 : vector<8x384xf32>
    %220 = vector.extract_strided_slice %219 {offsets = [0, 0], sizes = [8, 128], strides = [1, 1]} : vector<8x384xf32> to vector<8x128xf32>
    %221 = vector.extract_strided_slice %219 {offsets = [0, 128], sizes = [8, 128], strides = [1, 1]} : vector<8x384xf32> to vector<8x128xf32>
    %222 = vector.extract_strided_slice %219 {offsets = [0, 256], sizes = [8, 128], strides = [1, 1]} : vector<8x384xf32> to vector<8x128xf32>
    %223 = vector.extract_strided_slice %213 {offsets = [0, 384], sizes = [8, 128], strides = [1, 1]} : vector<8x512xf32> to vector<8x128xf32>
    %224 = math.tanh %223 : vector<8x128xf32>
    %225 = arith.mulf %221, %184 : vector<8x128xf32>
    %226 = arith.mulf %220, %224 : vector<8x128xf32>
    %227 = arith.addf %225, %226 : vector<8x128xf32>
    %228 = math.tanh %227 : vector<8x128xf32>
    %229 = arith.mulf %222, %228 : vector<8x128xf32>
    %c40 = arith.constant 40 : index
    %c0_52 = arith.constant 0 : index
    %230 = vector.load %arg9[%c40, %c0_52] : memref<64x512xf32, #tpu.memory_space<vmem>>, vector<8x512xf32>
    %231 = vector.extract_strided_slice %211 {offsets = [0, 0], sizes = [8, 512], strides = [1, 1]} : vector<16x512xf32> to vector<8x512xf32>
    %232 = arith.addf %230, %231 : vector<8x512xf32>
    %233 = vector.extract_strided_slice %232 {offsets = [0, 0], sizes = [8, 384], strides = [1, 1]} : vector<8x512xf32> to vector<8x384xf32>
    %234 = arith.negf %233 : vector<8x384xf32>
    %235 = math.exp %234 : vector<8x384xf32>
    %cst_53 = arith.constant 1.000000e+00 : f32
    %236 = vector.broadcast %cst_53 : f32 to vector<8x384xf32>
    %237 = arith.addf %236, %235 : vector<8x384xf32>
    %238 = arith.divf %236, %237 : vector<8x384xf32>
    %239 = vector.extract_strided_slice %238 {offsets = [0, 0], sizes = [8, 128], strides = [1, 1]} : vector<8x384xf32> to vector<8x128xf32>
    %240 = vector.extract_strided_slice %238 {offsets = [0, 128], sizes = [8, 128], strides = [1, 1]} : vector<8x384xf32> to vector<8x128xf32>
    %241 = vector.extract_strided_slice %238 {offsets = [0, 256], sizes = [8, 128], strides = [1, 1]} : vector<8x384xf32> to vector<8x128xf32>
    %242 = vector.extract_strided_slice %232 {offsets = [0, 384], sizes = [8, 128], strides = [1, 1]} : vector<8x512xf32> to vector<8x128xf32>
    %243 = math.tanh %242 : vector<8x128xf32>
    %244 = arith.mulf %240, %203 : vector<8x128xf32>
    %245 = arith.mulf %239, %243 : vector<8x128xf32>
    %246 = arith.addf %244, %245 : vector<8x128xf32>
    %247 = math.tanh %246 : vector<8x128xf32>
    %248 = arith.mulf %241, %247 : vector<8x128xf32>
    %249 = tpu.concatenate %248, %17, %17 in 1 : vector<8x128xf32>, vector<8x128xf32>, vector<8x128xf32> -> vector<8x384xf32>
    %250 = tpu.concatenate %17, %248, %229 in 1 : vector<8x128xf32>, vector<8x128xf32>, vector<8x128xf32> -> vector<8x384xf32>
    %251 = tpu.concatenate %249, %250 in 0 : vector<8x384xf32>, vector<8x384xf32> -> vector<16x384xf32>
    %252 = arith.truncf %251 : vector<16x384xf32> to vector<16x384xbf16>
    %c0_54 = arith.constant 0 : index
    %c0_55 = arith.constant 0 : index
    %253 = vector.load %arg4[%c0_54, %c0_55] : memref<384x512xbf16, #tpu.memory_space<vmem>>, vector<384x512xbf16>
    %cst_56 = arith.constant dense<0.000000e+00> : vector<16x512xf32>
    %254 = tpu.matmul %252, %253, %cst_56 {dimension_numbers = #tpu.dot_dimension_numbers<[1], [0], [0], [1], [0, 0, 1, 1], [], []>} : vector<16x384xbf16>, vector<384x512xbf16>, vector<16x512xf32> -> vector<16x512xf32>
    %255 = vector.extract_strided_slice %254 {offsets = [8, 0], sizes = [8, 512], strides = [1, 1]} : vector<16x512xf32> to vector<8x512xf32>
    %256 = arith.addf %255, %16 : vector<8x512xf32>
    %257 = vector.extract_strided_slice %256 {offsets = [0, 0], sizes = [8, 384], strides = [1, 1]} : vector<8x512xf32> to vector<8x384xf32>
    %258 = arith.negf %257 : vector<8x384xf32>
    %259 = math.exp %258 : vector<8x384xf32>
    %cst_57 = arith.constant 1.000000e+00 : f32
    %260 = vector.broadcast %cst_57 : f32 to vector<8x384xf32>
    %261 = arith.addf %260, %259 : vector<8x384xf32>
    %262 = arith.divf %260, %261 : vector<8x384xf32>
    %263 = vector.extract_strided_slice %262 {offsets = [0, 0], sizes = [8, 128], strides = [1, 1]} : vector<8x384xf32> to vector<8x128xf32>
    %264 = vector.extract_strided_slice %262 {offsets = [0, 128], sizes = [8, 128], strides = [1, 1]} : vector<8x384xf32> to vector<8x128xf32>
    %265 = vector.extract_strided_slice %262 {offsets = [0, 256], sizes = [8, 128], strides = [1, 1]} : vector<8x384xf32> to vector<8x128xf32>
    %266 = vector.extract_strided_slice %256 {offsets = [0, 384], sizes = [8, 128], strides = [1, 1]} : vector<8x512xf32> to vector<8x128xf32>
    %267 = math.tanh %266 : vector<8x128xf32>
    %268 = arith.mulf %264, %227 : vector<8x128xf32>
    %269 = arith.mulf %263, %267 : vector<8x128xf32>
    %270 = arith.addf %268, %269 : vector<8x128xf32>
    %271 = math.tanh %270 : vector<8x128xf32>
    %272 = arith.mulf %265, %271 : vector<8x128xf32>
    %c48 = arith.constant 48 : index
    %c0_58 = arith.constant 0 : index
    %273 = vector.load %arg9[%c48, %c0_58] : memref<64x512xf32, #tpu.memory_space<vmem>>, vector<8x512xf32>
    %274 = vector.extract_strided_slice %254 {offsets = [0, 0], sizes = [8, 512], strides = [1, 1]} : vector<16x512xf32> to vector<8x512xf32>
    %275 = arith.addf %273, %274 : vector<8x512xf32>
    %276 = vector.extract_strided_slice %275 {offsets = [0, 0], sizes = [8, 384], strides = [1, 1]} : vector<8x512xf32> to vector<8x384xf32>
    %277 = arith.negf %276 : vector<8x384xf32>
    %278 = math.exp %277 : vector<8x384xf32>
    %cst_59 = arith.constant 1.000000e+00 : f32
    %279 = vector.broadcast %cst_59 : f32 to vector<8x384xf32>
    %280 = arith.addf %279, %278 : vector<8x384xf32>
    %281 = arith.divf %279, %280 : vector<8x384xf32>
    %282 = vector.extract_strided_slice %281 {offsets = [0, 0], sizes = [8, 128], strides = [1, 1]} : vector<8x384xf32> to vector<8x128xf32>
    %283 = vector.extract_strided_slice %281 {offsets = [0, 128], sizes = [8, 128], strides = [1, 1]} : vector<8x384xf32> to vector<8x128xf32>
    %284 = vector.extract_strided_slice %281 {offsets = [0, 256], sizes = [8, 128], strides = [1, 1]} : vector<8x384xf32> to vector<8x128xf32>
    %285 = vector.extract_strided_slice %275 {offsets = [0, 384], sizes = [8, 128], strides = [1, 1]} : vector<8x512xf32> to vector<8x128xf32>
    %286 = math.tanh %285 : vector<8x128xf32>
    %287 = arith.mulf %283, %246 : vector<8x128xf32>
    %288 = arith.mulf %282, %286 : vector<8x128xf32>
    %289 = arith.addf %287, %288 : vector<8x128xf32>
    %290 = math.tanh %289 : vector<8x128xf32>
    %291 = arith.mulf %284, %290 : vector<8x128xf32>
    %292 = tpu.concatenate %291, %17, %17 in 1 : vector<8x128xf32>, vector<8x128xf32>, vector<8x128xf32> -> vector<8x384xf32>
    %293 = tpu.concatenate %17, %291, %272 in 1 : vector<8x128xf32>, vector<8x128xf32>, vector<8x128xf32> -> vector<8x384xf32>
    %294 = tpu.concatenate %292, %293 in 0 : vector<8x384xf32>, vector<8x384xf32> -> vector<16x384xf32>
    %295 = arith.truncf %294 : vector<16x384xf32> to vector<16x384xbf16>
    %c0_60 = arith.constant 0 : index
    %c0_61 = arith.constant 0 : index
    %296 = vector.load %arg4[%c0_60, %c0_61] : memref<384x512xbf16, #tpu.memory_space<vmem>>, vector<384x512xbf16>
    %cst_62 = arith.constant dense<0.000000e+00> : vector<16x512xf32>
    %297 = tpu.matmul %295, %296, %cst_62 {dimension_numbers = #tpu.dot_dimension_numbers<[1], [0], [0], [1], [0, 0, 1, 1], [], []>} : vector<16x384xbf16>, vector<384x512xbf16>, vector<16x512xf32> -> vector<16x512xf32>
    %298 = vector.extract_strided_slice %297 {offsets = [8, 0], sizes = [8, 512], strides = [1, 1]} : vector<16x512xf32> to vector<8x512xf32>
    %299 = arith.addf %298, %16 : vector<8x512xf32>
    %300 = vector.extract_strided_slice %299 {offsets = [0, 0], sizes = [8, 384], strides = [1, 1]} : vector<8x512xf32> to vector<8x384xf32>
    %301 = arith.negf %300 : vector<8x384xf32>
    %302 = math.exp %301 : vector<8x384xf32>
    %cst_63 = arith.constant 1.000000e+00 : f32
    %303 = vector.broadcast %cst_63 : f32 to vector<8x384xf32>
    %304 = arith.addf %303, %302 : vector<8x384xf32>
    %305 = arith.divf %303, %304 : vector<8x384xf32>
    %306 = vector.extract_strided_slice %305 {offsets = [0, 0], sizes = [8, 128], strides = [1, 1]} : vector<8x384xf32> to vector<8x128xf32>
    %307 = vector.extract_strided_slice %305 {offsets = [0, 128], sizes = [8, 128], strides = [1, 1]} : vector<8x384xf32> to vector<8x128xf32>
    %308 = vector.extract_strided_slice %305 {offsets = [0, 256], sizes = [8, 128], strides = [1, 1]} : vector<8x384xf32> to vector<8x128xf32>
    %309 = vector.extract_strided_slice %299 {offsets = [0, 384], sizes = [8, 128], strides = [1, 1]} : vector<8x512xf32> to vector<8x128xf32>
    %310 = math.tanh %309 : vector<8x128xf32>
    %311 = arith.mulf %307, %270 : vector<8x128xf32>
    %312 = arith.mulf %306, %310 : vector<8x128xf32>
    %313 = arith.addf %311, %312 : vector<8x128xf32>
    %314 = math.tanh %313 : vector<8x128xf32>
    %315 = arith.mulf %308, %314 : vector<8x128xf32>
    %c56 = arith.constant 56 : index
    %c0_64 = arith.constant 0 : index
    %316 = vector.load %arg9[%c56, %c0_64] : memref<64x512xf32, #tpu.memory_space<vmem>>, vector<8x512xf32>
    %317 = vector.extract_strided_slice %297 {offsets = [0, 0], sizes = [8, 512], strides = [1, 1]} : vector<16x512xf32> to vector<8x512xf32>
    %318 = arith.addf %316, %317 : vector<8x512xf32>
    %319 = vector.extract_strided_slice %318 {offsets = [0, 0], sizes = [8, 384], strides = [1, 1]} : vector<8x512xf32> to vector<8x384xf32>
    %320 = arith.negf %319 : vector<8x384xf32>
    %321 = math.exp %320 : vector<8x384xf32>
    %cst_65 = arith.constant 1.000000e+00 : f32
    %322 = vector.broadcast %cst_65 : f32 to vector<8x384xf32>
    %323 = arith.addf %322, %321 : vector<8x384xf32>
    %324 = arith.divf %322, %323 : vector<8x384xf32>
    %325 = vector.extract_strided_slice %324 {offsets = [0, 0], sizes = [8, 128], strides = [1, 1]} : vector<8x384xf32> to vector<8x128xf32>
    %326 = vector.extract_strided_slice %324 {offsets = [0, 128], sizes = [8, 128], strides = [1, 1]} : vector<8x384xf32> to vector<8x128xf32>
    %327 = vector.extract_strided_slice %324 {offsets = [0, 256], sizes = [8, 128], strides = [1, 1]} : vector<8x384xf32> to vector<8x128xf32>
    %328 = vector.extract_strided_slice %318 {offsets = [0, 384], sizes = [8, 128], strides = [1, 1]} : vector<8x512xf32> to vector<8x128xf32>
    %329 = math.tanh %328 : vector<8x128xf32>
    %330 = arith.mulf %326, %289 : vector<8x128xf32>
    %331 = arith.mulf %325, %329 : vector<8x128xf32>
    %332 = arith.addf %330, %331 : vector<8x128xf32>
    %333 = math.tanh %332 : vector<8x128xf32>
    %334 = arith.mulf %327, %333 : vector<8x128xf32>
    %335 = tpu.concatenate %334, %315 in 1 : vector<8x128xf32>, vector<8x128xf32> -> vector<8x256xf32>
    %336 = arith.truncf %335 : vector<8x256xf32> to vector<8x256xbf16>
    %c128 = arith.constant 128 : index
    %c0_66 = arith.constant 0 : index
    %337 = vector.load %arg4[%c128, %c0_66] : memref<384x512xbf16, #tpu.memory_space<vmem>>, vector<256x512xbf16>
    %cst_67 = arith.constant dense<0.000000e+00> : vector<8x512xf32>
    %338 = tpu.matmul %336, %337, %cst_67 {dimension_numbers = #tpu.dot_dimension_numbers<[1], [0], [0], [1], [0, 0, 1, 1], [], []>} : vector<8x256xbf16>, vector<256x512xbf16>, vector<8x512xf32> -> vector<8x512xf32>
    %339 = arith.addf %338, %16 : vector<8x512xf32>
    %340 = vector.extract_strided_slice %339 {offsets = [0, 0], sizes = [8, 384], strides = [1, 1]} : vector<8x512xf32> to vector<8x384xf32>
    %341 = arith.negf %340 : vector<8x384xf32>
    %342 = math.exp %341 : vector<8x384xf32>
    %cst_68 = arith.constant 1.000000e+00 : f32
    %343 = vector.broadcast %cst_68 : f32 to vector<8x384xf32>
    %344 = arith.addf %343, %342 : vector<8x384xf32>
    %345 = arith.divf %343, %344 : vector<8x384xf32>
    %346 = vector.extract_strided_slice %345 {offsets = [0, 0], sizes = [8, 128], strides = [1, 1]} : vector<8x384xf32> to vector<8x128xf32>
    %347 = vector.extract_strided_slice %345 {offsets = [0, 128], sizes = [8, 128], strides = [1, 1]} : vector<8x384xf32> to vector<8x128xf32>
    %348 = vector.extract_strided_slice %345 {offsets = [0, 256], sizes = [8, 128], strides = [1, 1]} : vector<8x384xf32> to vector<8x128xf32>
    %349 = vector.extract_strided_slice %339 {offsets = [0, 384], sizes = [8, 128], strides = [1, 1]} : vector<8x512xf32> to vector<8x128xf32>
    %350 = math.tanh %349 : vector<8x128xf32>
    %351 = arith.mulf %347, %313 : vector<8x128xf32>
    %352 = arith.mulf %346, %350 : vector<8x128xf32>
    %353 = arith.addf %351, %352 : vector<8x128xf32>
    %354 = math.tanh %353 : vector<8x128xf32>
    %355 = arith.mulf %348, %354 : vector<8x128xf32>
    %356 = arith.truncf %355 : vector<8x128xf32> to vector<8x128xbf16>
    %c0_69 = arith.constant 0 : index
    %c0_70 = arith.constant 0 : index
    %357 = vector.load %arg6[%c0_69, %c0_70] : memref<128x128xbf16, #tpu.memory_space<vmem>>, vector<128x128xbf16>
    %cst_71 = arith.constant dense<0.000000e+00> : vector<8x128xf32>
    %358 = tpu.matmul %356, %357, %cst_71 {dimension_numbers = #tpu.dot_dimension_numbers<[1], [0], [0], [1], [0, 0, 1, 1], [], []>} : vector<8x128xbf16>, vector<128x128xbf16>, vector<8x128xf32> -> vector<8x128xf32>
    %c0_72 = arith.constant 0 : index
    %c0_73 = arith.constant 0 : index
    %359 = vector.load %arg7[%c0_72, %c0_73] : memref<1x128xf32, #tpu.memory_space<vmem>>, vector<1x128xf32>
    %360 = vector.broadcast %359 : vector<1x128xf32> to vector<8x128xf32>
    %361 = arith.addf %358, %360 : vector<8x128xf32>
    %c0_74 = arith.constant 0 : index
    %c0_75 = arith.constant 0 : index
    %362 = vector.load %arg8[%c0_74, %c0_75] : memref<8x128xf32, #tpu.memory_space<vmem>>, vector<8x128xf32>
    tpu.vector_store %arg8[%c0_74, %c0_75], %361 {strides = array<i32>} : memref<8x128xf32, #tpu.memory_space<vmem>>, vector<8x128xf32>,
    return
  }
  func.func @transform_0(%arg0: i32) -> (i32, i32) {
    %c0_i32 = arith.constant 0 : i32
    %c0_i32_0 = arith.constant 0 : i32
    %c0_i32_1 = arith.constant 0 : i32
    return %c0_i32, %c0_i32_0 : i32, i32
  }
  func.func @transform_1(%arg0: i32) -> (i32, i32) {
    %c0_i32 = arith.constant 0 : i32
    %c0_i32_0 = arith.constant 0 : i32
    %c0_i32_1 = arith.constant 0 : i32
    return %c0_i32, %c0_i32_0 : i32, i32
  }
  func.func @transform_2(%arg0: i32) -> (i32, i32) {
    %c0_i32 = arith.constant 0 : i32
    %c0_i32_0 = arith.constant 0 : i32
    %c0_i32_1 = arith.constant 0 : i32
    return %c0_i32, %c0_i32_0 : i32, i32
  }
  func.func @transform_3(%arg0: i32) -> (i32, i32) {
    %c0_i32 = arith.constant 0 : i32
    %c0_i32_0 = arith.constant 0 : i32
    %c0_i32_1 = arith.constant 0 : i32
    return %c0_i32, %c0_i32_0 : i32, i32
  }
  func.func @transform_4(%arg0: i32) -> (i32, i32) {
    %c0_i32 = arith.constant 0 : i32
    %c0_i32_0 = arith.constant 0 : i32
    %c0_i32_1 = arith.constant 0 : i32
    return %c0_i32, %c0_i32_0 : i32, i32
  }
  func.func @transform_5(%arg0: i32) -> (i32, i32) {
    %c0_i32 = arith.constant 0 : i32
    %c0_i32_0 = arith.constant 0 : i32
    %c0_i32_1 = arith.constant 0 : i32
    return %c0_i32, %c0_i32_0 : i32, i32
  }
  func.func @transform_6(%arg0: i32) -> (i32, i32) {
    %c0_i32 = arith.constant 0 : i32
    %c0_i32_0 = arith.constant 0 : i32
    %c0_i32_1 = arith.constant 0 : i32
    return %c0_i32, %c0_i32_0 : i32, i32
  }
  func.func @transform_7(%arg0: i32) -> (i32, i32) {
    %c0_i32 = arith.constant 0 : i32
    %c0_i32_0 = arith.constant 0 : i32
    %c0_i32_1 = arith.constant 0 : i32
    return %c0_i32, %c0_i32_0 : i32, i32
  }
}

</mosaic_0001>

<llo_original>
// kernel: forward.1
$region0: #{forward.1}
  #allocation0 [shape = 'u32[]', space=smem, size = 0x4, offset = 0x4, fixed_abs, tag = 'smem constant byte address 0x4 - core index']
  #allocation1 [shape = 'u32[144,128]{1,0:T(1,128)}', space=vmem, size = 0x12000, scoped, tag = 'internal scratch']
  #allocation2 [shape = 'f32[64,512]{1,0:T(8,128)}', space=vmem, size = 0x20000, scoped, tag = 'scratch operand']
  %s0 = inlined_call_operand.vmem [shape: bf16[64,128], index: 0, kind: input, shape index: {}]
  %s1 = inlined_call_operand.vmem [shape: bf16[128,512], index: 1, kind: input, shape index: {}]
  %s2 = inlined_call_operand.vmem [shape: f32[1,512], index: 2, kind: input, shape index: {}]
  %s3 = inlined_call_operand.vmem [shape: bf16[384,512], index: 3, kind: input, shape index: {}]
  %s4 = inlined_call_operand.vmem [shape: f32[1,512], index: 4, kind: input, shape index: {}]
  %s5 = inlined_call_operand.vmem [shape: bf16[128,128], index: 5, kind: input, shape index: {}]
  %s6 = inlined_call_operand.vmem [shape: f32[1,128], index: 6, kind: input, shape index: {}]
  %s7 = inlined_call_operand.vmem [shape: f32[8,128], index: 7, kind: output, shape index: {}]
  %s8 = sld [smem:[#allocation0]]
  $region38: #{forward.1} parent=0
    _
  %s10 = ssub.s32 1, %s8
  %s11 = scalar_select 0, %s10, %s8
  // Predicated region
  $region2: #{forward.1} parent=0 // pred_check
    _
  $region3: #{forward.1} parent=0 // pred_check_branch
    %13 = sbr.rel (0) target = $region5
  $region4: #{forward.1} parent=0 // pred_region
    _
  $region5: #{forward.1} parent=0 // pred_fallthru
    _
  // Predicated region
  $region6: #{forward.1} parent=0 // pred_check
    _
  $region7: #{forward.1} parent=0 // pred_check_branch
    %15 = sbr.rel (0) target = $region9
  $region8: #{forward.1} parent=0 // pred_region
    _
  $region9: #{forward.1} parent=0 // pred_fallthru
    _
  // Predicated region
  $region10: #{forward.1} parent=0 // pred_check
    _
  $region11: #{forward.1} parent=0 // pred_check_branch
    %17 = sbr.rel (0) target = $region13
  $region12: #{forward.1} parent=0 // pred_region
    _
  $region13: #{forward.1} parent=0 // pred_fallthru
    _
  // Predicated region
  $region14: #{forward.1} parent=0 // pred_check
    _
  $region15: #{forward.1} parent=0 // pred_check_branch
    %19 = sbr.rel (0) target = $region17
  $region16: #{forward.1} parent=0 // pred_region
    _
  $region17: #{forward.1} parent=0 // pred_fallthru
    _
  // Predicated region
  $region18: #{forward.1} parent=0 // pred_check
    _
  $region19: #{forward.1} parent=0 // pred_check_branch
    %21 = sbr.rel (0) target = $region21
  $region20: #{forward.1} parent=0 // pred_region
    _
  $region21: #{forward.1} parent=0 // pred_fallthru
    _
  // Predicated region
  $region22: #{forward.1} parent=0 // pred_check
    _
  $region23: #{forward.1} parent=0 // pred_check_branch
    %23 = sbr.rel (0) target = $region25
  $region24: #{forward.1} parent=0 // pred_region
    _
  $region25: #{forward.1} parent=0 // pred_fallthru
    _
  // Predicated region
  $region26: #{forward.1} parent=0 // pred_check
    _
  $region27: #{forward.1} parent=0 // pred_check_branch
    %25 = sbr.rel (0) target = $region29
  $region28: #{forward.1} parent=0 // pred_region
    _
  $region29: #{forward.1} parent=0 // pred_fallthru
    _
  %v27 = vld [vmem:[%s0] sm:$0xf]
  %v28 = vld [vmem:[%s0 + $0x4] sm:$0xf]
  %v29 = vld [vmem:[%s0 + $0x8] sm:$0xf]
  %v30 = vld [vmem:[%s0 + $0xc] sm:$0xf]
  %v31 = vld [vmem:[%s1] sm:$0xff]
  %v32 = vld [vmem:[%s1 + $0x8] sm:$0xff]
  %v33 = vld [vmem:[%s1 + $0x10] sm:$0xff]
  %v34 = vld [vmem:[%s1 + $0x18] sm:$0xff]
  %v35 = vld [vmem:[%s1 + $0x20] sm:$0xff]
  %v36 = vld [vmem:[%s1 + $0x28] sm:$0xff]
  %v37 = vld [vmem:[%s1 + $0x30] sm:$0xff]
  %v38 = vld [vmem:[%s1 + $0x38] sm:$0xff]
  %v39 = vld [vmem:[%s1 + $0x40] sm:$0xff]
  %v40 = vld [vmem:[%s1 + $0x48] sm:$0xff]
  %v41 = vld [vmem:[%s1 + $0x50] sm:$0xff]
  %v42 = vld [vmem:[%s1 + $0x58] sm:$0xff]
  %v43 = vld [vmem:[%s1 + $0x60] sm:$0xff]
  %v44 = vld [vmem:[%s1 + $0x68] sm:$0xff]
  %v45 = vld [vmem:[%s1 + $0x70] sm:$0xff]
  %v46 = vld [vmem:[%s1 + $0x78] sm:$0xff]
  %v47 = vld [vmem:[%s1 + $0x80] sm:$0xff]
  %v48 = vld [vmem:[%s1 + $0x88] sm:$0xff]
  %v49 = vld [vmem:[%s1 + $0x90] sm:$0xff]
  %v50 = vld [vmem:[%s1 + $0x98] sm:$0xff]
  %v51 = vld [vmem:[%s1 + $0xa0] sm:$0xff]
  %v52 = vld [vmem:[%s1 + $0xa8] sm:$0xff]
  %v53 = vld [vmem:[%s1 + $0xb0] sm:$0xff]
  %v54 = vld [vmem:[%s1 + $0xb8] sm:$0xff]
  %v55 = vld [vmem:[%s1 + $0xc0] sm:$0xff]
  %v56 = vld [vmem:[%s1 + $0xc8] sm:$0xff]
  %v57 = vld [vmem:[%s1 + $0xd0] sm:$0xff]
  %v58 = vld [vmem:[%s1 + $0xd8] sm:$0xff]
  %v59 = vld [vmem:[%s1 + $0xe0] sm:$0xff]
  %v60 = vld [vmem:[%s1 + $0xe8] sm:$0xff]
  %v61 = vld [vmem:[%s1 + $0xf0] sm:$0xff]
  %v62 = vld [vmem:[%s1 + $0xf8] sm:$0xff]
  %v63 = vld [vmem:[%s2] sm:$0xf]
  %v65 = vlaneseq
  %v66 = vshrl.u32 %v65, 7
  %v67 = vsub.s32 0, %v66
  %v68 = vrot.slane %v63, %v67
  %v69 = vlaneseq
  %v70 = vshrl.u32 %v69, 7
  %v71 = vsub.s32 1, %v70
  %v72 = vrot.slane %v63, %v71
  %v73 = vlaneseq
  %v74 = vshrl.u32 %v73, 7
  %v75 = vsub.s32 2, %v74
  %v76 = vrot.slane %v63, %v75
  %v77 = vlaneseq
  %v78 = vshrl.u32 %v77, 7
  %v79 = vsub.s32 3, %v78
  %v80 = vrot.slane %v63, %v79
  %v89 = vunpack.c.l.b16 %v27
  %v90 = vunpack.c.l.b16 %v28
  %v91 = vunpack.c.l.b16 %v29
  %v92 = vunpack.c.l.b16 %v30
  %v93 = vpack.c.b16 %v90, %v89
  %v94 = vpack.c.b16 %v92, %v91
  %v129 = vunpack.c.l.b16 %v31
  %v130 = vunpack.c.h.b16 %v31
  %v131 = vunpack.c.l.b16 %v32
  %v132 = vunpack.c.h.b16 %v32
  %v133 = vunpack.c.l.b16 %v33
  %v134 = vunpack.c.h.b16 %v33
  %v135 = vunpack.c.l.b16 %v34
  %v136 = vunpack.c.h.b16 %v34
  %v137 = vunpack.c.l.b16 %v35
  %v138 = vunpack.c.h.b16 %v35
  %v139 = vunpack.c.l.b16 %v36
  %v140 = vunpack.c.h.b16 %v36
  %v141 = vunpack.c.l.b16 %v37
  %v142 = vunpack.c.h.b16 %v37
  %v143 = vunpack.c.l.b16 %v38
  %v144 = vunpack.c.h.b16 %v38
  %v145 = vunpack.c.l.b16 %v39
  %v146 = vunpack.c.h.b16 %v39
  %v147 = vunpack.c.l.b16 %v40
  %v148 = vunpack.c.h.b16 %v40
  %v149 = vunpack.c.l.b16 %v41
  %v150 = vunpack.c.h.b16 %v41
  %v151 = vunpack.c.l.b16 %v42
  %v152 = vunpack.c.h.b16 %v42
  %v153 = vunpack.c.l.b16 %v43
  %v154 = vunpack.c.h.b16 %v43
  %v155 = vunpack.c.l.b16 %v44
  %v156 = vunpack.c.h.b16 %v44
  %v157 = vunpack.c.l.b16 %v45
  %v158 = vunpack.c.h.b16 %v45
  %v159 = vunpack.c.l.b16 %v46
  %v160 = vunpack.c.h.b16 %v46
  %v161 = vunpack.c.l.b16 %v47
  %v162 = vunpack.c.h.b16 %v47
  %v163 = vunpack.c.l.b16 %v48
  %v164 = vunpack.c.h.b16 %v48
  %v165 = vunpack.c.l.b16 %v49
  %v166 = vunpack.c.h.b16 %v49
  %v167 = vunpack.c.l.b16 %v50
  %v168 = vunpack.c.h.b16 %v50
  %v169 = vunpack.c.l.b16 %v51
  %v170 = vunpack.c.h.b16 %v51
  %v171 = vunpack.c.l.b16 %v52
  %v172 = vunpack.c.h.b16 %v52
  %v173 = vunpack.c.l.b16 %v53
  %v174 = vunpack.c.h.b16 %v53
  %v175 = vunpack.c.l.b16 %v54
  %v176 = vunpack.c.h.b16 %v54
  %v177 = vunpack.c.l.b16 %v55
  %v178 = vunpack.c.h.b16 %v55
  %v179 = vunpack.c.l.b16 %v56
  %v180 = vunpack.c.h.b16 %v56
  %v181 = vunpack.c.l.b16 %v57
  %v182 = vunpack.c.h.b16 %v57
  %v183 = vunpack.c.l.b16 %v58
  %v184 = vunpack.c.h.b16 %v58
  %v185 = vunpack.c.l.b16 %v59
  %v186 = vunpack.c.h.b16 %v59
  %v187 = vunpack.c.l.b16 %v60
  %v188 = vunpack.c.h.b16 %v60
  %v189 = vunpack.c.l.b16 %v61
  %v190 = vunpack.c.h.b16 %v61
  %v191 = vunpack.c.l.b16 %v62
  %v192 = vunpack.c.h.b16 %v62
  %v193 = vpack.c.b16 %v133, %v129
  %v194 = vpack.c.b16 %v134, %v130
  %v195 = vpack.c.b16 %v135, %v131
  %v196 = vpack.c.b16 %v136, %v132
  %v197 = vpack.c.b16 %v141, %v137
  %v198 = vpack.c.b16 %v142, %v138
  %v199 = vpack.c.b16 %v143, %v139
  %v200 = vpack.c.b16 %v144, %v140
  %v201 = vpack.c.b16 %v149, %v145
  %v202 = vpack.c.b16 %v150, %v146
  %v203 = vpack.c.b16 %v151, %v147
  %v204 = vpack.c.b16 %v152, %v148
  %v205 = vpack.c.b16 %v157, %v153
  %v206 = vpack.c.b16 %v158, %v154
  %v207 = vpack.c.b16 %v159, %v155
  %v208 = vpack.c.b16 %v160, %v156
  %v209 = vpack.c.b16 %v165, %v161
  %v210 = vpack.c.b16 %v166, %v162
  %v211 = vpack.c.b16 %v167, %v163
  %v212 = vpack.c.b16 %v168, %v164
  %v213 = vpack.c.b16 %v173, %v169
  %v214 = vpack.c.b16 %v174, %v170
  %v215 = vpack.c.b16 %v175, %v171
  %v216 = vpack.c.b16 %v176, %v172
  %v217 = vpack.c.b16 %v181, %v177
  %v218 = vpack.c.b16 %v182, %v178
  %v219 = vpack.c.b16 %v183, %v179
  %v220 = vpack.c.b16 %v184, %v180
  %v221 = vpack.c.b16 %v189, %v185
  %v222 = vpack.c.b16 %v190, %v186
  %v223 = vpack.c.b16 %v191, %v187
  %v224 = vpack.c.b16 %v192, %v188
  %257 = vmatprep.subr.bf16.mxu0 %v194
  %258 = vmatpush1.bf16.msra.mxu0 %v193
  %259 = vmatprep.subr.bf16.mxu0 %v198
  %260 = vmatpush1.bf16.msra.mxu0 %v197
  %261 = vmatprep.subr.bf16.mxu0 %v202
  %262 = vmatpush1.bf16.msra.mxu0 %v201
  %263 = vmatprep.subr.bf16.mxu0 %v206
  %264 = vmatpush1.bf16.msra.mxu0 %v205
  %265 = vmatprep.subr.bf16.mxu0 %v210
  %266 = vmatpush1.bf16.msra.mxu0 %v209
  %267 = vmatprep.subr.bf16.mxu0 %v214
  %268 = vmatpush1.bf16.msra.mxu0 %v213
  %269 = vmatprep.subr.bf16.mxu0 %v218
  %270 = vmatpush1.bf16.msra.mxu0 %v217
  %271 = vmatprep.subr.bf16.mxu0 %v222
  %272 = vmatpush1.bf16.msra.mxu0 %v221
  %273 = vmatprep.subr.bf16.mxu0 0
  %274 = vmatpush1.bf16.msra.mxu0 0
  %275 = vmatprep.subr.bf16.mxu0 0
  %276 = vmatpush1.bf16.msra.mxu0 0
  %277 = vmatprep.subr.bf16.mxu0 0
  %278 = vmatpush1.bf16.msra.mxu0 0
  %279 = vmatprep.subr.bf16.mxu0 0
  %280 = vmatpush1.bf16.msra.mxu0 0
  %281 = vmatprep.subr.bf16.mxu0 0
  %282 = vmatpush1.bf16.msra.mxu0 0
  %283 = vmatprep.subr.bf16.mxu0 0
  %284 = vmatpush1.bf16.msra.mxu0 0
  %285 = vmatprep.subr.bf16.mxu0 0
  %286 = vmatpush1.bf16.msra.mxu0 0
  %287 = vmatprep.subr.bf16.mxu0 0
  %288 = vmatpush1.bf16.msra.mxu0 0
  %289 = vmatprep.mubr.bf16.mxu0 0
  %290 = vmatmul.mubr.bf16.gmra.mrb[0].mxu0 %v93
  %v291 = vpop.f32.mrb[0].mxu0
  %v292 = vadd.f32 %v68, %v291
  %v293 = vpop.f32.mrb[0].mxu0
  %v294 = vadd.f32 %v72, %v293
  %v295 = vpop.f32.mrb[0].mxu0
  %v296 = vadd.f32 %v68, %v295
  %v297 = vpop.f32.mrb[0].mxu0
  %v298 = vadd.f32 %v72, %v297
  %299 = vmatprep.mubr.bf16.mxu0 0
  %300 = vmatmul.mubr.bf16.gmra.mrb[0].mxu0 %v94
  %v301 = vpop.f32.mrb[0].mxu0
  %v302 = vadd.f32 %v68, %v301
  %v303 = vpop.f32.mrb[0].mxu0
  %v304 = vadd.f32 %v72, %v303
  %v305 = vpop.f32.mrb[0].mxu0
  %v306 = vadd.f32 %v68, %v305
  %v307 = vpop.f32.mrb[0].mxu0
  %v308 = vadd.f32 %v72, %v307
  %309 = vdwg.mxu0
  %310 = vmatprep.subr.bf16.mxu0 %v196
  %311 = vmatpush1.bf16.msra.mxu0 %v195
  %312 = vmatprep.subr.bf16.mxu0 %v200
  %313 = vmatpush1.bf16.msra.mxu0 %v199
  %314 = vmatprep.subr.bf16.mxu0 %v204
  %315 = vmatpush1.bf16.msra.mxu0 %v203
  %316 = vmatprep.subr.bf16.mxu0 %v208
  %317 = vmatpush1.bf16.msra.mxu0 %v207
  %318 = vmatprep.subr.bf16.mxu0 %v212
  %319 = vmatpush1.bf16.msra.mxu0 %v211
  %320 = vmatprep.subr.bf16.mxu0 %v216
  %321 = vmatpush1.bf16.msra.mxu0 %v215
  %322 = vmatprep.subr.bf16.mxu0 %v220
  %323 = vmatpush1.bf16.msra.mxu0 %v219
  %324 = vmatprep.subr.bf16.mxu0 %v224
  %325 = vmatpush1.bf16.msra.mxu0 %v223
  %326 = vmatprep.subr.bf16.mxu0 0
  %327 = vmatpush1.bf16.msra.mxu0 0
  %328 = vmatprep.subr.bf16.mxu0 0
  %329 = vmatpush1.bf16.msra.mxu0 0
  %330 = vmatprep.subr.bf16.mxu0 0
  %331 = vmatpush1.bf16.msra.mxu0 0
  %332 = vmatprep.subr.bf16.mxu0 0
  %333 = vmatpush1.bf16.msra.mxu0 0
  %334 = vmatprep.subr.bf16.mxu0 0
  %335 = vmatpush1.bf16.msra.mxu0 0
  %336 = vmatprep.subr.bf16.mxu0 0
  %337 = vmatpush1.bf16.msra.mxu0 0
  %338 = vmatprep.subr.bf16.mxu0 0
  %339 = vmatpush1.bf16.msra.mxu0 0
  %340 = vmatprep.subr.bf16.mxu0 0
  %341 = vmatpush1.bf16.msra.mxu0 0
  %342 = vmatprep.mubr.bf16.mxu0 0
  %343 = vmatmul.mubr.bf16.gmra.mrb[0].mxu0 %v93
  %v344 = vpop.f32.mrb[0].mxu0
  %v345 = vadd.f32 %v76, %v344
  %v346 = vpop.f32.mrb[0].mxu0
  %v347 = vadd.f32 %v80, %v346
  %v348 = vpop.f32.mrb[0].mxu0
  %v349 = vadd.f32 %v76, %v348
  %v350 = vpop.f32.mrb[0].mxu0
  %v351 = vadd.f32 %v80, %v350
  %352 = vmatprep.mubr.bf16.mxu0 0
  %353 = vmatmul.mubr.bf16.gmra.mrb[0].mxu0 %v94
  %v354 = vpop.f32.mrb[0].mxu0
  %v355 = vadd.f32 %v76, %v354
  %v356 = vpop.f32.mrb[0].mxu0
  %v357 = vadd.f32 %v80, %v356
  %v358 = vpop.f32.mrb[0].mxu0
  %v359 = vadd.f32 %v76, %v358
  %v360 = vpop.f32.mrb[0].mxu0
  %v361 = vadd.f32 %v80, %v360
  %362 = vdwg.mxu0
  %363 = vst [vmem:[#allocation2] sm:$0xff] %v292
  %364 = vst [vmem:[#allocation2 + $0x8] sm:$0xff] %v294
  %365 = vst [vmem:[#allocation2 + $0x10] sm:$0xff] %v345
  %366 = vst [vmem:[#allocation2 + $0x18] sm:$0xff] %v347
  %367 = vst [vmem:[#allocation2 + $0x20] sm:$0xff] %v296
  %368 = vst [vmem:[#allocation2 + $0x28] sm:$0xff] %v298
  %369 = vst [vmem:[#allocation2 + $0x30] sm:$0xff] %v349
  %370 = vst [vmem:[#allocation2 + $0x38] sm:$0xff] %v351
  %371 = vst [vmem:[#allocation2 + $0x40] sm:$0xff] %v302
  %372 = vst [vmem:[#allocation2 + $0x48] sm:$0xff] %v304
  %373 = vst [vmem:[#allocation2 + $0x50] sm:$0xff] %v355
  %374 = vst [vmem:[#allocation2 + $0x58] sm:$0xff] %v357
  %375 = vst [vmem:[#allocation2 + $0x60] sm:$0xff] %v306
  %376 = vst [vmem:[#allocation2 + $0x68] sm:$0xff] %v308
  %377 = vst [vmem:[#allocation2 + $0x70] sm:$0xff] %v359
  %378 = vst [vmem:[#allocation2 + $0x78] sm:$0xff] %v361
  %v379 = vld [vmem:[%s0 + $0x10] sm:$0xf]
  %v380 = vld [vmem:[%s0 + $0x14] sm:$0xf]
  %v381 = vld [vmem:[%s0 + $0x18] sm:$0xf]
  %v382 = vld [vmem:[%s0 + $0x1c] sm:$0xf]
  %v383 = vld [vmem:[%s1] sm:$0xff]
  %v384 = vld [vmem:[%s1 + $0x8] sm:$0xff]
  %v385 = vld [vmem:[%s1 + $0x10] sm:$0xff]
  %v386 = vld [vmem:[%s1 + $0x18] sm:$0xff]
  %v387 = vld [vmem:[%s1 + $0x20] sm:$0xff]
  %v388 = vld [vmem:[%s1 + $0x28] sm:$0xff]
  %v389 = vld [vmem:[%s1 + $0x30] sm:$0xff]
  %v390 = vld [vmem:[%s1 + $0x38] sm:$0xff]
  %v391 = vld [vmem:[%s1 + $0x40] sm:$0xff]
  %v392 = vld [vmem:[%s1 + $0x48] sm:$0xff]
  %v393 = vld [vmem:[%s1 + $0x50] sm:$0xff]
  %v394 = vld [vmem:[%s1 + $0x58] sm:$0xff]
  %v395 = vld [vmem:[%s1 + $0x60] sm:$0xff]
  %v396 = vld [vmem:[%s1 + $0x68] sm:$0xff]
  %v397 = vld [vmem:[%s1 + $0x70] sm:$0xff]
  %v398 = vld [vmem:[%s1 + $0x78] sm:$0xff]
  %v399 = vld [vmem:[%s1 + $0x80] sm:$0xff]
  %v400 = vld [vmem:[%s1 + $0x88] sm:$0xff]
  %v401 = vld [vmem:[%s1 + $0x90] sm:$0xff]
  %v402 = vld [vmem:[%s1 + $0x98] sm:$0xff]
  %v403 = vld [vmem:[%s1 + $0xa0] sm:$0xff]
  %v404 = vld [vmem:[%s1 + $0xa8] sm:$0xff]
  %v405 = vld [vmem:[%s1 + $0xb0] sm:$0xff]
  %v406 = vld [vmem:[%s1 + $0xb8] sm:$0xff]
  %v407 = vld [vmem:[%s1 + $0xc0] sm:$0xff]
  %v408 = vld [vmem:[%s1 + $0xc8] sm:$0xff]
  %v409 = vld [vmem:[%s1 + $0xd0] sm:$0xff]
  %v410 = vld [vmem:[%s1 + $0xd8] sm:$0xff]
  %v411 = vld [vmem:[%s1 + $0xe0] sm:$0xff]
  %v412 = vld [vmem:[%s1 + $0xe8] sm:$0xff]
  %v413 = vld [vmem:[%s1 + $0xf0] sm:$0xff]
  %v414 = vld [vmem:[%s1 + $0xf8] sm:$0xff]
  %v415 = vld [vmem:[%s2] sm:$0xf]
  %v417 = vlaneseq
  %v418 = vshrl.u32 %v417, 7
  %v419 = vsub.s32 0, %v418
  %v420 = vrot.slane %v415, %v419
  %v421 = vlaneseq
  %v422 = vshrl.u32 %v421, 7
  %v423 = vsub.s32 1, %v422
  %v424 = vrot.slane %v415, %v423
  %v425 = vlaneseq
  %v426 = vshrl.u32 %v425, 7
  %v427 = vsub.s32 2, %v426
  %v428 = vrot.slane %v415, %v427
  %v429 = vlaneseq
  %v430 = vshrl.u32 %v429, 7
  %v431 = vsub.s32 3, %v430
  %v432 = vrot.slane %v415, %v431
  %v441 = vunpack.c.l.b16 %v379
  %v442 = vunpack.c.l.b16 %v380
  %v443 = vunpack.c.l.b16 %v381
  %v444 = vunpack.c.l.b16 %v382
  %v445 = vpack.c.b16 %v442, %v441
  %v446 = vpack.c.b16 %v444, %v443
  %v481 = vunpack.c.l.b16 %v383
  %v482 = vunpack.c.h.b16 %v383
  %v483 = vunpack.c.l.b16 %v384
  %v484 = vunpack.c.h.b16 %v384
  %v485 = vunpack.c.l.b16 %v385
  %v486 = vunpack.c.h.b16 %v385
  %v487 = vunpack.c.l.b16 %v386
  %v488 = vunpack.c.h.b16 %v386
  %v489 = vunpack.c.l.b16 %v387
  %v490 = vunpack.c.h.b16 %v387
  %v491 = vunpack.c.l.b16 %v388
  %v492 = vunpack.c.h.b16 %v388
  %v493 = vunpack.c.l.b16 %v389
  %v494 = vunpack.c.h.b16 %v389
  %v495 = vunpack.c.l.b16 %v390
  %v496 = vunpack.c.h.b16 %v390
  %v497 = vunpack.c.l.b16 %v391
  %v498 = vunpack.c.h.b16 %v391
  %v499 = vunpack.c.l.b16 %v392
  %v500 = vunpack.c.h.b16 %v392
  %v501 = vunpack.c.l.b16 %v393
  %v502 = vunpack.c.h.b16 %v393
  %v503 = vunpack.c.l.b16 %v394
  %v504 = vunpack.c.h.b16 %v394
  %v505 = vunpack.c.l.b16 %v395
  %v506 = vunpack.c.h.b16 %v395
  %v507 = vunpack.c.l.b16 %v396
  %v508 = vunpack.c.h.b16 %v396
  %v509 = vunpack.c.l.b16 %v397
  %v510 = vunpack.c.h.b16 %v397
  %v511 = vunpack.c.l.b16 %v398
  %v512 = vunpack.c.h.b16 %v398
  %v513 = vunpack.c.l.b16 %v399
  %v514 = vunpack.c.h.b16 %v399
  %v515 = vunpack.c.l.b16 %v400
  %v516 = vunpack.c.h.b16 %v400
  %v517 = vunpack.c.l.b16 %v401
  %v518 = vunpack.c.h.b16 %v401
  %v519 = vunpack.c.l.b16 %v402
  %v520 = vunpack.c.h.b16 %v402
  %v521 = vunpack.c.l.b16 %v403
  %v522 = vunpack.c.h.b16 %v403
  %v523 = vunpack.c.l.b16 %v404
  %v524 = vunpack.c.h.b16 %v404
  %v525 = vunpack.c.l.b16 %v405
  %v526 = vunpack.c.h.b16 %v405
  %v527 = vunpack.c.l.b16 %v406
  %v528 = vunpack.c.h.b16 %v406
  %v529 = vunpack.c.l.b16 %v407
  %v530 = vunpack.c.h.b16 %v407
  %v531 = vunpack.c.l.b16 %v408
  %v532 = vunpack.c.h.b16 %v408
  %v533 = vunpack.c.l.b16 %v409
  %v534 = vunpack.c.h.b16 %v409
  %v535 = vunpack.c.l.b16 %v410
  %v536 = vunpack.c.h.b16 %v410
  %v537 = vunpack.c.l.b16 %v411
  %v538 = vunpack.c.h.b16 %v411
  %v539 = vunpack.c.l.b16 %v412
  %v540 = vunpack.c.h.b16 %v412
  %v541 = vunpack.c.l.b16 %v413
  %v542 = vunpack.c.h.b16 %v413
  %v543 = vunpack.c.l.b16 %v414
  %v544 = vunpack.c.h.b16 %v414
  %v545 = vpack.c.b16 %v485, %v481
  %v546 = vpack.c.b16 %v486, %v482
  %v547 = vpack.c.b16 %v487, %v483
  %v548 = vpack.c.b16 %v488, %v484
  %v549 = vpack.c.b16 %v493, %v489
  %v550 = vpack.c.b16 %v494, %v490
  %v551 = vpack.c.b16 %v495, %v491
  %v552 = vpack.c.b16 %v496, %v492
  %v553 = vpack.c.b16 %v501, %v497
  %v554 = vpack.c.b16 %v502, %v498
  %v555 = vpack.c.b16 %v503, %v499
  %v556 = vpack.c.b16 %v504, %v500
  %v557 = vpack.c.b16 %v509, %v505
  %v558 = vpack.c.b16 %v510, %v506
  %v559 = vpack.c.b16 %v511, %v507
  %v560 = vpack.c.b16 %v512, %v508
  %v561 = vpack.c.b16 %v517, %v513
  %v562 = vpack.c.b16 %v518, %v514
  %v563 = vpack.c.b16 %v519, %v515
  %v564 = vpack.c.b16 %v520, %v516
  %v565 = vpack.c.b16 %v525, %v521
  %v566 = vpack.c.b16 %v526, %v522
  %v567 = vpack.c.b16 %v527, %v523
  %v568 = vpack.c.b16 %v528, %v524
  %v569 = vpack.c.b16 %v533, %v529
  %v570 = vpack.c.b16 %v534, %v530
  %v571 = vpack.c.b16 %v535, %v531
  %v572 = vpack.c.b16 %v536, %v532
  %v573 = vpack.c.b16 %v541, %v537
  %v574 = vpack.c.b16 %v542, %v538
  %v575 = vpack.c.b16 %v543, %v539
  %v576 = vpack.c.b16 %v544, %v540
  %609 = vmatprep.subr.bf16.mxu0 %v546
  %610 = vmatpush1.bf16.msra.mxu0 %v545
  %611 = vmatprep.subr.bf16.mxu0 %v550
  %612 = vmatpush1.bf16.msra.mxu0 %v549
  %613 = vmatprep.subr.bf16.mxu0 %v554
  %614 = vmatpush1.bf16.msra.mxu0 %v553
  %615 = vmatprep.subr.bf16.mxu0 %v558
  %616 = vmatpush1.bf16.msra.mxu0 %v557
  %617 = vmatprep.subr.bf16.mxu0 %v562
  %618 = vmatpush1.bf16.msra.mxu0 %v561
  %619 = vmatprep.subr.bf16.mxu0 %v566
  %620 = vmatpush1.bf16.msra.mxu0 %v565
  %621 = vmatprep.subr.bf16.mxu0 %v570
  %622 = vmatpush1.bf16.msra.mxu0 %v569
  %623 = vmatprep.subr.bf16.mxu0 %v574
  %624 = vmatpush1.bf16.msra.mxu0 %v573
  %625 = vmatprep.subr.bf16.mxu0 0
  %626 = vmatpush1.bf16.msra.mxu0 0
  %627 = vmatprep.subr.bf16.mxu0 0
  %628 = vmatpush1.bf16.msra.mxu0 0
  %629 = vmatprep.subr.bf16.mxu0 0
  %630 = vmatpush1.bf16.msra.mxu0 0
  %631 = vmatprep.subr.bf16.mxu0 0
  %632 = vmatpush1.bf16.msra.mxu0 0
  %633 = vmatprep.subr.bf16.mxu0 0
  %634 = vmatpush1.bf16.msra.mxu0 0
  %635 = vmatprep.subr.bf16.mxu0 0
  %636 = vmatpush1.bf16.msra.mxu0 0
  %637 = vmatprep.subr.bf16.mxu0 0
  %638 = vmatpush1.bf16.msra.mxu0 0
  %639 = vmatprep.subr.bf16.mxu0 0
  %640 = vmatpush1.bf16.msra.mxu0 0
  %641 = vmatprep.mubr.bf16.mxu0 0
  %642 = vmatmul.mubr.bf16.gmra.mrb[0].mxu0 %v445
  %v643 = vpop.f32.mrb[0].mxu0
  %v644 = vadd.f32 %v420, %v643
  %v645 = vpop.f32.mrb[0].mxu0
  %v646 = vadd.f32 %v424, %v645
  %v647 = vpop.f32.mrb[0].mxu0
  %v648 = vadd.f32 %v420, %v647
  %v649 = vpop.f32.mrb[0].mxu0
  %v650 = vadd.f32 %v424, %v649
  %651 = vmatprep.mubr.bf16.mxu0 0
  %652 = vmatmul.mubr.bf16.gmra.mrb[0].mxu0 %v446
  %v653 = vpop.f32.mrb[0].mxu0
  %v654 = vadd.f32 %v420, %v653
  %v655 = vpop.f32.mrb[0].mxu0
  %v656 = vadd.f32 %v424, %v655
  %v657 = vpop.f32.mrb[0].mxu0
  %v658 = vadd.f32 %v420, %v657
  %v659 = vpop.f32.mrb[0].mxu0
  %v660 = vadd.f32 %v424, %v659
  %661 = vdwg.mxu0
  %662 = vmatprep.subr.bf16.mxu0 %v548
  %663 = vmatpush1.bf16.msra.mxu0 %v547
  %664 = vmatprep.subr.bf16.mxu0 %v552
  %665 = vmatpush1.bf16.msra.mxu0 %v551
  %666 = vmatprep.subr.bf16.mxu0 %v556
  %667 = vmatpush1.bf16.msra.mxu0 %v555
  %668 = vmatprep.subr.bf16.mxu0 %v560
  %669 = vmatpush1.bf16.msra.mxu0 %v559
  %670 = vmatprep.subr.bf16.mxu0 %v564
  %671 = vmatpush1.bf16.msra.mxu0 %v563
  %672 = vmatprep.subr.bf16.mxu0 %v568
  %673 = vmatpush1.bf16.msra.mxu0 %v567
  %674 = vmatprep.subr.bf16.mxu0 %v572
  %675 = vmatpush1.bf16.msra.mxu0 %v571
  %676 = vmatprep.subr.bf16.mxu0 %v576
  %677 = vmatpush1.bf16.msra.mxu0 %v575
  %678 = vmatprep.subr.bf16.mxu0 0
  %679 = vmatpush1.bf16.msra.mxu0 0
  %680 = vmatprep.subr.bf16.mxu0 0
  %681 = vmatpush1.bf16.msra.mxu0 0
  %682 = vmatprep.subr.bf16.mxu0 0
  %683 = vmatpush1.bf16.msra.mxu0 0
  %684 = vmatprep.subr.bf16.mxu0 0
  %685 = vmatpush1.bf16.msra.mxu0 0
  %686 = vmatprep.subr.bf16.mxu0 0
  %687 = vmatpush1.bf16.msra.mxu0 0
  %688 = vmatprep.subr.bf16.mxu0 0
  %689 = vmatpush1.bf16.msra.mxu0 0
  %690 = vmatprep.subr.bf16.mxu0 0
  %691 = vmatpush1.bf16.msra.mxu0 0
  %692 = vmatprep.subr.bf16.mxu0 0
  %693 = vmatpush1.bf16.msra.mxu0 0
  %694 = vmatprep.mubr.bf16.mxu0 0
  %695 = vmatmul.mubr.bf16.gmra.mrb[0].mxu0 %v445
  %v696 = vpop.f32.mrb[0].mxu0
  %v697 = vadd.f32 %v428, %v696
  %v698 = vpop.f32.mrb[0].mxu0
  %v699 = vadd.f32 %v432, %v698
  %v700 = vpop.f32.mrb[0].mxu0
  %v701 = vadd.f32 %v428, %v700
  %v702 = vpop.f32.mrb[0].mxu0
  %v703 = vadd.f32 %v432, %v702
  %704 = vmatprep.mubr.bf16.mxu0 0
  %705 = vmatmul.mubr.bf16.gmra.mrb[0].mxu0 %v446
  %v706 = vpop.f32.mrb[0].mxu0
  %v707 = vadd.f32 %v428, %v706
  %v708 = vpop.f32.mrb[0].mxu0
  %v709 = vadd.f32 %v432, %v708
  %v710 = vpop.f32.mrb[0].mxu0
  %v711 = vadd.f32 %v428, %v710
  %v712 = vpop.f32.mrb[0].mxu0
  %v713 = vadd.f32 %v432, %v712
  %714 = vdwg.mxu0
  %715 = vst [vmem:[#allocation2 + $0x80] sm:$0xff] %v644
  %716 = vst [vmem:[#allocation2 + $0x88] sm:$0xff] %v646
  %717 = vst [vmem:[#allocation2 + $0x90] sm:$0xff] %v697
  %718 = vst [vmem:[#allocation2 + $0x98] sm:$0xff] %v699
  %719 = vst [vmem:[#allocation2 + $0xa0] sm:$0xff] %v648
  %720 = vst [vmem:[#allocation2 + $0xa8] sm:$0xff] %v650
  %721 = vst [vmem:[#allocation2 + $0xb0] sm:$0xff] %v701
  %722 = vst [vmem:[#allocation2 + $0xb8] sm:$0xff] %v703
  %723 = vst [vmem:[#allocation2 + $0xc0] sm:$0xff] %v654
  %724 = vst [vmem:[#allocation2 + $0xc8] sm:$0xff] %v656
  %725 = vst [vmem:[#allocation2 + $0xd0] sm:$0xff] %v707
  %726 = vst [vmem:[#allocation2 + $0xd8] sm:$0xff] %v709
  %727 = vst [vmem:[#allocation2 + $0xe0] sm:$0xff] %v658
  %728 = vst [vmem:[#allocation2 + $0xe8] sm:$0xff] %v660
  %729 = vst [vmem:[#allocation2 + $0xf0] sm:$0xff] %v711
  %730 = vst [vmem:[#allocation2 + $0xf8] sm:$0xff] %v713
  %v731 = vld [vmem:[%s4] sm:$0xf]
  %v733 = vlaneseq
  %v734 = vshrl.u32 %v733, 7
  %v735 = vsub.s32 0, %v734
  %v736 = vrot.slane %v731, %v735
  %v737 = vlaneseq
  %v738 = vshrl.u32 %v737, 7
  %v739 = vsub.s32 1, %v738
  %v740 = vrot.slane %v731, %v739
  %v741 = vlaneseq
  %v742 = vshrl.u32 %v741, 7
  %v743 = vsub.s32 2, %v742
  %v744 = vrot.slane %v731, %v743
  %v745 = vlaneseq
  %v746 = vshrl.u32 %v745, 7
  %v747 = vsub.s32 3, %v746
  %v748 = vrot.slane %v731, %v747
  %v753 = vld [vmem:[#allocation2] sm:$0xff]
  %v754 = vld [vmem:[#allocation2 + $0x10] sm:$0xff]
  %v755 = vld [vmem:[#allocation2 + $0x18] sm:$0xff]
  %v756 = vxor.u32 %v753, 2147483648
  %v757 = vxor.u32 %v754, 2147483648
  %v758 = vmul.f32 %v756, 1.442695
  %v759 = vpow.pop %v758
  %v760 = vmul.f32 %v757, 1.442695
  %v761 = vpow.pop %v760
  %v762 = vadd.f32 %v759, 1.0
  %v763 = vadd.f32 %v761, 1.0
  %v764 = vrcp.pop %v762
  %v765 = vmul.f32 1.0, %v764
  %v766 = vrcp.pop %v763
  %v767 = vmul.f32 1.0, %v766
  %v768 = vtanh.pop %v755
  %v769 = vmul.f32 %v765, %v768
  %v770 = vtanh.pop %v769
  %v771 = vmul.f32 %v767, %v770
  %v772 = vpack.c.bf16 0.0, %v771
  %v773 = vpack.c.bf16 %v771, 0.0
  %v774 = vpack.c.bf16 0.0, 0.0
  %v775 = vld [vmem:[%s3] sm:$0xff]
  %v776 = vld [vmem:[%s3 + $0x8] sm:$0xff]
  %v777 = vld [vmem:[%s3 + $0x10] sm:$0xff]
  %v778 = vld [vmem:[%s3 + $0x18] sm:$0xff]
  %v779 = vld [vmem:[%s3 + $0x20] sm:$0xff]
  %v780 = vld [vmem:[%s3 + $0x28] sm:$0xff]
  %v781 = vld [vmem:[%s3 + $0x30] sm:$0xff]
  %v782 = vld [vmem:[%s3 + $0x38] sm:$0xff]
  %v783 = vld [vmem:[%s3 + $0x40] sm:$0xff]
  %v784 = vld [vmem:[%s3 + $0x48] sm:$0xff]
  %v785 = vld [vmem:[%s3 + $0x50] sm:$0xff]
  %v786 = vld [vmem:[%s3 + $0x58] sm:$0xff]
  %v787 = vld [vmem:[%s3 + $0x60] sm:$0xff]
  %v788 = vld [vmem:[%s3 + $0x68] sm:$0xff]
  %v789 = vld [vmem:[%s3 + $0x70] sm:$0xff]
  %v790 = vld [vmem:[%s3 + $0x78] sm:$0xff]
  %v791 = vld [vmem:[%s3 + $0x80] sm:$0xff]
  %v792 = vld [vmem:[%s3 + $0x88] sm:$0xff]
  %v793 = vld [vmem:[%s3 + $0x90] sm:$0xff]
  %v794 = vld [vmem:[%s3 + $0x98] sm:$0xff]
  %v795 = vld [vmem:[%s3 + $0xa0] sm:$0xff]
  %v796 = vld [vmem:[%s3 + $0xa8] sm:$0xff]
  %v797 = vld [vmem:[%s3 + $0xb0] sm:$0xff]
  %v798 = vld [vmem:[%s3 + $0xb8] sm:$0xff]
  %v799 = vld [vmem:[%s3 + $0xc0] sm:$0xff]
  %v800 = vld [vmem:[%s3 + $0xc8] sm:$0xff]
  %v801 = vld [vmem:[%s3 + $0xd0] sm:$0xff]
  %v802 = vld [vmem:[%s3 + $0xd8] sm:$0xff]
  %v803 = vld [vmem:[%s3 + $0xe0] sm:$0xff]
  %v804 = vld [vmem:[%s3 + $0xe8] sm:$0xff]
  %v805 = vld [vmem:[%s3 + $0xf0] sm:$0xff]
  %v806 = vld [vmem:[%s3 + $0xf8] sm:$0xff]
  %v807 = vld [vmem:[%s3 + $0x100] sm:$0xff]
  %v808 = vld [vmem:[%s3 + $0x108] sm:$0xff]
  %v809 = vld [vmem:[%s3 + $0x110] sm:$0xff]
  %v810 = vld [vmem:[%s3 + $0x118] sm:$0xff]
  %v811 = vld [vmem:[%s3 + $0x120] sm:$0xff]
  %v812 = vld [vmem:[%s3 + $0x128] sm:$0xff]
  %v813 = vld [vmem:[%s3 + $0x130] sm:$0xff]
  %v814 = vld [vmem:[%s3 + $0x138] sm:$0xff]
  %v815 = vld [vmem:[%s3 + $0x140] sm:$0xff]
  %v816 = vld [vmem:[%s3 + $0x148] sm:$0xff]
  %v817 = vld [vmem:[%s3 + $0x150] sm:$0xff]
  %v818 = vld [vmem:[%s3 + $0x158] sm:$0xff]
  %v819 = vld [vmem:[%s3 + $0x160] sm:$0xff]
  %v820 = vld [vmem:[%s3 + $0x168] sm:$0xff]
  %v821 = vld [vmem:[%s3 + $0x170] sm:$0xff]
  %v822 = vld [vmem:[%s3 + $0x178] sm:$0xff]
  %v823 = vld [vmem:[%s3 + $0x180] sm:$0xff]
  %v824 = vld [vmem:[%s3 + $0x188] sm:$0xff]
  %v825 = vld [vmem:[%s3 + $0x190] sm:$0xff]
  %v826 = vld [vmem:[%s3 + $0x198] sm:$0xff]
  %v827 = vld [vmem:[%s3 + $0x1a0] sm:$0xff]
  %v828 = vld [vmem:[%s3 + $0x1a8] sm:$0xff]
  %v829 = vld [vmem:[%s3 + $0x1b0] sm:$0xff]
  %v830 = vld [vmem:[%s3 + $0x1b8] sm:$0xff]
  %v831 = vld [vmem:[%s3 + $0x1c0] sm:$0xff]
  %v832 = vld [vmem:[%s3 + $0x1c8] sm:$0xff]
  %v833 = vld [vmem:[%s3 + $0x1d0] sm:$0xff]
  %v834 = vld [vmem:[%s3 + $0x1d8] sm:$0xff]
  %v835 = vld [vmem:[%s3 + $0x1e0] sm:$0xff]
  %v836 = vld [vmem:[%s3 + $0x1e8] sm:$0xff]
  %v837 = vld [vmem:[%s3 + $0x1f0] sm:$0xff]
  %v838 = vld [vmem:[%s3 + $0x1f8] sm:$0xff]
  %v839 = vld [vmem:[%s3 + $0x200] sm:$0xff]
  %v840 = vld [vmem:[%s3 + $0x208] sm:$0xff]
  %v841 = vld [vmem:[%s3 + $0x210] sm:$0xff]
  %v842 = vld [vmem:[%s3 + $0x218] sm:$0xff]
  %v843 = vld [vmem:[%s3 + $0x220] sm:$0xff]
  %v844 = vld [vmem:[%s3 + $0x228] sm:$0xff]
  %v845 = vld [vmem:[%s3 + $0x230] sm:$0xff]
  %v846 = vld [vmem:[%s3 + $0x238] sm:$0xff]
  %v847 = vld [vmem:[%s3 + $0x240] sm:$0xff]
  %v848 = vld [vmem:[%s3 + $0x248] sm:$0xff]
  %v849 = vld [vmem:[%s3 + $0x250] sm:$0xff]
  %v850 = vld [vmem:[%s3 + $0x258] sm:$0xff]
  %v851 = vld [vmem:[%s3 + $0x260] sm:$0xff]
  %v852 = vld [vmem:[%s3 + $0x268] sm:$0xff]
  %v853 = vld [vmem:[%s3 + $0x270] sm:$0xff]
  %v854 = vld [vmem:[%s3 + $0x278] sm:$0xff]
  %v855 = vld [vmem:[%s3 + $0x280] sm:$0xff]
  %v856 = vld [vmem:[%s3 + $0x288] sm:$0xff]
  %v857 = vld [vmem:[%s3 + $0x290] sm:$0xff]
  %v858 = vld [vmem:[%s3 + $0x298] sm:$0xff]
  %v859 = vld [vmem:[%s3 + $0x2a0] sm:$0xff]
  %v860 = vld [vmem:[%s3 + $0x2a8] sm:$0xff]
  %v861 = vld [vmem:[%s3 + $0x2b0] sm:$0xff]
  %v862 = vld [vmem:[%s3 + $0x2b8] sm:$0xff]
  %v863 = vld [vmem:[%s3 + $0x2c0] sm:$0xff]
  %v864 = vld [vmem:[%s3 + $0x2c8] sm:$0xff]
  %v865 = vld [vmem:[%s3 + $0x2d0] sm:$0xff]
  %v866 = vld [vmem:[%s3 + $0x2d8] sm:$0xff]
  %v867 = vld [vmem:[%s3 + $0x2e0] sm:$0xff]
  %v868 = vld [vmem:[%s3 + $0x2e8] sm:$0xff]
  %v869 = vld [vmem:[%s3 + $0x2f0] sm:$0xff]
  %v870 = vld [vmem:[%s3 + $0x2f8] sm:$0xff]
  %v967 = vunpack.c.l.b16 %v775
  %v968 = vunpack.c.h.b16 %v775
  %v969 = vunpack.c.l.b16 %v776
  %v970 = vunpack.c.h.b16 %v776
  %v971 = vunpack.c.l.b16 %v777
  %v972 = vunpack.c.h.b16 %v777
  %v973 = vunpack.c.l.b16 %v778
  %v974 = vunpack.c.h.b16 %v778
  %v975 = vunpack.c.l.b16 %v779
  %v976 = vunpack.c.h.b16 %v779
  %v977 = vunpack.c.l.b16 %v780
  %v978 = vunpack.c.h.b16 %v780
  %v979 = vunpack.c.l.b16 %v781
  %v980 = vunpack.c.h.b16 %v781
  %v981 = vunpack.c.l.b16 %v782
  %v982 = vunpack.c.h.b16 %v782
  %v983 = vunpack.c.l.b16 %v783
  %v984 = vunpack.c.h.b16 %v783
  %v985 = vunpack.c.l.b16 %v784
  %v986 = vunpack.c.h.b16 %v784
  %v987 = vunpack.c.l.b16 %v785
  %v988 = vunpack.c.h.b16 %v785
  %v989 = vunpack.c.l.b16 %v786
  %v990 = vunpack.c.h.b16 %v786
  %v991 = vunpack.c.l.b16 %v787
  %v992 = vunpack.c.h.b16 %v787
  %v993 = vunpack.c.l.b16 %v788
  %v994 = vunpack.c.h.b16 %v788
  %v995 = vunpack.c.l.b16 %v789
  %v996 = vunpack.c.h.b16 %v789
  %v997 = vunpack.c.l.b16 %v790
  %v998 = vunpack.c.h.b16 %v790
  %v999 = vunpack.c.l.b16 %v791
  %v1000 = vunpack.c.h.b16 %v791
  %v1001 = vunpack.c.l.b16 %v792
  %v1002 = vunpack.c.h.b16 %v792
  %v1003 = vunpack.c.l.b16 %v793
  %v1004 = vunpack.c.h.b16 %v793
  %v1005 = vunpack.c.l.b16 %v794
  %v1006 = vunpack.c.h.b16 %v794
  %v1007 = vunpack.c.l.b16 %v795
  %v1008 = vunpack.c.h.b16 %v795
  %v1009 = vunpack.c.l.b16 %v796
  %v1010 = vunpack.c.h.b16 %v796
  %v1011 = vunpack.c.l.b16 %v797
  %v1012 = vunpack.c.h.b16 %v797
  %v1013 = vunpack.c.l.b16 %v798
  %v1014 = vunpack.c.h.b16 %v798
  %v1015 = vunpack.c.l.b16 %v799
  %v1016 = vunpack.c.h.b16 %v799
  %v1017 = vunpack.c.l.b16 %v800
  %v1018 = vunpack.c.h.b16 %v800
  %v1019 = vunpack.c.l.b16 %v801
  %v1020 = vunpack.c.h.b16 %v801
  %v1021 = vunpack.c.l.b16 %v802
  %v1022 = vunpack.c.h.b16 %v802
  %v1023 = vunpack.c.l.b16 %v803
  %v1024 = vunpack.c.h.b16 %v803
  %v1025 = vunpack.c.l.b16 %v804
  %v1026 = vunpack.c.h.b16 %v804
  %v1027 = vunpack.c.l.b16 %v805
  %v1028 = vunpack.c.h.b16 %v805
  %v1029 = vunpack.c.l.b16 %v806
  %v1030 = vunpack.c.h.b16 %v806
  %v1031 = vunpack.c.l.b16 %v807
  %v1032 = vunpack.c.h.b16 %v807
  %v1033 = vunpack.c.l.b16 %v808
  %v1034 = vunpack.c.h.b16 %v808
  %v1035 = vunpack.c.l.b16 %v809
  %v1036 = vunpack.c.h.b16 %v809
  %v1037 = vunpack.c.l.b16 %v810
  %v1038 = vunpack.c.h.b16 %v810
  %v1039 = vunpack.c.l.b16 %v811
  %v1040 = vunpack.c.h.b16 %v811
  %v1041 = vunpack.c.l.b16 %v812
  %v1042 = vunpack.c.h.b16 %v812
  %v1043 = vunpack.c.l.b16 %v813
  %v1044 = vunpack.c.h.b16 %v813
  %v1045 = vunpack.c.l.b16 %v814
  %v1046 = vunpack.c.h.b16 %v814
  %v1047 = vunpack.c.l.b16 %v815
  %v1048 = vunpack.c.h.b16 %v815
  %v1049 = vunpack.c.l.b16 %v816
  %v1050 = vunpack.c.h.b16 %v816
  %v1051 = vunpack.c.l.b16 %v817
  %v1052 = vunpack.c.h.b16 %v817
  %v1053 = vunpack.c.l.b16 %v818
  %v1054 = vunpack.c.h.b16 %v818
  %v1055 = vunpack.c.l.b16 %v819
  %v1056 = vunpack.c.h.b16 %v819
  %v1057 = vunpack.c.l.b16 %v820
  %v1058 = vunpack.c.h.b16 %v820
  %v1059 = vunpack.c.l.b16 %v821
  %v1060 = vunpack.c.h.b16 %v821
  %v1061 = vunpack.c.l.b16 %v822
  %v1062 = vunpack.c.h.b16 %v822
  %v1063 = vunpack.c.l.b16 %v823
  %v1064 = vunpack.c.h.b16 %v823
  %v1065 = vunpack.c.l.b16 %v824
  %v1066 = vunpack.c.h.b16 %v824
  %v1067 = vunpack.c.l.b16 %v825
  %v1068 = vunpack.c.h.b16 %v825
  %v1069 = vunpack.c.l.b16 %v826
  %v1070 = vunpack.c.h.b16 %v826
  %v1071 = vunpack.c.l.b16 %v827
  %v1072 = vunpack.c.h.b16 %v827
  %v1073 = vunpack.c.l.b16 %v828
  %v1074 = vunpack.c.h.b16 %v828
  %v1075 = vunpack.c.l.b16 %v829
  %v1076 = vunpack.c.h.b16 %v829
  %v1077 = vunpack.c.l.b16 %v830
  %v1078 = vunpack.c.h.b16 %v830
  %v1079 = vunpack.c.l.b16 %v831
  %v1080 = vunpack.c.h.b16 %v831
  %v1081 = vunpack.c.l.b16 %v832
  %v1082 = vunpack.c.h.b16 %v832
  %v1083 = vunpack.c.l.b16 %v833
  %v1084 = vunpack.c.h.b16 %v833
  %v1085 = vunpack.c.l.b16 %v834
  %v1086 = vunpack.c.h.b16 %v834
  %v1087 = vunpack.c.l.b16 %v835
  %v1088 = vunpack.c.h.b16 %v835
  %v1089 = vunpack.c.l.b16 %v836
  %v1090 = vunpack.c.h.b16 %v836
  %v1091 = vunpack.c.l.b16 %v837
  %v1092 = vunpack.c.h.b16 %v837
  %v1093 = vunpack.c.l.b16 %v838
  %v1094 = vunpack.c.h.b16 %v838
  %v1095 = vunpack.c.l.b16 %v839
  %v1096 = vunpack.c.h.b16 %v839
  %v1097 = vunpack.c.l.b16 %v840
  %v1098 = vunpack.c.h.b16 %v840
  %v1099 = vunpack.c.l.b16 %v841
  %v1100 = vunpack.c.h.b16 %v841
  %v1101 = vunpack.c.l.b16 %v842
  %v1102 = vunpack.c.h.b16 %v842
  %v1103 = vunpack.c.l.b16 %v843
  %v1104 = vunpack.c.h.b16 %v843
  %v1105 = vunpack.c.l.b16 %v844
  %v1106 = vunpack.c.h.b16 %v844
  %v1107 = vunpack.c.l.b16 %v845
  %v1108 = vunpack.c.h.b16 %v845
  %v1109 = vunpack.c.l.b16 %v846
  %v1110 = vunpack.c.h.b16 %v846
  %v1111 = vunpack.c.l.b16 %v847
  %v1112 = vunpack.c.h.b16 %v847
  %v1113 = vunpack.c.l.b16 %v848
  %v1114 = vunpack.c.h.b16 %v848
  %v1115 = vunpack.c.l.b16 %v849
  %v1116 = vunpack.c.h.b16 %v849
  %v1117 = vunpack.c.l.b16 %v850
  %v1118 = vunpack.c.h.b16 %v850
  %v1119 = vunpack.c.l.b16 %v851
  %v1120 = vunpack.c.h.b16 %v851
  %v1121 = vunpack.c.l.b16 %v852
  %v1122 = vunpack.c.h.b16 %v852
  %v1123 = vunpack.c.l.b16 %v853
  %v1124 = vunpack.c.h.b16 %v853
  %v1125 = vunpack.c.l.b16 %v854
  %v1126 = vunpack.c.h.b16 %v854
  %v1127 = vunpack.c.l.b16 %v855
  %v1128 = vunpack.c.h.b16 %v855
  %v1129 = vunpack.c.l.b16 %v856
  %v1130 = vunpack.c.h.b16 %v856
  %v1131 = vunpack.c.l.b16 %v857
  %v1132 = vunpack.c.h.b16 %v857
  %v1133 = vunpack.c.l.b16 %v858
  %v1134 = vunpack.c.h.b16 %v858
  %v1135 = vunpack.c.l.b16 %v859
  %v1136 = vunpack.c.h.b16 %v859
  %v1137 = vunpack.c.l.b16 %v860
  %v1138 = vunpack.c.h.b16 %v860
  %v1139 = vunpack.c.l.b16 %v861
  %v1140 = vunpack.c.h.b16 %v861
  %v1141 = vunpack.c.l.b16 %v862
  %v1142 = vunpack.c.h.b16 %v862
  %v1143 = vunpack.c.l.b16 %v863
  %v1144 = vunpack.c.h.b16 %v863
  %v1145 = vunpack.c.l.b16 %v864
  %v1146 = vunpack.c.h.b16 %v864
  %v1147 = vunpack.c.l.b16 %v865
  %v1148 = vunpack.c.h.b16 %v865
  %v1149 = vunpack.c.l.b16 %v866
  %v1150 = vunpack.c.h.b16 %v866
  %v1151 = vunpack.c.l.b16 %v867
  %v1152 = vunpack.c.h.b16 %v867
  %v1153 = vunpack.c.l.b16 %v868
  %v1154 = vunpack.c.h.b16 %v868
  %v1155 = vunpack.c.l.b16 %v869
  %v1156 = vunpack.c.h.b16 %v869
  %v1157 = vunpack.c.l.b16 %v870
  %v1158 = vunpack.c.h.b16 %v870
  %v1159 = vpack.c.b16 %v971, %v967
  %v1160 = vpack.c.b16 %v972, %v968
  %v1161 = vpack.c.b16 %v973, %v969
  %v1162 = vpack.c.b16 %v974, %v970
  %v1163 = vpack.c.b16 %v979, %v975
  %v1164 = vpack.c.b16 %v980, %v976
  %v1165 = vpack.c.b16 %v981, %v977
  %v1166 = vpack.c.b16 %v982, %v978
  %v1167 = vpack.c.b16 %v987, %v983
  %v1168 = vpack.c.b16 %v988, %v984
  %v1169 = vpack.c.b16 %v989, %v985
  %v1170 = vpack.c.b16 %v990, %v986
  %v1171 = vpack.c.b16 %v995, %v991
  %v1172 = vpack.c.b16 %v996, %v992
  %v1173 = vpack.c.b16 %v997, %v993
  %v1174 = vpack.c.b16 %v998, %v994
  %v1175 = vpack.c.b16 %v1003, %v999
  %v1176 = vpack.c.b16 %v1004, %v1000
  %v1177 = vpack.c.b16 %v1005, %v1001
  %v1178 = vpack.c.b16 %v1006, %v1002
  %v1179 = vpack.c.b16 %v1011, %v1007
  %v1180 = vpack.c.b16 %v1012, %v1008
  %v1181 = vpack.c.b16 %v1013, %v1009
  %v1182 = vpack.c.b16 %v1014, %v1010
  %v1183 = vpack.c.b16 %v1019, %v1015
  %v1184 = vpack.c.b16 %v1020, %v1016
  %v1185 = vpack.c.b16 %v1021, %v1017
  %v1186 = vpack.c.b16 %v1022, %v1018
  %v1187 = vpack.c.b16 %v1027, %v1023
  %v1188 = vpack.c.b16 %v1028, %v1024
  %v1189 = vpack.c.b16 %v1029, %v1025
  %v1190 = vpack.c.b16 %v1030, %v1026
  %v1191 = vpack.c.b16 %v1035, %v1031
  %v1192 = vpack.c.b16 %v1036, %v1032
  %v1193 = vpack.c.b16 %v1037, %v1033
  %v1194 = vpack.c.b16 %v1038, %v1034
  %v1195 = vpack.c.b16 %v1043, %v1039
  %v1196 = vpack.c.b16 %v1044, %v1040
  %v1197 = vpack.c.b16 %v1045, %v1041
  %v1198 = vpack.c.b16 %v1046, %v1042
  %v1199 = vpack.c.b16 %v1051, %v1047
  %v1200 = vpack.c.b16 %v1052, %v1048
  %v1201 = vpack.c.b16 %v1053, %v1049
  %v1202 = vpack.c.b16 %v1054, %v1050
  %v1203 = vpack.c.b16 %v1059, %v1055
  %v1204 = vpack.c.b16 %v1060, %v1056
  %v1205 = vpack.c.b16 %v1061, %v1057
  %v1206 = vpack.c.b16 %v1062, %v1058
  %v1207 = vpack.c.b16 %v1067, %v1063
  %v1208 = vpack.c.b16 %v1068, %v1064
  %v1209 = vpack.c.b16 %v1069, %v1065
  %v1210 = vpack.c.b16 %v1070, %v1066
  %v1211 = vpack.c.b16 %v1075, %v1071
  %v1212 = vpack.c.b16 %v1076, %v1072
  %v1213 = vpack.c.b16 %v1077, %v1073
  %v1214 = vpack.c.b16 %v1078, %v1074
  %v1215 = vpack.c.b16 %v1083, %v1079
  %v1216 = vpack.c.b16 %v1084, %v1080
  %v1217 = vpack.c.b16 %v1085, %v1081
  %v1218 = vpack.c.b16 %v1086, %v1082
  %v1219 = vpack.c.b16 %v1091, %v1087
  %v1220 = vpack.c.b16 %v1092, %v1088
  %v1221 = vpack.c.b16 %v1093, %v1089
  %v1222 = vpack.c.b16 %v1094, %v1090
  %v1223 = vpack.c.b16 %v1099, %v1095
  %v1224 = vpack.c.b16 %v1100, %v1096
  %v1225 = vpack.c.b16 %v1101, %v1097
  %v1226 = vpack.c.b16 %v1102, %v1098
  %v1227 = vpack.c.b16 %v1107, %v1103
  %v1228 = vpack.c.b16 %v1108, %v1104
  %v1229 = vpack.c.b16 %v1109, %v1105
  %v1230 = vpack.c.b16 %v1110, %v1106
  %v1231 = vpack.c.b16 %v1115, %v1111
  %v1232 = vpack.c.b16 %v1116, %v1112
  %v1233 = vpack.c.b16 %v1117, %v1113
  %v1234 = vpack.c.b16 %v1118, %v1114
  %v1235 = vpack.c.b16 %v1123, %v1119
  %v1236 = vpack.c.b16 %v1124, %v1120
  %v1237 = vpack.c.b16 %v1125, %v1121
  %v1238 = vpack.c.b16 %v1126, %v1122
  %v1239 = vpack.c.b16 %v1131, %v1127
  %v1240 = vpack.c.b16 %v1132, %v1128
  %v1241 = vpack.c.b16 %v1133, %v1129
  %v1242 = vpack.c.b16 %v1134, %v1130
  %v1243 = vpack.c.b16 %v1139, %v1135
  %v1244 = vpack.c.b16 %v1140, %v1136
  %v1245 = vpack.c.b16 %v1141, %v1137
  %v1246 = vpack.c.b16 %v1142, %v1138
  %v1247 = vpack.c.b16 %v1147, %v1143
  %v1248 = vpack.c.b16 %v1148, %v1144
  %v1249 = vpack.c.b16 %v1149, %v1145
  %v1250 = vpack.c.b16 %v1150, %v1146
  %v1251 = vpack.c.b16 %v1155, %v1151
  %v1252 = vpack.c.b16 %v1156, %v1152
  %v1253 = vpack.c.b16 %v1157, %v1153
  %v1254 = vpack.c.b16 %v1158, %v1154
  %1351 = vmatprep.subr.bf16.mxu0 %v1160
  %1352 = vmatpush1.bf16.msra.mxu0 %v1159
  %1353 = vmatprep.subr.bf16.mxu0 %v1164
  %1354 = vmatpush1.bf16.msra.mxu0 %v1163
  %1355 = vmatprep.subr.bf16.mxu0 %v1168
  %1356 = vmatpush1.bf16.msra.mxu0 %v1167
  %1357 = vmatprep.subr.bf16.mxu0 %v1172
  %1358 = vmatpush1.bf16.msra.mxu0 %v1171
  %1359 = vmatprep.subr.bf16.mxu0 %v1176
  %1360 = vmatpush1.bf16.msra.mxu0 %v1175
  %1361 = vmatprep.subr.bf16.mxu0 %v1180
  %1362 = vmatpush1.bf16.msra.mxu0 %v1179
  %1363 = vmatprep.subr.bf16.mxu0 %v1184
  %1364 = vmatpush1.bf16.msra.mxu0 %v1183
  %1365 = vmatprep.subr.bf16.mxu0 %v1188
  %1366 = vmatpush1.bf16.msra.mxu0 %v1187
  %1367 = vmatprep.subr.bf16.mxu0 %v1192
  %1368 = vmatpush1.bf16.msra.mxu0 %v1191
  %1369 = vmatprep.subr.bf16.mxu0 %v1196
  %1370 = vmatpush1.bf16.msra.mxu0 %v1195
  %1371 = vmatprep.subr.bf16.mxu0 %v1200
  %1372 = vmatpush1.bf16.msra.mxu0 %v1199
  %1373 = vmatprep.subr.bf16.mxu0 %v1204
  %1374 = vmatpush1.bf16.msra.mxu0 %v1203
  %1375 = vmatprep.subr.bf16.mxu0 %v1208
  %1376 = vmatpush1.bf16.msra.mxu0 %v1207
  %1377 = vmatprep.subr.bf16.mxu0 %v1212
  %1378 = vmatpush1.bf16.msra.mxu0 %v1211
  %1379 = vmatprep.subr.bf16.mxu0 %v1216
  %1380 = vmatpush1.bf16.msra.mxu0 %v1215
  %1381 = vmatprep.subr.bf16.mxu0 %v1220
  %1382 = vmatpush1.bf16.msra.mxu0 %v1219
  %1383 = vmatprep.mubr.bf16.mxu0 %v773
  %1384 = vmatmul.mubr.bf16.gmra.mrb[0].mxu0 %v772
  %v1385 = vpop.f32.mrb[0].mxu0
  %v1386 = vadd.f32 0.0, %v1385
  %v1387 = vpop.f32.mrb[0].mxu0
  %v1388 = vadd.f32 0.0, %v1387
  %v1389 = vpop.f32.mrb[0].mxu0
  %v1390 = vadd.f32 0.0, %v1389
  %v1391 = vpop.f32.mrb[0].mxu0
  %v1392 = vadd.f32 0.0, %v1391
  %1393 = vdwg.mxu0
  %1394 = vmatprep.subr.bf16.mxu0 %v1224
  %1395 = vmatpush1.bf16.msra.mxu0 %v1223
  %1396 = vmatprep.subr.bf16.mxu0 %v1228
  %1397 = vmatpush1.bf16.msra.mxu0 %v1227
  %1398 = vmatprep.subr.bf16.mxu0 %v1232
  %1399 = vmatpush1.bf16.msra.mxu0 %v1231
  %1400 = vmatprep.subr.bf16.mxu0 %v1236
  %1401 = vmatpush1.bf16.msra.mxu0 %v1235
  %1402 = vmatprep.subr.bf16.mxu0 %v1240
  %1403 = vmatpush1.bf16.msra.mxu0 %v1239
  %1404 = vmatprep.subr.bf16.mxu0 %v1244
  %1405 = vmatpush1.bf16.msra.mxu0 %v1243
  %1406 = vmatprep.subr.bf16.mxu0 %v1248
  %1407 = vmatpush1.bf16.msra.mxu0 %v1247
  %1408 = vmatprep.subr.bf16.mxu0 %v1252
  %1409 = vmatpush1.bf16.msra.mxu0 %v1251
  %1410 = vmatprep.subr.bf16.mxu0 0
  %1411 = vmatpush1.bf16.msra.mxu0 0
  %1412 = vmatprep.subr.bf16.mxu0 0
  %1413 = vmatpush1.bf16.msra.mxu0 0
  %1414 = vmatprep.subr.bf16.mxu0 0
  %1415 = vmatpush1.bf16.msra.mxu0 0
  %1416 = vmatprep.subr.bf16.mxu0 0
  %1417 = vmatpush1.bf16.msra.mxu0 0
  %1418 = vmatprep.subr.bf16.mxu0 0
  %1419 = vmatpush1.bf16.msra.mxu0 0
  %1420 = vmatprep.subr.bf16.mxu0 0
  %1421 = vmatpush1.bf16.msra.mxu0 0
  %1422 = vmatprep.subr.bf16.mxu0 0
  %1423 = vmatpush1.bf16.msra.mxu0 0
  %1424 = vmatprep.subr.bf16.mxu0 0
  %1425 = vmatpush1.bf16.msra.mxu0 0
  %1426 = vmatprep.mubr.bf16.mxu0 0
  %1427 = vmatmul.mubr.bf16.gmra.mrb[0].mxu0 %v774
  %v1428 = vpop.f32.mrb[0].mxu0
  %v1429 = vadd.f32 %v1386, %v1428
  %v1430 = vpop.f32.mrb[0].mxu0
  %v1431 = vadd.f32 %v1388, %v1430
  %v1432 = vpop.f32.mrb[0].mxu0
  %v1433 = vadd.f32 %v1390, %v1432
  %v1434 = vpop.f32.mrb[0].mxu0
  %v1435 = vadd.f32 %v1392, %v1434
  %1436 = vdwg.mxu0
  %1437 = vmatprep.subr.bf16.mxu0 %v1162
  %1438 = vmatpush1.bf16.msra.mxu0 %v1161
  %1439 = vmatprep.subr.bf16.mxu0 %v1166
  %1440 = vmatpush1.bf16.msra.mxu0 %v1165
  %1441 = vmatprep.subr.bf16.mxu0 %v1170
  %1442 = vmatpush1.bf16.msra.mxu0 %v1169
  %1443 = vmatprep.subr.bf16.mxu0 %v1174
  %1444 = vmatpush1.bf16.msra.mxu0 %v1173
  %1445 = vmatprep.subr.bf16.mxu0 %v1178
  %1446 = vmatpush1.bf16.msra.mxu0 %v1177
  %1447 = vmatprep.subr.bf16.mxu0 %v1182
  %1448 = vmatpush1.bf16.msra.mxu0 %v1181
  %1449 = vmatprep.subr.bf16.mxu0 %v1186
  %1450 = vmatpush1.bf16.msra.mxu0 %v1185
  %1451 = vmatprep.subr.bf16.mxu0 %v1190
  %1452 = vmatpush1.bf16.msra.mxu0 %v1189
  %1453 = vmatprep.subr.bf16.mxu0 %v1194
  %1454 = vmatpush1.bf16.msra.mxu0 %v1193
  %1455 = vmatprep.subr.bf16.mxu0 %v1198
  %1456 = vmatpush1.bf16.msra.mxu0 %v1197
  %1457 = vmatprep.subr.bf16.mxu0 %v1202
  %1458 = vmatpush1.bf16.msra.mxu0 %v1201
  %1459 = vmatprep.subr.bf16.mxu0 %v1206
  %1460 = vmatpush1.bf16.msra.mxu0 %v1205
  %1461 = vmatprep.subr.bf16.mxu0 %v1210
  %1462 = vmatpush1.bf16.msra.mxu0 %v1209
  %1463 = vmatprep.subr.bf16.mxu0 %v1214
  %1464 = vmatpush1.bf16.msra.mxu0 %v1213
  %1465 = vmatprep.subr.bf16.mxu0 %v1218
  %1466 = vmatpush1.bf16.msra.mxu0 %v1217
  %1467 = vmatprep.subr.bf16.mxu0 %v1222
  %1468 = vmatpush1.bf16.msra.mxu0 %v1221
  %1469 = vmatprep.mubr.bf16.mxu0 %v773
  %1470 = vmatmul.mubr.bf16.gmra.mrb[0].mxu0 %v772
  %v1471 = vpop.f32.mrb[0].mxu0
  %v1472 = vadd.f32 0.0, %v1471
  %v1473 = vpop.f32.mrb[0].mxu0
  %v1474 = vadd.f32 0.0, %v1473
  %v1475 = vpop.f32.mrb[0].mxu0
  %v1476 = vadd.f32 0.0, %v1475
  %v1477 = vpop.f32.mrb[0].mxu0
  %v1478 = vadd.f32 0.0, %v1477
  %1479 = vdwg.mxu0
  %1480 = vmatprep.subr.bf16.mxu0 %v1226
  %1481 = vmatpush1.bf16.msra.mxu0 %v1225
  %1482 = vmatprep.subr.bf16.mxu0 %v1230
  %1483 = vmatpush1.bf16.msra.mxu0 %v1229
  %1484 = vmatprep.subr.bf16.mxu0 %v1234
  %1485 = vmatpush1.bf16.msra.mxu0 %v1233
  %1486 = vmatprep.subr.bf16.mxu0 %v1238
  %1487 = vmatpush1.bf16.msra.mxu0 %v1237
  %1488 = vmatprep.subr.bf16.mxu0 %v1242
  %1489 = vmatpush1.bf16.msra.mxu0 %v1241
  %1490 = vmatprep.subr.bf16.mxu0 %v1246
  %1491 = vmatpush1.bf16.msra.mxu0 %v1245
  %1492 = vmatprep.subr.bf16.mxu0 %v1250
  %1493 = vmatpush1.bf16.msra.mxu0 %v1249
  %1494 = vmatprep.subr.bf16.mxu0 %v1254
  %1495 = vmatpush1.bf16.msra.mxu0 %v1253
  %1496 = vmatprep.subr.bf16.mxu0 0
  %1497 = vmatpush1.bf16.msra.mxu0 0
  %1498 = vmatprep.subr.bf16.mxu0 0
  %1499 = vmatpush1.bf16.msra.mxu0 0
  %1500 = vmatprep.subr.bf16.mxu0 0
  %1501 = vmatpush1.bf16.msra.mxu0 0
  %1502 = vmatprep.subr.bf16.mxu0 0
  %1503 = vmatpush1.bf16.msra.mxu0 0
  %1504 = vmatprep.subr.bf16.mxu0 0
  %1505 = vmatpush1.bf16.msra.mxu0 0
  %1506 = vmatprep.subr.bf16.mxu0 0
  %1507 = vmatpush1.bf16.msra.mxu0 0
  %1508 = vmatprep.subr.bf16.mxu0 0
  %1509 = vmatpush1.bf16.msra.mxu0 0
  %1510 = vmatprep.subr.bf16.mxu0 0
  %1511 = vmatpush1.bf16.msra.mxu0 0
  %1512 = vmatprep.mubr.bf16.mxu0 0
  %1513 = vmatmul.mubr.bf16.gmra.mrb[0].mxu0 %v774
  %v1514 = vpop.f32.mrb[0].mxu0
  %v1515 = vadd.f32 %v1472, %v1514
  %v1516 = vpop.f32.mrb[0].mxu0
  %v1517 = vadd.f32 %v1474, %v1516
  %v1518 = vpop.f32.mrb[0].mxu0
  %v1519 = vadd.f32 %v1476, %v1518
  %v1520 = vpop.f32.mrb[0].mxu0
  %v1521 = vadd.f32 %v1478, %v1520
  %1522 = vdwg.mxu0
  %v1523 = vadd.f32 %v1433, %v736
  %v1524 = vadd.f32 %v1435, %v740
  %v1525 = vadd.f32 %v1519, %v744
  %v1526 = vadd.f32 %v1521, %v748
  %v1527 = vxor.u32 %v1523, 2147483648
  %v1528 = vxor.u32 %v1524, 2147483648
  %v1529 = vxor.u32 %v1525, 2147483648
  %v1530 = vmul.f32 %v1527, 1.442695
  %v1531 = vpow.pop %v1530
  %v1532 = vmul.f32 %v1528, 1.442695
  %v1533 = vpow.pop %v1532
  %v1534 = vmul.f32 %v1529, 1.442695
  %v1535 = vpow.pop %v1534
  %v1536 = vadd.f32 %v1531, 1.0
  %v1537 = vadd.f32 %v1533, 1.0
  %v1538 = vadd.f32 %v1535, 1.0
  %v1539 = vrcp.pop %v1536
  %v1540 = vmul.f32 1.0, %v1539
  %v1541 = vrcp.pop %v1537
  %v1542 = vmul.f32 1.0, %v1541
  %v1543 = vrcp.pop %v1538
  %v1544 = vmul.f32 1.0, %v1543
  %v1545 = vtanh.pop %v1526
  %v1546 = vmul.f32 %v1542, 0.0
  %v1547 = vmul.f32 %v1540, %v1545
  %v1548 = vadd.f32 %v1546, %v1547
  %v1549 = vtanh.pop %v1548
  %v1550 = vmul.f32 %v1544, %v1549
  %v1551 = vld [vmem:[#allocation2 + $0x20] sm:$0xff]
  %v1552 = vld [vmem:[#allocation2 + $0x28] sm:$0xff]
  %v1553 = vld [vmem:[#allocation2 + $0x30] sm:$0xff]
  %v1554 = vld [vmem:[#allocation2 + $0x38] sm:$0xff]
  %v1555 = vadd.f32 %v1551, %v1429
  %v1556 = vadd.f32 %v1552, %v1431
  %v1557 = vadd.f32 %v1553, %v1515
  %v1558 = vadd.f32 %v1554, %v1517
  %v1559 = vxor.u32 %v1555, 2147483648
  %v1560 = vxor.u32 %v1556, 2147483648
  %v1561 = vxor.u32 %v1557, 2147483648
  %v1562 = vmul.f32 %v1559, 1.442695
  %v1563 = vpow.pop %v1562
  %v1564 = vmul.f32 %v1560, 1.442695
  %v1565 = vpow.pop %v1564
  %v1566 = vmul.f32 %v1561, 1.442695
  %v1567 = vpow.pop %v1566
  %v1568 = vadd.f32 %v1563, 1.0
  %v1569 = vadd.f32 %v1565, 1.0
  %v1570 = vadd.f32 %v1567, 1.0
  %v1571 = vrcp.pop %v1568
  %v1572 = vmul.f32 1.0, %v1571
  %v1573 = vrcp.pop %v1569
  %v1574 = vmul.f32 1.0, %v1573
  %v1575 = vrcp.pop %v1570
  %v1576 = vmul.f32 1.0, %v1575
  %v1577 = vtanh.pop %v1558
  %v1578 = vmul.f32 %v1574, %v769
  %v1579 = vmul.f32 %v1572, %v1577
  %v1580 = vadd.f32 %v1578, %v1579
  %v1581 = vtanh.pop %v1580
  %v1582 = vmul.f32 %v1576, %v1581
  %v1583 = vpack.c.bf16 0.0, %v1582
  %v1584 = vpack.c.bf16 %v1582, 0.0
  %v1585 = vpack.c.bf16 %v1550, 0.0
  %1586 = vmatprep.subr.bf16.mxu0 %v1160
  %1587 = vmatpush1.bf16.msra.mxu0 %v1159
  %1588 = vmatprep.subr.bf16.mxu0 %v1164
  %1589 = vmatpush1.bf16.msra.mxu0 %v1163
  %1590 = vmatprep.subr.bf16.mxu0 %v1168
  %1591 = vmatpush1.bf16.msra.mxu0 %v1167
  %1592 = vmatprep.subr.bf16.mxu0 %v1172
  %1593 = vmatpush1.bf16.msra.mxu0 %v1171
  %1594 = vmatprep.subr.bf16.mxu0 %v1176
  %1595 = vmatpush1.bf16.msra.mxu0 %v1175
  %1596 = vmatprep.subr.bf16.mxu0 %v1180
  %1597 = vmatpush1.bf16.msra.mxu0 %v1179
  %1598 = vmatprep.subr.bf16.mxu0 %v1184
  %1599 = vmatpush1.bf16.msra.mxu0 %v1183
  %1600 = vmatprep.subr.bf16.mxu0 %v1188
  %1601 = vmatpush1.bf16.msra.mxu0 %v1187
  %1602 = vmatprep.subr.bf16.mxu0 %v1192
  %1603 = vmatpush1.bf16.msra.mxu0 %v1191
  %1604 = vmatprep.subr.bf16.mxu0 %v1196
  %1605 = vmatpush1.bf16.msra.mxu0 %v1195
  %1606 = vmatprep.subr.bf16.mxu0 %v1200
  %1607 = vmatpush1.bf16.msra.mxu0 %v1199
  %1608 = vmatprep.subr.bf16.mxu0 %v1204
  %1609 = vmatpush1.bf16.msra.mxu0 %v1203
  %1610 = vmatprep.subr.bf16.mxu0 %v1208
  %1611 = vmatpush1.bf16.msra.mxu0 %v1207
  %1612 = vmatprep.subr.bf16.mxu0 %v1212
  %1613 = vmatpush1.bf16.msra.mxu0 %v1211
  %1614 = vmatprep.subr.bf16.mxu0 %v1216
  %1615 = vmatpush1.bf16.msra.mxu0 %v1215
  %1616 = vmatprep.subr.bf16.mxu0 %v1220
  %1617 = vmatpush1.bf16.msra.mxu0 %v1219
  %1618 = vmatprep.mubr.bf16.mxu0 %v1584
  %1619 = vmatmul.mubr.bf16.gmra.mrb[0].mxu0 %v1583
  %v1620 = vpop.f32.mrb[0].mxu0
  %v1621 = vadd.f32 0.0, %v1620
  %v1622 = vpop.f32.mrb[0].mxu0
  %v1623 = vadd.f32 0.0, %v1622
  %v1624 = vpop.f32.mrb[0].mxu0
  %v1625 = vadd.f32 0.0, %v1624
  %v1626 = vpop.f32.mrb[0].mxu0
  %v1627 = vadd.f32 0.0, %v1626
  %1628 = vdwg.mxu0
  %1629 = vmatprep.subr.bf16.mxu0 %v1224
  %1630 = vmatpush1.bf16.msra.mxu0 %v1223
  %1631 = vmatprep.subr.bf16.mxu0 %v1228
  %1632 = vmatpush1.bf16.msra.mxu0 %v1227
  %1633 = vmatprep.subr.bf16.mxu0 %v1232
  %1634 = vmatpush1.bf16.msra.mxu0 %v1231
  %1635 = vmatprep.subr.bf16.mxu0 %v1236
  %1636 = vmatpush1.bf16.msra.mxu0 %v1235
  %1637 = vmatprep.subr.bf16.mxu0 %v1240
  %1638 = vmatpush1.bf16.msra.mxu0 %v1239
  %1639 = vmatprep.subr.bf16.mxu0 %v1244
  %1640 = vmatpush1.bf16.msra.mxu0 %v1243
  %1641 = vmatprep.subr.bf16.mxu0 %v1248
  %1642 = vmatpush1.bf16.msra.mxu0 %v1247
  %1643 = vmatprep.subr.bf16.mxu0 %v1252
  %1644 = vmatpush1.bf16.msra.mxu0 %v1251
  %1645 = vmatprep.subr.bf16.mxu0 0
  %1646 = vmatpush1.bf16.msra.mxu0 0
  %1647 = vmatprep.subr.bf16.mxu0 0
  %1648 = vmatpush1.bf16.msra.mxu0 0
  %1649 = vmatprep.subr.bf16.mxu0 0
  %1650 = vmatpush1.bf16.msra.mxu0 0
  %1651 = vmatprep.subr.bf16.mxu0 0
  %1652 = vmatpush1.bf16.msra.mxu0 0
  %1653 = vmatprep.subr.bf16.mxu0 0
  %1654 = vmatpush1.bf16.msra.mxu0 0
  %1655 = vmatprep.subr.bf16.mxu0 0
  %1656 = vmatpush1.bf16.msra.mxu0 0
  %1657 = vmatprep.subr.bf16.mxu0 0
  %1658 = vmatpush1.bf16.msra.mxu0 0
  %1659 = vmatprep.subr.bf16.mxu0 0
  %1660 = vmatpush1.bf16.msra.mxu0 0
  %1661 = vmatprep.mubr.bf16.mxu0 0
  %1662 = vmatmul.mubr.bf16.gmra.mrb[0].mxu0 %v1585
  %v1663 = vpop.f32.mrb[0].mxu0
  %v1664 = vadd.f32 %v1621, %v1663
  %v1665 = vpop.f32.mrb[0].mxu0
  %v1666 = vadd.f32 %v1623, %v1665
  %v1667 = vpop.f32.mrb[0].mxu0
  %v1668 = vadd.f32 %v1625, %v1667
  %v1669 = vpop.f32.mrb[0].mxu0
  %v1670 = vadd.f32 %v1627, %v1669
  %1671 = vdwg.mxu0
  %1672 = vmatprep.subr.bf16.mxu0 %v1162
  %1673 = vmatpush1.bf16.msra.mxu0 %v1161
  %1674 = vmatprep.subr.bf16.mxu0 %v1166
  %1675 = vmatpush1.bf16.msra.mxu0 %v1165
  %1676 = vmatprep.subr.bf16.mxu0 %v1170
  %1677 = vmatpush1.bf16.msra.mxu0 %v1169
  %1678 = vmatprep.subr.bf16.mxu0 %v1174
  %1679 = vmatpush1.bf16.msra.mxu0 %v1173
  %1680 = vmatprep.subr.bf16.mxu0 %v1178
  %1681 = vmatpush1.bf16.msra.mxu0 %v1177
  %1682 = vmatprep.subr.bf16.mxu0 %v1182
  %1683 = vmatpush1.bf16.msra.mxu0 %v1181
  %1684 = vmatprep.subr.bf16.mxu0 %v1186
  %1685 = vmatpush1.bf16.msra.mxu0 %v1185
  %1686 = vmatprep.subr.bf16.mxu0 %v1190
  %1687 = vmatpush1.bf16.msra.mxu0 %v1189
  %1688 = vmatprep.subr.bf16.mxu0 %v1194
  %1689 = vmatpush1.bf16.msra.mxu0 %v1193
  %1690 = vmatprep.subr.bf16.mxu0 %v1198
  %1691 = vmatpush1.bf16.msra.mxu0 %v1197
  %1692 = vmatprep.subr.bf16.mxu0 %v1202
  %1693 = vmatpush1.bf16.msra.mxu0 %v1201
  %1694 = vmatprep.subr.bf16.mxu0 %v1206
  %1695 = vmatpush1.bf16.msra.mxu0 %v1205
  %1696 = vmatprep.subr.bf16.mxu0 %v1210
  %1697 = vmatpush1.bf16.msra.mxu0 %v1209
  %1698 = vmatprep.subr.bf16.mxu0 %v1214
  %1699 = vmatpush1.bf16.msra.mxu0 %v1213
  %1700 = vmatprep.subr.bf16.mxu0 %v1218
  %1701 = vmatpush1.bf16.msra.mxu0 %v1217
  %1702 = vmatprep.subr.bf16.mxu0 %v1222
  %1703 = vmatpush1.bf16.msra.mxu0 %v1221
  %1704 = vmatprep.mubr.bf16.mxu0 %v1584
  %1705 = vmatmul.mubr.bf16.gmra.mrb[0].mxu0 %v1583
  %v1706 = vpop.f32.mrb[0].mxu0
  %v1707 = vadd.f32 0.0, %v1706
  %v1708 = vpop.f32.mrb[0].mxu0
  %v1709 = vadd.f32 0.0, %v1708
  %v1710 = vpop.f32.mrb[0].mxu0
  %v1711 = vadd.f32 0.0, %v1710
  %v1712 = vpop.f32.mrb[0].mxu0
  %v1713 = vadd.f32 0.0, %v1712
  %1714 = vdwg.mxu0
  %1715 = vmatprep.subr.bf16.mxu0 %v1226
  %1716 = vmatpush1.bf16.msra.mxu0 %v1225
  %1717 = vmatprep.subr.bf16.mxu0 %v1230
  %1718 = vmatpush1.bf16.msra.mxu0 %v1229
  %1719 = vmatprep.subr.bf16.mxu0 %v1234
  %1720 = vmatpush1.bf16.msra.mxu0 %v1233
  %1721 = vmatprep.subr.bf16.mxu0 %v1238
  %1722 = vmatpush1.bf16.msra.mxu0 %v1237
  %1723 = vmatprep.subr.bf16.mxu0 %v1242
  %1724 = vmatpush1.bf16.msra.mxu0 %v1241
  %1725 = vmatprep.subr.bf16.mxu0 %v1246
  %1726 = vmatpush1.bf16.msra.mxu0 %v1245
  %1727 = vmatprep.subr.bf16.mxu0 %v1250
  %1728 = vmatpush1.bf16.msra.mxu0 %v1249
  %1729 = vmatprep.subr.bf16.mxu0 %v1254
  %1730 = vmatpush1.bf16.msra.mxu0 %v1253
  %1731 = vmatprep.subr.bf16.mxu0 0
  %1732 = vmatpush1.bf16.msra.mxu0 0
  %1733 = vmatprep.subr.bf16.mxu0 0
  %1734 = vmatpush1.bf16.msra.mxu0 0
  %1735 = vmatprep.subr.bf16.mxu0 0
  %1736 = vmatpush1.bf16.msra.mxu0 0
  %1737 = vmatprep.subr.bf16.mxu0 0
  %1738 = vmatpush1.bf16.msra.mxu0 0
  %1739 = vmatprep.subr.bf16.mxu0 0
  %1740 = vmatpush1.bf16.msra.mxu0 0
  %1741 = vmatprep.subr.bf16.mxu0 0
  %1742 = vmatpush1.bf16.msra.mxu0 0
  %1743 = vmatprep.subr.bf16.mxu0 0
  %1744 = vmatpush1.bf16.msra.mxu0 0
  %1745 = vmatprep.subr.bf16.mxu0 0
  %1746 = vmatpush1.bf16.msra.mxu0 0
  %1747 = vmatprep.mubr.bf16.mxu0 0
  %1748 = vmatmul.mubr.bf16.gmra.mrb[0].mxu0 %v1585
  %v1749 = vpop.f32.mrb[0].mxu0
  %v1750 = vadd.f32 %v1707, %v1749
  %v1751 = vpop.f32.mrb[0].mxu0
  %v1752 = vadd.f32 %v1709, %v1751
  %v1753 = vpop.f32.mrb[0].mxu0
  %v1754 = vadd.f32 %v1711, %v1753
  %v1755 = vpop.f32.mrb[0].mxu0
  %v1756 = vadd.f32 %v1713, %v1755
  %1757 = vdwg.mxu0
  %v1758 = vadd.f32 %v1668, %v736
  %v1759 = vadd.f32 %v1670, %v740
  %v1760 = vadd.f32 %v1754, %v744
  %v1761 = vadd.f32 %v1756, %v748
  %v1762 = vxor.u32 %v1758, 2147483648
  %v1763 = vxor.u32 %v1759, 2147483648
  %v1764 = vxor.u32 %v1760, 2147483648
  %v1765 = vmul.f32 %v1762, 1.442695
  %v1766 = vpow.pop %v1765
  %v1767 = vmul.f32 %v1763, 1.442695
  %v1768 = vpow.pop %v1767
  %v1769 = vmul.f32 %v1764, 1.442695
  %v1770 = vpow.pop %v1769
  %v1771 = vadd.f32 %v1766, 1.0
  %v1772 = vadd.f32 %v1768, 1.0
  %v1773 = vadd.f32 %v1770, 1.0
  %v1774 = vrcp.pop %v1771
  %v1775 = vmul.f32 1.0, %v1774
  %v1776 = vrcp.pop %v1772
  %v1777 = vmul.f32 1.0, %v1776
  %v1778 = vrcp.pop %v1773
  %v1779 = vmul.f32 1.0, %v1778
  %v1780 = vtanh.pop %v1761
  %v1781 = vmul.f32 %v1777, %v1548
  %v1782 = vmul.f32 %v1775, %v1780
  %v1783 = vadd.f32 %v1781, %v1782
  %v1784 = vtanh.pop %v1783
  %v1785 = vmul.f32 %v1779, %v1784
  %v1786 = vld [vmem:[#allocation2 + $0x40] sm:$0xff]
  %v1787 = vld [vmem:[#allocation2 + $0x48] sm:$0xff]
  %v1788 = vld [vmem:[#allocation2 + $0x50] sm:$0xff]
  %v1789 = vld [vmem:[#allocation2 + $0x58] sm:$0xff]
  %v1790 = vadd.f32 %v1786, %v1664
  %v1791 = vadd.f32 %v1787, %v1666
  %v1792 = vadd.f32 %v1788, %v1750
  %v1793 = vadd.f32 %v1789, %v1752
  %v1794 = vxor.u32 %v1790, 2147483648
  %v1795 = vxor.u32 %v1791, 2147483648
  %v1796 = vxor.u32 %v1792, 2147483648
  %v1797 = vmul.f32 %v1794, 1.442695
  %v1798 = vpow.pop %v1797
  %v1799 = vmul.f32 %v1795, 1.442695
  %v1800 = vpow.pop %v1799
  %v1801 = vmul.f32 %v1796, 1.442695
  %v1802 = vpow.pop %v1801
  %v1803 = vadd.f32 %v1798, 1.0
  %v1804 = vadd.f32 %v1800, 1.0
  %v1805 = vadd.f32 %v1802, 1.0
  %v1806 = vrcp.pop %v1803
  %v1807 = vmul.f32 1.0, %v1806
  %v1808 = vrcp.pop %v1804
  %v1809 = vmul.f32 1.0, %v1808
  %v1810 = vrcp.pop %v1805
  %v1811 = vmul.f32 1.0, %v1810
  %v1812 = vtanh.pop %v1793
  %v1813 = vmul.f32 %v1809, %v1580
  %v1814 = vmul.f32 %v1807, %v1812
  %v1815 = vadd.f32 %v1813, %v1814
  %v1816 = vtanh.pop %v1815
  %v1817 = vmul.f32 %v1811, %v1816
  %v1818 = vpack.c.bf16 0.0, %v1817
  %v1819 = vpack.c.bf16 %v1817, 0.0
  %v1820 = vpack.c.bf16 %v1785, 0.0
  %1821 = vmatprep.subr.bf16.mxu0 %v1160
  %1822 = vmatpush1.bf16.msra.mxu0 %v1159
  %1823 = vmatprep.subr.bf16.mxu0 %v1164
  %1824 = vmatpush1.bf16.msra.mxu0 %v1163
  %1825 = vmatprep.subr.bf16.mxu0 %v1168
  %1826 = vmatpush1.bf16.msra.mxu0 %v1167
  %1827 = vmatprep.subr.bf16.mxu0 %v1172
  %1828 = vmatpush1.bf16.msra.mxu0 %v1171
  %1829 = vmatprep.subr.bf16.mxu0 %v1176
  %1830 = vmatpush1.bf16.msra.mxu0 %v1175
  %1831 = vmatprep.subr.bf16.mxu0 %v1180
  %1832 = vmatpush1.bf16.msra.mxu0 %v1179
  %1833 = vmatprep.subr.bf16.mxu0 %v1184
  %1834 = vmatpush1.bf16.msra.mxu0 %v1183
  %1835 = vmatprep.subr.bf16.mxu0 %v1188
  %1836 = vmatpush1.bf16.msra.mxu0 %v1187
  %1837 = vmatprep.subr.bf16.mxu0 %v1192
  %1838 = vmatpush1.bf16.msra.mxu0 %v1191
  %1839 = vmatprep.subr.bf16.mxu0 %v1196
  %1840 = vmatpush1.bf16.msra.mxu0 %v1195
  %1841 = vmatprep.subr.bf16.mxu0 %v1200
  %1842 = vmatpush1.bf16.msra.mxu0 %v1199
  %1843 = vmatprep.subr.bf16.mxu0 %v1204
  %1844 = vmatpush1.bf16.msra.mxu0 %v1203
  %1845 = vmatprep.subr.bf16.mxu0 %v1208
  %1846 = vmatpush1.bf16.msra.mxu0 %v1207
  %1847 = vmatprep.subr.bf16.mxu0 %v1212
  %1848 = vmatpush1.bf16.msra.mxu0 %v1211
  %1849 = vmatprep.subr.bf16.mxu0 %v1216
  %1850 = vmatpush1.bf16.msra.mxu0 %v1215
  %1851 = vmatprep.subr.bf16.mxu0 %v1220
  %1852 = vmatpush1.bf16.msra.mxu0 %v1219
  %1853 = vmatprep.mubr.bf16.mxu0 %v1819
  %1854 = vmatmul.mubr.bf16.gmra.mrb[0].mxu0 %v1818
  %v1855 = vpop.f32.mrb[0].mxu0
  %v1856 = vadd.f32 0.0, %v1855
  %v1857 = vpop.f32.mrb[0].mxu0
  %v1858 = vadd.f32 0.0, %v1857
  %v1859 = vpop.f32.mrb[0].mxu0
  %v1860 = vadd.f32 0.0, %v1859
  %v1861 = vpop.f32.mrb[0].mxu0
  %v1862 = vadd.f32 0.0, %v1861
  %1863 = vdwg.mxu0
  %1864 = vmatprep.subr.bf16.mxu0 %v1224
  %1865 = vmatpush1.bf16.msra.mxu0 %v1223
  %1866 = vmatprep.subr.bf16.mxu0 %v1228
  %1867 = vmatpush1.bf16.msra.mxu0 %v1227
  %1868 = vmatprep.subr.bf16.mxu0 %v1232
  %1869 = vmatpush1.bf16.msra.mxu0 %v1231
  %1870 = vmatprep.subr.bf16.mxu0 %v1236
  %1871 = vmatpush1.bf16.msra.mxu0 %v1235
  %1872 = vmatprep.subr.bf16.mxu0 %v1240
  %1873 = vmatpush1.bf16.msra.mxu0 %v1239
  %1874 = vmatprep.subr.bf16.mxu0 %v1244
  %1875 = vmatpush1.bf16.msra.mxu0 %v1243
  %1876 = vmatprep.subr.bf16.mxu0 %v1248
  %1877 = vmatpush1.bf16.msra.mxu0 %v1247
  %1878 = vmatprep.subr.bf16.mxu0 %v1252
  %1879 = vmatpush1.bf16.msra.mxu0 %v1251
  %1880 = vmatprep.subr.bf16.mxu0 0
  %1881 = vmatpush1.bf16.msra.mxu0 0
  %1882 = vmatprep.subr.bf16.mxu0 0
  %1883 = vmatpush1.bf16.msra.mxu0 0
  %1884 = vmatprep.subr.bf16.mxu0 0
  %1885 = vmatpush1.bf16.msra.mxu0 0
  %1886 = vmatprep.subr.bf16.mxu0 0
  %1887 = vmatpush1.bf16.msra.mxu0 0
  %1888 = vmatprep.subr.bf16.mxu0 0
  %1889 = vmatpush1.bf16.msra.mxu0 0
  %1890 = vmatprep.subr.bf16.mxu0 0
  %1891 = vmatpush1.bf16.msra.mxu0 0
  %1892 = vmatprep.subr.bf16.mxu0 0
  %1893 = vmatpush1.bf16.msra.mxu0 0
  %1894 = vmatprep.subr.bf16.mxu0 0
  %1895 = vmatpush1.bf16.msra.mxu0 0
  %1896 = vmatprep.mubr.bf16.mxu0 0
  %1897 = vmatmul.mubr.bf16.gmra.mrb[0].mxu0 %v1820
  %v1898 = vpop.f32.mrb[0].mxu0
  %v1899 = vadd.f32 %v1856, %v1898
  %v1900 = vpop.f32.mrb[0].mxu0
  %v1901 = vadd.f32 %v1858, %v1900
  %v1902 = vpop.f32.mrb[0].mxu0
  %v1903 = vadd.f32 %v1860, %v1902
  %v1904 = vpop.f32.mrb[0].mxu0
  %v1905 = vadd.f32 %v1862, %v1904
  %1906 = vdwg.mxu0
  %1907 = vmatprep.subr.bf16.mxu0 %v1162
  %1908 = vmatpush1.bf16.msra.mxu0 %v1161
  %1909 = vmatprep.subr.bf16.mxu0 %v1166
  %1910 = vmatpush1.bf16.msra.mxu0 %v1165
  %1911 = vmatprep.subr.bf16.mxu0 %v1170
  %1912 = vmatpush1.bf16.msra.mxu0 %v1169
  %1913 = vmatprep.subr.bf16.mxu0 %v1174
  %1914 = vmatpush1.bf16.msra.mxu0 %v1173
  %1915 = vmatprep.subr.bf16.mxu0 %v1178
  %1916 = vmatpush1.bf16.msra.mxu0 %v1177
  %1917 = vmatprep.subr.bf16.mxu0 %v1182
  %1918 = vmatpush1.bf16.msra.mxu0 %v1181
  %1919 = vmatprep.subr.bf16.mxu0 %v1186
  %1920 = vmatpush1.bf16.msra.mxu0 %v1185
  %1921 = vmatprep.subr.bf16.mxu0 %v1190
  %1922 = vmatpush1.bf16.msra.mxu0 %v1189
  %1923 = vmatprep.subr.bf16.mxu0 %v1194
  %1924 = vmatpush1.bf16.msra.mxu0 %v1193
  %1925 = vmatprep.subr.bf16.mxu0 %v1198
  %1926 = vmatpush1.bf16.msra.mxu0 %v1197
  %1927 = vmatprep.subr.bf16.mxu0 %v1202
  %1928 = vmatpush1.bf16.msra.mxu0 %v1201
  %1929 = vmatprep.subr.bf16.mxu0 %v1206
  %1930 = vmatpush1.bf16.msra.mxu0 %v1205
  %1931 = vmatprep.subr.bf16.mxu0 %v1210
  %1932 = vmatpush1.bf16.msra.mxu0 %v1209
  %1933 = vmatprep.subr.bf16.mxu0 %v1214
  %1934 = vmatpush1.bf16.msra.mxu0 %v1213
  %1935 = vmatprep.subr.bf16.mxu0 %v1218
  %1936 = vmatpush1.bf16.msra.mxu0 %v1217
  %1937 = vmatprep.subr.bf16.mxu0 %v1222
  %1938 = vmatpush1.bf16.msra.mxu0 %v1221
  %1939 = vmatprep.mubr.bf16.mxu0 %v1819
  %1940 = vmatmul.mubr.bf16.gmra.mrb[0].mxu0 %v1818
  %v1941 = vpop.f32.mrb[0].mxu0
  %v1942 = vadd.f32 0.0, %v1941
  %v1943 = vpop.f32.mrb[0].mxu0
  %v1944 = vadd.f32 0.0, %v1943
  %v1945 = vpop.f32.mrb[0].mxu0
  %v1946 = vadd.f32 0.0, %v1945
  %v1947 = vpop.f32.mrb[0].mxu0
  %v1948 = vadd.f32 0.0, %v1947
  %1949 = vdwg.mxu0
  %1950 = vmatprep.subr.bf16.mxu0 %v1226
  %1951 = vmatpush1.bf16.msra.mxu0 %v1225
  %1952 = vmatprep.subr.bf16.mxu0 %v1230
  %1953 = vmatpush1.bf16.msra.mxu0 %v1229
  %1954 = vmatprep.subr.bf16.mxu0 %v1234
  %1955 = vmatpush1.bf16.msra.mxu0 %v1233
  %1956 = vmatprep.subr.bf16.mxu0 %v1238
  %1957 = vmatpush1.bf16.msra.mxu0 %v1237
  %1958 = vmatprep.subr.bf16.mxu0 %v1242
  %1959 = vmatpush1.bf16.msra.mxu0 %v1241
  %1960 = vmatprep.subr.bf16.mxu0 %v1246
  %1961 = vmatpush1.bf16.msra.mxu0 %v1245
  %1962 = vmatprep.subr.bf16.mxu0 %v1250
  %1963 = vmatpush1.bf16.msra.mxu0 %v1249
  %1964 = vmatprep.subr.bf16.mxu0 %v1254
  %1965 = vmatpush1.bf16.msra.mxu0 %v1253
  %1966 = vmatprep.subr.bf16.mxu0 0
  %1967 = vmatpush1.bf16.msra.mxu0 0
  %1968 = vmatprep.subr.bf16.mxu0 0
  %1969 = vmatpush1.bf16.msra.mxu0 0
  %1970 = vmatprep.subr.bf16.mxu0 0
  %1971 = vmatpush1.bf16.msra.mxu0 0
  %1972 = vmatprep.subr.bf16.mxu0 0
  %1973 = vmatpush1.bf16.msra.mxu0 0
  %1974 = vmatprep.subr.bf16.mxu0 0
  %1975 = vmatpush1.bf16.msra.mxu0 0
  %1976 = vmatprep.subr.bf16.mxu0 0
  %1977 = vmatpush1.bf16.msra.mxu0 0
  %1978 = vmatprep.subr.bf16.mxu0 0
  %1979 = vmatpush1.bf16.msra.mxu0 0
  %1980 = vmatprep.subr.bf16.mxu0 0
  %1981 = vmatpush1.bf16.msra.mxu0 0
  %1982 = vmatprep.mubr.bf16.mxu0 0
  %1983 = vmatmul.mubr.bf16.gmra.mrb[0].mxu0 %v1820
  %v1984 = vpop.f32.mrb[0].mxu0
  %v1985 = vadd.f32 %v1942, %v1984
  %v1986 = vpop.f32.mrb[0].mxu0
  %v1987 = vadd.f32 %v1944, %v1986
  %v1988 = vpop.f32.mrb[0].mxu0
  %v1989 = vadd.f32 %v1946, %v1988
  %v1990 = vpop.f32.mrb[0].mxu0
  %v1991 = vadd.f32 %v1948, %v1990
  %1992 = vdwg.mxu0
  %v1993 = vadd.f32 %v1903, %v736
  %v1994 = vadd.f32 %v1905, %v740
  %v1995 = vadd.f32 %v1989, %v744
  %v1996 = vadd.f32 %v1991, %v748
  %v1997 = vxor.u32 %v1993, 2147483648
  %v1998 = vxor.u32 %v1994, 2147483648
  %v1999 = vxor.u32 %v1995, 2147483648
  %v2000 = vmul.f32 %v1997, 1.442695
  %v2001 = vpow.pop %v2000
  %v2002 = vmul.f32 %v1998, 1.442695
  %v2003 = vpow.pop %v2002
  %v2004 = vmul.f32 %v1999, 1.442695
  %v2005 = vpow.pop %v2004
  %v2006 = vadd.f32 %v2001, 1.0
  %v2007 = vadd.f32 %v2003, 1.0
  %v2008 = vadd.f32 %v2005, 1.0
  %v2009 = vrcp.pop %v2006
  %v2010 = vmul.f32 1.0, %v2009
  %v2011 = vrcp.pop %v2007
  %v2012 = vmul.f32 1.0, %v2011
  %v2013 = vrcp.pop %v2008
  %v2014 = vmul.f32 1.0, %v2013
  %v2015 = vtanh.pop %v1996
  %v2016 = vmul.f32 %v2012, %v1783
  %v2017 = vmul.f32 %v2010, %v2015
  %v2018 = vadd.f32 %v2016, %v2017
  %v2019 = vtanh.pop %v2018
  %v2020 = vmul.f32 %v2014, %v2019
  %v2021 = vld [vmem:[#allocation2 + $0x60] sm:$0xff]
  %v2022 = vld [vmem:[#allocation2 + $0x68] sm:$0xff]
  %v2023 = vld [vmem:[#allocation2 + $0x70] sm:$0xff]
  %v2024 = vld [vmem:[#allocation2 + $0x78] sm:$0xff]
  %v2025 = vadd.f32 %v2021, %v1899
  %v2026 = vadd.f32 %v2022, %v1901
  %v2027 = vadd.f32 %v2023, %v1985
  %v2028 = vadd.f32 %v2024, %v1987
  %v2029 = vxor.u32 %v2025, 2147483648
  %v2030 = vxor.u32 %v2026, 2147483648
  %v2031 = vxor.u32 %v2027, 2147483648
  %v2032 = vmul.f32 %v2029, 1.442695
  %v2033 = vpow.pop %v2032
  %v2034 = vmul.f32 %v2030, 1.442695
  %v2035 = vpow.pop %v2034
  %v2036 = vmul.f32 %v2031, 1.442695
  %v2037 = vpow.pop %v2036
  %v2038 = vadd.f32 %v2033, 1.0
  %v2039 = vadd.f32 %v2035, 1.0
  %v2040 = vadd.f32 %v2037, 1.0
  %v2041 = vrcp.pop %v2038
  %v2042 = vmul.f32 1.0, %v2041
  %v2043 = vrcp.pop %v2039
  %v2044 = vmul.f32 1.0, %v2043
  %v2045 = vrcp.pop %v2040
  %v2046 = vmul.f32 1.0, %v2045
  %v2047 = vtanh.pop %v2028
  %v2048 = vmul.f32 %v2044, %v1815
  %v2049 = vmul.f32 %v2042, %v2047
  %v2050 = vadd.f32 %v2048, %v2049
  %v2051 = vtanh.pop %v2050
  %v2052 = vmul.f32 %v2046, %v2051
  %v2053 = vpack.c.bf16 0.0, %v2052
  %v2054 = vpack.c.bf16 %v2052, 0.0
  %v2055 = vpack.c.bf16 %v2020, 0.0
  %2056 = vmatprep.subr.bf16.mxu0 %v1160
  %2057 = vmatpush1.bf16.msra.mxu0 %v1159
  %2058 = vmatprep.subr.bf16.mxu0 %v1164
  %2059 = vmatpush1.bf16.msra.mxu0 %v1163
  %2060 = vmatprep.subr.bf16.mxu0 %v1168
  %2061 = vmatpush1.bf16.msra.mxu0 %v1167
  %2062 = vmatprep.subr.bf16.mxu0 %v1172
  %2063 = vmatpush1.bf16.msra.mxu0 %v1171
  %2064 = vmatprep.subr.bf16.mxu0 %v1176
  %2065 = vmatpush1.bf16.msra.mxu0 %v1175
  %2066 = vmatprep.subr.bf16.mxu0 %v1180
  %2067 = vmatpush1.bf16.msra.mxu0 %v1179
  %2068 = vmatprep.subr.bf16.mxu0 %v1184
  %2069 = vmatpush1.bf16.msra.mxu0 %v1183
  %2070 = vmatprep.subr.bf16.mxu0 %v1188
  %2071 = vmatpush1.bf16.msra.mxu0 %v1187
  %2072 = vmatprep.subr.bf16.mxu0 %v1192
  %2073 = vmatpush1.bf16.msra.mxu0 %v1191
  %2074 = vmatprep.subr.bf16.mxu0 %v1196
  %2075 = vmatpush1.bf16.msra.mxu0 %v1195
  %2076 = vmatprep.subr.bf16.mxu0 %v1200
  %2077 = vmatpush1.bf16.msra.mxu0 %v1199
  %2078 = vmatprep.subr.bf16.mxu0 %v1204
  %2079 = vmatpush1.bf16.msra.mxu0 %v1203
  %2080 = vmatprep.subr.bf16.mxu0 %v1208
  %2081 = vmatpush1.bf16.msra.mxu0 %v1207
  %2082 = vmatprep.subr.bf16.mxu0 %v1212
  %2083 = vmatpush1.bf16.msra.mxu0 %v1211
  %2084 = vmatprep.subr.bf16.mxu0 %v1216
  %2085 = vmatpush1.bf16.msra.mxu0 %v1215
  %2086 = vmatprep.subr.bf16.mxu0 %v1220
  %2087 = vmatpush1.bf16.msra.mxu0 %v1219
  %2088 = vmatprep.mubr.bf16.mxu0 %v2054
  %2089 = vmatmul.mubr.bf16.gmra.mrb[0].mxu0 %v2053
  %v2090 = vpop.f32.mrb[0].mxu0
  %v2091 = vadd.f32 0.0, %v2090
  %v2092 = vpop.f32.mrb[0].mxu0
  %v2093 = vadd.f32 0.0, %v2092
  %v2094 = vpop.f32.mrb[0].mxu0
  %v2095 = vadd.f32 0.0, %v2094
  %v2096 = vpop.f32.mrb[0].mxu0
  %v2097 = vadd.f32 0.0, %v2096
  %2098 = vdwg.mxu0
  %2099 = vmatprep.subr.bf16.mxu0 %v1224
  %2100 = vmatpush1.bf16.msra.mxu0 %v1223
  %2101 = vmatprep.subr.bf16.mxu0 %v1228
  %2102 = vmatpush1.bf16.msra.mxu0 %v1227
  %2103 = vmatprep.subr.bf16.mxu0 %v1232
  %2104 = vmatpush1.bf16.msra.mxu0 %v1231
  %2105 = vmatprep.subr.bf16.mxu0 %v1236
  %2106 = vmatpush1.bf16.msra.mxu0 %v1235
  %2107 = vmatprep.subr.bf16.mxu0 %v1240
  %2108 = vmatpush1.bf16.msra.mxu0 %v1239
  %2109 = vmatprep.subr.bf16.mxu0 %v1244
  %2110 = vmatpush1.bf16.msra.mxu0 %v1243
  %2111 = vmatprep.subr.bf16.mxu0 %v1248
  %2112 = vmatpush1.bf16.msra.mxu0 %v1247
  %2113 = vmatprep.subr.bf16.mxu0 %v1252
  %2114 = vmatpush1.bf16.msra.mxu0 %v1251
  %2115 = vmatprep.subr.bf16.mxu0 0
  %2116 = vmatpush1.bf16.msra.mxu0 0
  %2117 = vmatprep.subr.bf16.mxu0 0
  %2118 = vmatpush1.bf16.msra.mxu0 0
  %2119 = vmatprep.subr.bf16.mxu0 0
  %2120 = vmatpush1.bf16.msra.mxu0 0
  %2121 = vmatprep.subr.bf16.mxu0 0
  %2122 = vmatpush1.bf16.msra.mxu0 0
  %2123 = vmatprep.subr.bf16.mxu0 0
  %2124 = vmatpush1.bf16.msra.mxu0 0
  %2125 = vmatprep.subr.bf16.mxu0 0
  %2126 = vmatpush1.bf16.msra.mxu0 0
  %2127 = vmatprep.subr.bf16.mxu0 0
  %2128 = vmatpush1.bf16.msra.mxu0 0
  %2129 = vmatprep.subr.bf16.mxu0 0
  %2130 = vmatpush1.bf16.msra.mxu0 0
  %2131 = vmatprep.mubr.bf16.mxu0 0
  %2132 = vmatmul.mubr.bf16.gmra.mrb[0].mxu0 %v2055
  %v2133 = vpop.f32.mrb[0].mxu0
  %v2134 = vadd.f32 %v2091, %v2133
  %v2135 = vpop.f32.mrb[0].mxu0
  %v2136 = vadd.f32 %v2093, %v2135
  %v2137 = vpop.f32.mrb[0].mxu0
  %v2138 = vadd.f32 %v2095, %v2137
  %v2139 = vpop.f32.mrb[0].mxu0
  %v2140 = vadd.f32 %v2097, %v2139
  %2141 = vdwg.mxu0
  %2142 = vmatprep.subr.bf16.mxu0 %v1162
  %2143 = vmatpush1.bf16.msra.mxu0 %v1161
  %2144 = vmatprep.subr.bf16.mxu0 %v1166
  %2145 = vmatpush1.bf16.msra.mxu0 %v1165
  %2146 = vmatprep.subr.bf16.mxu0 %v1170
  %2147 = vmatpush1.bf16.msra.mxu0 %v1169
  %2148 = vmatprep.subr.bf16.mxu0 %v1174
  %2149 = vmatpush1.bf16.msra.mxu0 %v1173
  %2150 = vmatprep.subr.bf16.mxu0 %v1178
  %2151 = vmatpush1.bf16.msra.mxu0 %v1177
  %2152 = vmatprep.subr.bf16.mxu0 %v1182
  %2153 = vmatpush1.bf16.msra.mxu0 %v1181
  %2154 = vmatprep.subr.bf16.mxu0 %v1186
  %2155 = vmatpush1.bf16.msra.mxu0 %v1185
  %2156 = vmatprep.subr.bf16.mxu0 %v1190
  %2157 = vmatpush1.bf16.msra.mxu0 %v1189
  %2158 = vmatprep.subr.bf16.mxu0 %v1194
  %2159 = vmatpush1.bf16.msra.mxu0 %v1193
  %2160 = vmatprep.subr.bf16.mxu0 %v1198
  %2161 = vmatpush1.bf16.msra.mxu0 %v1197
  %2162 = vmatprep.subr.bf16.mxu0 %v1202
  %2163 = vmatpush1.bf16.msra.mxu0 %v1201
  %2164 = vmatprep.subr.bf16.mxu0 %v1206
  %2165 = vmatpush1.bf16.msra.mxu0 %v1205
  %2166 = vmatprep.subr.bf16.mxu0 %v1210
  %2167 = vmatpush1.bf16.msra.mxu0 %v1209
  %2168 = vmatprep.subr.bf16.mxu0 %v1214
  %2169 = vmatpush1.bf16.msra.mxu0 %v1213
  %2170 = vmatprep.subr.bf16.mxu0 %v1218
  %2171 = vmatpush1.bf16.msra.mxu0 %v1217
  %2172 = vmatprep.subr.bf16.mxu0 %v1222
  %2173 = vmatpush1.bf16.msra.mxu0 %v1221
  %2174 = vmatprep.mubr.bf16.mxu0 %v2054
  %2175 = vmatmul.mubr.bf16.gmra.mrb[0].mxu0 %v2053
  %v2176 = vpop.f32.mrb[0].mxu0
  %v2177 = vadd.f32 0.0, %v2176
  %v2178 = vpop.f32.mrb[0].mxu0
  %v2179 = vadd.f32 0.0, %v2178
  %v2180 = vpop.f32.mrb[0].mxu0
  %v2181 = vadd.f32 0.0, %v2180
  %v2182 = vpop.f32.mrb[0].mxu0
  %v2183 = vadd.f32 0.0, %v2182
  %2184 = vdwg.mxu0
  %2185 = vmatprep.subr.bf16.mxu0 %v1226
  %2186 = vmatpush1.bf16.msra.mxu0 %v1225
  %2187 = vmatprep.subr.bf16.mxu0 %v1230
  %2188 = vmatpush1.bf16.msra.mxu0 %v1229
  %2189 = vmatprep.subr.bf16.mxu0 %v1234
  %2190 = vmatpush1.bf16.msra.mxu0 %v1233
  %2191 = vmatprep.subr.bf16.mxu0 %v1238
  %2192 = vmatpush1.bf16.msra.mxu0 %v1237
  %2193 = vmatprep.subr.bf16.mxu0 %v1242
  %2194 = vmatpush1.bf16.msra.mxu0 %v1241
  %2195 = vmatprep.subr.bf16.mxu0 %v1246
  %2196 = vmatpush1.bf16.msra.mxu0 %v1245
  %2197 = vmatprep.subr.bf16.mxu0 %v1250
  %2198 = vmatpush1.bf16.msra.mxu0 %v1249
  %2199 = vmatprep.subr.bf16.mxu0 %v1254
  %2200 = vmatpush1.bf16.msra.mxu0 %v1253
  %2201 = vmatprep.subr.bf16.mxu0 0
  %2202 = vmatpush1.bf16.msra.mxu0 0
  %2203 = vmatprep.subr.bf16.mxu0 0
  %2204 = vmatpush1.bf16.msra.mxu0 0
  %2205 = vmatprep.subr.bf16.mxu0 0
  %2206 = vmatpush1.bf16.msra.mxu0 0
  %2207 = vmatprep.subr.bf16.mxu0 0
  %2208 = vmatpush1.bf16.msra.mxu0 0
  %2209 = vmatprep.subr.bf16.mxu0 0
  %2210 = vmatpush1.bf16.msra.mxu0 0
  %2211 = vmatprep.subr.bf16.mxu0 0
  %2212 = vmatpush1.bf16.msra.mxu0 0
  %2213 = vmatprep.subr.bf16.mxu0 0
  %2214 = vmatpush1.bf16.msra.mxu0 0
  %2215 = vmatprep.subr.bf16.mxu0 0
  %2216 = vmatpush1.bf16.msra.mxu0 0
  %2217 = vmatprep.mubr.bf16.mxu0 0
  %2218 = vmatmul.mubr.bf16.gmra.mrb[0].mxu0 %v2055
  %v2219 = vpop.f32.mrb[0].mxu0
  %v2220 = vadd.f32 %v2177, %v2219
  %v2221 = vpop.f32.mrb[0].mxu0
  %v2222 = vadd.f32 %v2179, %v2221
  %v2223 = vpop.f32.mrb[0].mxu0
  %v2224 = vadd.f32 %v2181, %v2223
  %v2225 = vpop.f32.mrb[0].mxu0
  %v2226 = vadd.f32 %v2183, %v2225
  %2227 = vdwg.mxu0
  %v2228 = vadd.f32 %v2138, %v736
  %v2229 = vadd.f32 %v2140, %v740
  %v2230 = vadd.f32 %v2224, %v744
  %v2231 = vadd.f32 %v2226, %v748
  %v2232 = vxor.u32 %v2228, 2147483648
  %v2233 = vxor.u32 %v2229, 2147483648
  %v2234 = vxor.u32 %v2230, 2147483648
  %v2235 = vmul.f32 %v2232, 1.442695
  %v2236 = vpow.pop %v2235
  %v2237 = vmul.f32 %v2233, 1.442695
  %v2238 = vpow.pop %v2237
  %v2239 = vmul.f32 %v2234, 1.442695
  %v2240 = vpow.pop %v2239
  %v2241 = vadd.f32 %v2236, 1.0
  %v2242 = vadd.f32 %v2238, 1.0
  %v2243 = vadd.f32 %v2240, 1.0
  %v2244 = vrcp.pop %v2241
  %v2245 = vmul.f32 1.0, %v2244
  %v2246 = vrcp.pop %v2242
  %v2247 = vmul.f32 1.0, %v2246
  %v2248 = vrcp.pop %v2243
  %v2249 = vmul.f32 1.0, %v2248
  %v2250 = vtanh.pop %v2231
  %v2251 = vmul.f32 %v2247, %v2018
  %v2252 = vmul.f32 %v2245, %v2250
  %v2253 = vadd.f32 %v2251, %v2252
  %v2254 = vtanh.pop %v2253
  %v2255 = vmul.f32 %v2249, %v2254
  %v2256 = vld [vmem:[#allocation2 + $0x80] sm:$0xff]
  %v2257 = vld [vmem:[#allocation2 + $0x88] sm:$0xff]
  %v2258 = vld [vmem:[#allocation2 + $0x90] sm:$0xff]
  %v2259 = vld [vmem:[#allocation2 + $0x98] sm:$0xff]
  %v2260 = vadd.f32 %v2256, %v2134
  %v2261 = vadd.f32 %v2257, %v2136
  %v2262 = vadd.f32 %v2258, %v2220
  %v2263 = vadd.f32 %v2259, %v2222
  %v2264 = vxor.u32 %v2260, 2147483648
  %v2265 = vxor.u32 %v2261, 2147483648
  %v2266 = vxor.u32 %v2262, 2147483648
  %v2267 = vmul.f32 %v2264, 1.442695
  %v2268 = vpow.pop %v2267
  %v2269 = vmul.f32 %v2265, 1.442695
  %v2270 = vpow.pop %v2269
  %v2271 = vmul.f32 %v2266, 1.442695
  %v2272 = vpow.pop %v2271
  %v2273 = vadd.f32 %v2268, 1.0
  %v2274 = vadd.f32 %v2270, 1.0
  %v2275 = vadd.f32 %v2272, 1.0
  %v2276 = vrcp.pop %v2273
  %v2277 = vmul.f32 1.0, %v2276
  %v2278 = vrcp.pop %v2274
  %v2279 = vmul.f32 1.0, %v2278
  %v2280 = vrcp.pop %v2275
  %v2281 = vmul.f32 1.0, %v2280
  %v2282 = vtanh.pop %v2263
  %v2283 = vmul.f32 %v2279, %v2050
  %v2284 = vmul.f32 %v2277, %v2282
  %v2285 = vadd.f32 %v2283, %v2284
  %v2286 = vtanh.pop %v2285
  %v2287 = vmul.f32 %v2281, %v2286
  %v2288 = vpack.c.bf16 0.0, %v2287
  %v2289 = vpack.c.bf16 %v2287, 0.0
  %v2290 = vpack.c.bf16 %v2255, 0.0
  %2291 = vmatprep.subr.bf16.mxu0 %v1160
  %2292 = vmatpush1.bf16.msra.mxu0 %v1159
  %2293 = vmatprep.subr.bf16.mxu0 %v1164
  %2294 = vmatpush1.bf16.msra.mxu0 %v1163
  %2295 = vmatprep.subr.bf16.mxu0 %v1168
  %2296 = vmatpush1.bf16.msra.mxu0 %v1167
  %2297 = vmatprep.subr.bf16.mxu0 %v1172
  %2298 = vmatpush1.bf16.msra.mxu0 %v1171
  %2299 = vmatprep.subr.bf16.mxu0 %v1176
  %2300 = vmatpush1.bf16.msra.mxu0 %v1175
  %2301 = vmatprep.subr.bf16.mxu0 %v1180
  %2302 = vmatpush1.bf16.msra.mxu0 %v1179
  %2303 = vmatprep.subr.bf16.mxu0 %v1184
  %2304 = vmatpush1.bf16.msra.mxu0 %v1183
  %2305 = vmatprep.subr.bf16.mxu0 %v1188
  %2306 = vmatpush1.bf16.msra.mxu0 %v1187
  %2307 = vmatprep.subr.bf16.mxu0 %v1192
  %2308 = vmatpush1.bf16.msra.mxu0 %v1191
  %2309 = vmatprep.subr.bf16.mxu0 %v1196
  %2310 = vmatpush1.bf16.msra.mxu0 %v1195
  %2311 = vmatprep.subr.bf16.mxu0 %v1200
  %2312 = vmatpush1.bf16.msra.mxu0 %v1199
  %2313 = vmatprep.subr.bf16.mxu0 %v1204
  %2314 = vmatpush1.bf16.msra.mxu0 %v1203
  %2315 = vmatprep.subr.bf16.mxu0 %v1208
  %2316 = vmatpush1.bf16.msra.mxu0 %v1207
  %2317 = vmatprep.subr.bf16.mxu0 %v1212
  %2318 = vmatpush1.bf16.msra.mxu0 %v1211
  %2319 = vmatprep.subr.bf16.mxu0 %v1216
  %2320 = vmatpush1.bf16.msra.mxu0 %v1215
  %2321 = vmatprep.subr.bf16.mxu0 %v1220
  %2322 = vmatpush1.bf16.msra.mxu0 %v1219
  %2323 = vmatprep.mubr.bf16.mxu0 %v2289
  %2324 = vmatmul.mubr.bf16.gmra.mrb[0].mxu0 %v2288
  %v2325 = vpop.f32.mrb[0].mxu0
  %v2326 = vadd.f32 0.0, %v2325
  %v2327 = vpop.f32.mrb[0].mxu0
  %v2328 = vadd.f32 0.0, %v2327
  %v2329 = vpop.f32.mrb[0].mxu0
  %v2330 = vadd.f32 0.0, %v2329
  %v2331 = vpop.f32.mrb[0].mxu0
  %v2332 = vadd.f32 0.0, %v2331
  %2333 = vdwg.mxu0
  %2334 = vmatprep.subr.bf16.mxu0 %v1224
  %2335 = vmatpush1.bf16.msra.mxu0 %v1223
  %2336 = vmatprep.subr.bf16.mxu0 %v1228
  %2337 = vmatpush1.bf16.msra.mxu0 %v1227
  %2338 = vmatprep.subr.bf16.mxu0 %v1232
  %2339 = vmatpush1.bf16.msra.mxu0 %v1231
  %2340 = vmatprep.subr.bf16.mxu0 %v1236
  %2341 = vmatpush1.bf16.msra.mxu0 %v1235
  %2342 = vmatprep.subr.bf16.mxu0 %v1240
  %2343 = vmatpush1.bf16.msra.mxu0 %v1239
  %2344 = vmatprep.subr.bf16.mxu0 %v1244
  %2345 = vmatpush1.bf16.msra.mxu0 %v1243
  %2346 = vmatprep.subr.bf16.mxu0 %v1248
  %2347 = vmatpush1.bf16.msra.mxu0 %v1247
  %2348 = vmatprep.subr.bf16.mxu0 %v1252
  %2349 = vmatpush1.bf16.msra.mxu0 %v1251
  %2350 = vmatprep.subr.bf16.mxu0 0
  %2351 = vmatpush1.bf16.msra.mxu0 0
  %2352 = vmatprep.subr.bf16.mxu0 0
  %2353 = vmatpush1.bf16.msra.mxu0 0
  %2354 = vmatprep.subr.bf16.mxu0 0
  %2355 = vmatpush1.bf16.msra.mxu0 0
  %2356 = vmatprep.subr.bf16.mxu0 0
  %2357 = vmatpush1.bf16.msra.mxu0 0
  %2358 = vmatprep.subr.bf16.mxu0 0
  %2359 = vmatpush1.bf16.msra.mxu0 0
  %2360 = vmatprep.subr.bf16.mxu0 0
  %2361 = vmatpush1.bf16.msra.mxu0 0
  %2362 = vmatprep.subr.bf16.mxu0 0
  %2363 = vmatpush1.bf16.msra.mxu0 0
  %2364 = vmatprep.subr.bf16.mxu0 0
  %2365 = vmatpush1.bf16.msra.mxu0 0
  %2366 = vmatprep.mubr.bf16.mxu0 0
  %2367 = vmatmul.mubr.bf16.gmra.mrb[0].mxu0 %v2290
  %v2368 = vpop.f32.mrb[0].mxu0
  %v2369 = vadd.f32 %v2326, %v2368
  %v2370 = vpop.f32.mrb[0].mxu0
  %v2371 = vadd.f32 %v2328, %v2370
  %v2372 = vpop.f32.mrb[0].mxu0
  %v2373 = vadd.f32 %v2330, %v2372
  %v2374 = vpop.f32.mrb[0].mxu0
  %v2375 = vadd.f32 %v2332, %v2374
  %2376 = vdwg.mxu0
  %2377 = vmatprep.subr.bf16.mxu0 %v1162
  %2378 = vmatpush1.bf16.msra.mxu0 %v1161
  %2379 = vmatprep.subr.bf16.mxu0 %v1166
  %2380 = vmatpush1.bf16.msra.mxu0 %v1165
  %2381 = vmatprep.subr.bf16.mxu0 %v1170
  %2382 = vmatpush1.bf16.msra.mxu0 %v1169
  %2383 = vmatprep.subr.bf16.mxu0 %v1174
  %2384 = vmatpush1.bf16.msra.mxu0 %v1173
  %2385 = vmatprep.subr.bf16.mxu0 %v1178
  %2386 = vmatpush1.bf16.msra.mxu0 %v1177
  %2387 = vmatprep.subr.bf16.mxu0 %v1182
  %2388 = vmatpush1.bf16.msra.mxu0 %v1181
  %2389 = vmatprep.subr.bf16.mxu0 %v1186
  %2390 = vmatpush1.bf16.msra.mxu0 %v1185
  %2391 = vmatprep.subr.bf16.mxu0 %v1190
  %2392 = vmatpush1.bf16.msra.mxu0 %v1189
  %2393 = vmatprep.subr.bf16.mxu0 %v1194
  %2394 = vmatpush1.bf16.msra.mxu0 %v1193
  %2395 = vmatprep.subr.bf16.mxu0 %v1198
  %2396 = vmatpush1.bf16.msra.mxu0 %v1197
  %2397 = vmatprep.subr.bf16.mxu0 %v1202
  %2398 = vmatpush1.bf16.msra.mxu0 %v1201
  %2399 = vmatprep.subr.bf16.mxu0 %v1206
  %2400 = vmatpush1.bf16.msra.mxu0 %v1205
  %2401 = vmatprep.subr.bf16.mxu0 %v1210
  %2402 = vmatpush1.bf16.msra.mxu0 %v1209
  %2403 = vmatprep.subr.bf16.mxu0 %v1214
  %2404 = vmatpush1.bf16.msra.mxu0 %v1213
  %2405 = vmatprep.subr.bf16.mxu0 %v1218
  %2406 = vmatpush1.bf16.msra.mxu0 %v1217
  %2407 = vmatprep.subr.bf16.mxu0 %v1222
  %2408 = vmatpush1.bf16.msra.mxu0 %v1221
  %2409 = vmatprep.mubr.bf16.mxu0 %v2289
  %2410 = vmatmul.mubr.bf16.gmra.mrb[0].mxu0 %v2288
  %v2411 = vpop.f32.mrb[0].mxu0
  %v2412 = vadd.f32 0.0, %v2411
  %v2413 = vpop.f32.mrb[0].mxu0
  %v2414 = vadd.f32 0.0, %v2413
  %v2415 = vpop.f32.mrb[0].mxu0
  %v2416 = vadd.f32 0.0, %v2415
  %v2417 = vpop.f32.mrb[0].mxu0
  %v2418 = vadd.f32 0.0, %v2417
  %2419 = vdwg.mxu0
  %2420 = vmatprep.subr.bf16.mxu0 %v1226
  %2421 = vmatpush1.bf16.msra.mxu0 %v1225
  %2422 = vmatprep.subr.bf16.mxu0 %v1230
  %2423 = vmatpush1.bf16.msra.mxu0 %v1229
  %2424 = vmatprep.subr.bf16.mxu0 %v1234
  %2425 = vmatpush1.bf16.msra.mxu0 %v1233
  %2426 = vmatprep.subr.bf16.mxu0 %v1238
  %2427 = vmatpush1.bf16.msra.mxu0 %v1237
  %2428 = vmatprep.subr.bf16.mxu0 %v1242
  %2429 = vmatpush1.bf16.msra.mxu0 %v1241
  %2430 = vmatprep.subr.bf16.mxu0 %v1246
  %2431 = vmatpush1.bf16.msra.mxu0 %v1245
  %2432 = vmatprep.subr.bf16.mxu0 %v1250
  %2433 = vmatpush1.bf16.msra.mxu0 %v1249
  %2434 = vmatprep.subr.bf16.mxu0 %v1254
  %2435 = vmatpush1.bf16.msra.mxu0 %v1253
  %2436 = vmatprep.subr.bf16.mxu0 0
  %2437 = vmatpush1.bf16.msra.mxu0 0
  %2438 = vmatprep.subr.bf16.mxu0 0
  %2439 = vmatpush1.bf16.msra.mxu0 0
  %2440 = vmatprep.subr.bf16.mxu0 0
  %2441 = vmatpush1.bf16.msra.mxu0 0
  %2442 = vmatprep.subr.bf16.mxu0 0
  %2443 = vmatpush1.bf16.msra.mxu0 0
  %2444 = vmatprep.subr.bf16.mxu0 0
  %2445 = vmatpush1.bf16.msra.mxu0 0
  %2446 = vmatprep.subr.bf16.mxu0 0
  %2447 = vmatpush1.bf16.msra.mxu0 0
  %2448 = vmatprep.subr.bf16.mxu0 0
  %2449 = vmatpush1.bf16.msra.mxu0 0
  %2450 = vmatprep.subr.bf16.mxu0 0
  %2451 = vmatpush1.bf16.msra.mxu0 0
  %2452 = vmatprep.mubr.bf16.mxu0 0
  %2453 = vmatmul.mubr.bf16.gmra.mrb[0].mxu0 %v2290
  %v2454 = vpop.f32.mrb[0].mxu0
  %v2455 = vadd.f32 %v2412, %v2454
  %v2456 = vpop.f32.mrb[0].mxu0
  %v2457 = vadd.f32 %v2414, %v2456
  %v2458 = vpop.f32.mrb[0].mxu0
  %v2459 = vadd.f32 %v2416, %v2458
  %v2460 = vpop.f32.mrb[0].mxu0
  %v2461 = vadd.f32 %v2418, %v2460
  %2462 = vdwg.mxu0
  %v2463 = vadd.f32 %v2373, %v736
  %v2464 = vadd.f32 %v2375, %v740
  %v2465 = vadd.f32 %v2459, %v744
  %v2466 = vadd.f32 %v2461, %v748
  %v2467 = vxor.u32 %v2463, 2147483648
  %v2468 = vxor.u32 %v2464, 2147483648
  %v2469 = vxor.u32 %v2465, 2147483648
  %v2470 = vmul.f32 %v2467, 1.442695
  %v2471 = vpow.pop %v2470
  %v2472 = vmul.f32 %v2468, 1.442695
  %v2473 = vpow.pop %v2472
  %v2474 = vmul.f32 %v2469, 1.442695
  %v2475 = vpow.pop %v2474
  %v2476 = vadd.f32 %v2471, 1.0
  %v2477 = vadd.f32 %v2473, 1.0
  %v2478 = vadd.f32 %v2475, 1.0
  %v2479 = vrcp.pop %v2476
  %v2480 = vmul.f32 1.0, %v2479
  %v2481 = vrcp.pop %v2477
  %v2482 = vmul.f32 1.0, %v2481
  %v2483 = vrcp.pop %v2478
  %v2484 = vmul.f32 1.0, %v2483
  %v2485 = vtanh.pop %v2466
  %v2486 = vmul.f32 %v2482, %v2253
  %v2487 = vmul.f32 %v2480, %v2485
  %v2488 = vadd.f32 %v2486, %v2487
  %v2489 = vtanh.pop %v2488
  %v2490 = vmul.f32 %v2484, %v2489
  %v2491 = vld [vmem:[#allocation2 + $0xa0] sm:$0xff]
  %v2492 = vld [vmem:[#allocation2 + $0xa8] sm:$0xff]
  %v2493 = vld [vmem:[#allocation2 + $0xb0] sm:$0xff]
  %v2494 = vld [vmem:[#allocation2 + $0xb8] sm:$0xff]
  %v2495 = vadd.f32 %v2491, %v2369
  %v2496 = vadd.f32 %v2492, %v2371
  %v2497 = vadd.f32 %v2493, %v2455
  %v2498 = vadd.f32 %v2494, %v2457
  %v2499 = vxor.u32 %v2495, 2147483648
  %v2500 = vxor.u32 %v2496, 2147483648
  %v2501 = vxor.u32 %v2497, 2147483648
  %v2502 = vmul.f32 %v2499, 1.442695
  %v2503 = vpow.pop %v2502
  %v2504 = vmul.f32 %v2500, 1.442695
  %v2505 = vpow.pop %v2504
  %v2506 = vmul.f32 %v2501, 1.442695
  %v2507 = vpow.pop %v2506
  %v2508 = vadd.f32 %v2503, 1.0
  %v2509 = vadd.f32 %v2505, 1.0
  %v2510 = vadd.f32 %v2507, 1.0
  %v2511 = vrcp.pop %v2508
  %v2512 = vmul.f32 1.0, %v2511
  %v2513 = vrcp.pop %v2509
  %v2514 = vmul.f32 1.0, %v2513
  %v2515 = vrcp.pop %v2510
  %v2516 = vmul.f32 1.0, %v2515
  %v2517 = vtanh.pop %v2498
  %v2518 = vmul.f32 %v2514, %v2285
  %v2519 = vmul.f32 %v2512, %v2517
  %v2520 = vadd.f32 %v2518, %v2519
  %v2521 = vtanh.pop %v2520
  %v2522 = vmul.f32 %v2516, %v2521
  %v2523 = vpack.c.bf16 0.0, %v2522
  %v2524 = vpack.c.bf16 %v2522, 0.0
  %v2525 = vpack.c.bf16 %v2490, 0.0
  %2526 = vmatprep.subr.bf16.mxu0 %v1160
  %2527 = vmatpush1.bf16.msra.mxu0 %v1159
  %2528 = vmatprep.subr.bf16.mxu0 %v1164
  %2529 = vmatpush1.bf16.msra.mxu0 %v1163
  %2530 = vmatprep.subr.bf16.mxu0 %v1168
  %2531 = vmatpush1.bf16.msra.mxu0 %v1167
  %2532 = vmatprep.subr.bf16.mxu0 %v1172
  %2533 = vmatpush1.bf16.msra.mxu0 %v1171
  %2534 = vmatprep.subr.bf16.mxu0 %v1176
  %2535 = vmatpush1.bf16.msra.mxu0 %v1175
  %2536 = vmatprep.subr.bf16.mxu0 %v1180
  %2537 = vmatpush1.bf16.msra.mxu0 %v1179
  %2538 = vmatprep.subr.bf16.mxu0 %v1184
  %2539 = vmatpush1.bf16.msra.mxu0 %v1183
  %2540 = vmatprep.subr.bf16.mxu0 %v1188
  %2541 = vmatpush1.bf16.msra.mxu0 %v1187
  %2542 = vmatprep.subr.bf16.mxu0 %v1192
  %2543 = vmatpush1.bf16.msra.mxu0 %v1191
  %2544 = vmatprep.subr.bf16.mxu0 %v1196
  %2545 = vmatpush1.bf16.msra.mxu0 %v1195
  %2546 = vmatprep.subr.bf16.mxu0 %v1200
  %2547 = vmatpush1.bf16.msra.mxu0 %v1199
  %2548 = vmatprep.subr.bf16.mxu0 %v1204
  %2549 = vmatpush1.bf16.msra.mxu0 %v1203
  %2550 = vmatprep.subr.bf16.mxu0 %v1208
  %2551 = vmatpush1.bf16.msra.mxu0 %v1207
  %2552 = vmatprep.subr.bf16.mxu0 %v1212
  %2553 = vmatpush1.bf16.msra.mxu0 %v1211
  %2554 = vmatprep.subr.bf16.mxu0 %v1216
  %2555 = vmatpush1.bf16.msra.mxu0 %v1215
  %2556 = vmatprep.subr.bf16.mxu0 %v1220
  %2557 = vmatpush1.bf16.msra.mxu0 %v1219
  %2558 = vmatprep.mubr.bf16.mxu0 %v2524
  %2559 = vmatmul.mubr.bf16.gmra.mrb[0].mxu0 %v2523
  %v2560 = vpop.f32.mrb[0].mxu0
  %v2561 = vadd.f32 0.0, %v2560
  %v2562 = vpop.f32.mrb[0].mxu0
  %v2563 = vadd.f32 0.0, %v2562
  %v2564 = vpop.f32.mrb[0].mxu0
  %v2565 = vadd.f32 0.0, %v2564
  %v2566 = vpop.f32.mrb[0].mxu0
  %v2567 = vadd.f32 0.0, %v2566
  %2568 = vdwg.mxu0
  %2569 = vmatprep.subr.bf16.mxu0 %v1224
  %2570 = vmatpush1.bf16.msra.mxu0 %v1223
  %2571 = vmatprep.subr.bf16.mxu0 %v1228
  %2572 = vmatpush1.bf16.msra.mxu0 %v1227
  %2573 = vmatprep.subr.bf16.mxu0 %v1232
  %2574 = vmatpush1.bf16.msra.mxu0 %v1231
  %2575 = vmatprep.subr.bf16.mxu0 %v1236
  %2576 = vmatpush1.bf16.msra.mxu0 %v1235
  %2577 = vmatprep.subr.bf16.mxu0 %v1240
  %2578 = vmatpush1.bf16.msra.mxu0 %v1239
  %2579 = vmatprep.subr.bf16.mxu0 %v1244
  %2580 = vmatpush1.bf16.msra.mxu0 %v1243
  %2581 = vmatprep.subr.bf16.mxu0 %v1248
  %2582 = vmatpush1.bf16.msra.mxu0 %v1247
  %2583 = vmatprep.subr.bf16.mxu0 %v1252
  %2584 = vmatpush1.bf16.msra.mxu0 %v1251
  %2585 = vmatprep.subr.bf16.mxu0 0
  %2586 = vmatpush1.bf16.msra.mxu0 0
  %2587 = vmatprep.subr.bf16.mxu0 0
  %2588 = vmatpush1.bf16.msra.mxu0 0
  %2589 = vmatprep.subr.bf16.mxu0 0
  %2590 = vmatpush1.bf16.msra.mxu0 0
  %2591 = vmatprep.subr.bf16.mxu0 0
  %2592 = vmatpush1.bf16.msra.mxu0 0
  %2593 = vmatprep.subr.bf16.mxu0 0
  %2594 = vmatpush1.bf16.msra.mxu0 0
  %2595 = vmatprep.subr.bf16.mxu0 0
  %2596 = vmatpush1.bf16.msra.mxu0 0
  %2597 = vmatprep.subr.bf16.mxu0 0
  %2598 = vmatpush1.bf16.msra.mxu0 0
  %2599 = vmatprep.subr.bf16.mxu0 0
  %2600 = vmatpush1.bf16.msra.mxu0 0
  %2601 = vmatprep.mubr.bf16.mxu0 0
  %2602 = vmatmul.mubr.bf16.gmra.mrb[0].mxu0 %v2525
  %v2603 = vpop.f32.mrb[0].mxu0
  %v2604 = vadd.f32 %v2561, %v2603
  %v2605 = vpop.f32.mrb[0].mxu0
  %v2606 = vadd.f32 %v2563, %v2605
  %v2607 = vpop.f32.mrb[0].mxu0
  %v2608 = vadd.f32 %v2565, %v2607
  %v2609 = vpop.f32.mrb[0].mxu0
  %v2610 = vadd.f32 %v2567, %v2609
  %2611 = vdwg.mxu0
  %2612 = vmatprep.subr.bf16.mxu0 %v1162
  %2613 = vmatpush1.bf16.msra.mxu0 %v1161
  %2614 = vmatprep.subr.bf16.mxu0 %v1166
  %2615 = vmatpush1.bf16.msra.mxu0 %v1165
  %2616 = vmatprep.subr.bf16.mxu0 %v1170
  %2617 = vmatpush1.bf16.msra.mxu0 %v1169
  %2618 = vmatprep.subr.bf16.mxu0 %v1174
  %2619 = vmatpush1.bf16.msra.mxu0 %v1173
  %2620 = vmatprep.subr.bf16.mxu0 %v1178
  %2621 = vmatpush1.bf16.msra.mxu0 %v1177
  %2622 = vmatprep.subr.bf16.mxu0 %v1182
  %2623 = vmatpush1.bf16.msra.mxu0 %v1181
  %2624 = vmatprep.subr.bf16.mxu0 %v1186
  %2625 = vmatpush1.bf16.msra.mxu0 %v1185
  %2626 = vmatprep.subr.bf16.mxu0 %v1190
  %2627 = vmatpush1.bf16.msra.mxu0 %v1189
  %2628 = vmatprep.subr.bf16.mxu0 %v1194
  %2629 = vmatpush1.bf16.msra.mxu0 %v1193
  %2630 = vmatprep.subr.bf16.mxu0 %v1198
  %2631 = vmatpush1.bf16.msra.mxu0 %v1197
  %2632 = vmatprep.subr.bf16.mxu0 %v1202
  %2633 = vmatpush1.bf16.msra.mxu0 %v1201
  %2634 = vmatprep.subr.bf16.mxu0 %v1206
  %2635 = vmatpush1.bf16.msra.mxu0 %v1205
  %2636 = vmatprep.subr.bf16.mxu0 %v1210
  %2637 = vmatpush1.bf16.msra.mxu0 %v1209
  %2638 = vmatprep.subr.bf16.mxu0 %v1214
  %2639 = vmatpush1.bf16.msra.mxu0 %v1213
  %2640 = vmatprep.subr.bf16.mxu0 %v1218
  %2641 = vmatpush1.bf16.msra.mxu0 %v1217
  %2642 = vmatprep.subr.bf16.mxu0 %v1222
  %2643 = vmatpush1.bf16.msra.mxu0 %v1221
  %2644 = vmatprep.mubr.bf16.mxu0 %v2524
  %2645 = vmatmul.mubr.bf16.gmra.mrb[0].mxu0 %v2523
  %v2646 = vpop.f32.mrb[0].mxu0
  %v2647 = vadd.f32 0.0, %v2646
  %v2648 = vpop.f32.mrb[0].mxu0
  %v2649 = vadd.f32 0.0, %v2648
  %v2650 = vpop.f32.mrb[0].mxu0
  %v2651 = vadd.f32 0.0, %v2650
  %v2652 = vpop.f32.mrb[0].mxu0
  %v2653 = vadd.f32 0.0, %v2652
  %2654 = vdwg.mxu0
  %2655 = vmatprep.subr.bf16.mxu0 %v1226
  %2656 = vmatpush1.bf16.msra.mxu0 %v1225
  %2657 = vmatprep.subr.bf16.mxu0 %v1230
  %2658 = vmatpush1.bf16.msra.mxu0 %v1229
  %2659 = vmatprep.subr.bf16.mxu0 %v1234
  %2660 = vmatpush1.bf16.msra.mxu0 %v1233
  %2661 = vmatprep.subr.bf16.mxu0 %v1238
  %2662 = vmatpush1.bf16.msra.mxu0 %v1237
  %2663 = vmatprep.subr.bf16.mxu0 %v1242
  %2664 = vmatpush1.bf16.msra.mxu0 %v1241
  %2665 = vmatprep.subr.bf16.mxu0 %v1246
  %2666 = vmatpush1.bf16.msra.mxu0 %v1245
  %2667 = vmatprep.subr.bf16.mxu0 %v1250
  %2668 = vmatpush1.bf16.msra.mxu0 %v1249
  %2669 = vmatprep.subr.bf16.mxu0 %v1254
  %2670 = vmatpush1.bf16.msra.mxu0 %v1253
  %2671 = vmatprep.subr.bf16.mxu0 0
  %2672 = vmatpush1.bf16.msra.mxu0 0
  %2673 = vmatprep.subr.bf16.mxu0 0
  %2674 = vmatpush1.bf16.msra.mxu0 0
  %2675 = vmatprep.subr.bf16.mxu0 0
  %2676 = vmatpush1.bf16.msra.mxu0 0
  %2677 = vmatprep.subr.bf16.mxu0 0
  %2678 = vmatpush1.bf16.msra.mxu0 0
  %2679 = vmatprep.subr.bf16.mxu0 0
  %2680 = vmatpush1.bf16.msra.mxu0 0
  %2681 = vmatprep.subr.bf16.mxu0 0
  %2682 = vmatpush1.bf16.msra.mxu0 0
  %2683 = vmatprep.subr.bf16.mxu0 0
  %2684 = vmatpush1.bf16.msra.mxu0 0
  %2685 = vmatprep.subr.bf16.mxu0 0
  %2686 = vmatpush1.bf16.msra.mxu0 0
  %2687 = vmatprep.mubr.bf16.mxu0 0
  %2688 = vmatmul.mubr.bf16.gmra.mrb[0].mxu0 %v2525
  %v2689 = vpop.f32.mrb[0].mxu0
  %v2690 = vadd.f32 %v2647, %v2689
  %v2691 = vpop.f32.mrb[0].mxu0
  %v2692 = vadd.f32 %v2649, %v2691
  %v2693 = vpop.f32.mrb[0].mxu0
  %v2694 = vadd.f32 %v2651, %v2693
  %v2695 = vpop.f32.mrb[0].mxu0
  %v2696 = vadd.f32 %v2653, %v2695
  %2697 = vdwg.mxu0
  %v2698 = vadd.f32 %v2608, %v736
  %v2699 = vadd.f32 %v2610, %v740
  %v2700 = vadd.f32 %v2694, %v744
  %v2701 = vadd.f32 %v2696, %v748
  %v2702 = vxor.u32 %v2698, 2147483648
  %v2703 = vxor.u32 %v2699, 2147483648
  %v2704 = vxor.u32 %v2700, 2147483648
  %v2705 = vmul.f32 %v2702, 1.442695
  %v2706 = vpow.pop %v2705
  %v2707 = vmul.f32 %v2703, 1.442695
  %v2708 = vpow.pop %v2707
  %v2709 = vmul.f32 %v2704, 1.442695
  %v2710 = vpow.pop %v2709
  %v2711 = vadd.f32 %v2706, 1.0
  %v2712 = vadd.f32 %v2708, 1.0
  %v2713 = vadd.f32 %v2710, 1.0
  %v2714 = vrcp.pop %v2711
  %v2715 = vmul.f32 1.0, %v2714
  %v2716 = vrcp.pop %v2712
  %v2717 = vmul.f32 1.0, %v2716
  %v2718 = vrcp.pop %v2713
  %v2719 = vmul.f32 1.0, %v2718
  %v2720 = vtanh.pop %v2701
  %v2721 = vmul.f32 %v2717, %v2488
  %v2722 = vmul.f32 %v2715, %v2720
  %v2723 = vadd.f32 %v2721, %v2722
  %v2724 = vtanh.pop %v2723
  %v2725 = vmul.f32 %v2719, %v2724
  %v2726 = vld [vmem:[#allocation2 + $0xc0] sm:$0xff]
  %v2727 = vld [vmem:[#allocation2 + $0xc8] sm:$0xff]
  %v2728 = vld [vmem:[#allocation2 + $0xd0] sm:$0xff]
  %v2729 = vld [vmem:[#allocation2 + $0xd8] sm:$0xff]
  %v2730 = vadd.f32 %v2726, %v2604
  %v2731 = vadd.f32 %v2727, %v2606
  %v2732 = vadd.f32 %v2728, %v2690
  %v2733 = vadd.f32 %v2729, %v2692
  %v2734 = vxor.u32 %v2730, 2147483648
  %v2735 = vxor.u32 %v2731, 2147483648
  %v2736 = vxor.u32 %v2732, 2147483648
  %v2737 = vmul.f32 %v2734, 1.442695
  %v2738 = vpow.pop %v2737
  %v2739 = vmul.f32 %v2735, 1.442695
  %v2740 = vpow.pop %v2739
  %v2741 = vmul.f32 %v2736, 1.442695
  %v2742 = vpow.pop %v2741
  %v2743 = vadd.f32 %v2738, 1.0
  %v2744 = vadd.f32 %v2740, 1.0
  %v2745 = vadd.f32 %v2742, 1.0
  %v2746 = vrcp.pop %v2743
  %v2747 = vmul.f32 1.0, %v2746
  %v2748 = vrcp.pop %v2744
  %v2749 = vmul.f32 1.0, %v2748
  %v2750 = vrcp.pop %v2745
  %v2751 = vmul.f32 1.0, %v2750
  %v2752 = vtanh.pop %v2733
  %v2753 = vmul.f32 %v2749, %v2520
  %v2754 = vmul.f32 %v2747, %v2752
  %v2755 = vadd.f32 %v2753, %v2754
  %v2756 = vtanh.pop %v2755
  %v2757 = vmul.f32 %v2751, %v2756
  %v2758 = vpack.c.bf16 0.0, %v2757
  %v2759 = vpack.c.bf16 %v2757, 0.0
  %v2760 = vpack.c.bf16 %v2725, 0.0
  %2761 = vmatprep.subr.bf16.mxu0 %v1160
  %2762 = vmatpush1.bf16.msra.mxu0 %v1159
  %2763 = vmatprep.subr.bf16.mxu0 %v1164
  %2764 = vmatpush1.bf16.msra.mxu0 %v1163
  %2765 = vmatprep.subr.bf16.mxu0 %v1168
  %2766 = vmatpush1.bf16.msra.mxu0 %v1167
  %2767 = vmatprep.subr.bf16.mxu0 %v1172
  %2768 = vmatpush1.bf16.msra.mxu0 %v1171
  %2769 = vmatprep.subr.bf16.mxu0 %v1176
  %2770 = vmatpush1.bf16.msra.mxu0 %v1175
  %2771 = vmatprep.subr.bf16.mxu0 %v1180
  %2772 = vmatpush1.bf16.msra.mxu0 %v1179
  %2773 = vmatprep.subr.bf16.mxu0 %v1184
  %2774 = vmatpush1.bf16.msra.mxu0 %v1183
  %2775 = vmatprep.subr.bf16.mxu0 %v1188
  %2776 = vmatpush1.bf16.msra.mxu0 %v1187
  %2777 = vmatprep.subr.bf16.mxu0 %v1192
  %2778 = vmatpush1.bf16.msra.mxu0 %v1191
  %2779 = vmatprep.subr.bf16.mxu0 %v1196
  %2780 = vmatpush1.bf16.msra.mxu0 %v1195
  %2781 = vmatprep.subr.bf16.mxu0 %v1200
  %2782 = vmatpush1.bf16.msra.mxu0 %v1199
  %2783 = vmatprep.subr.bf16.mxu0 %v1204
  %2784 = vmatpush1.bf16.msra.mxu0 %v1203
  %2785 = vmatprep.subr.bf16.mxu0 %v1208
  %2786 = vmatpush1.bf16.msra.mxu0 %v1207
  %2787 = vmatprep.subr.bf16.mxu0 %v1212
  %2788 = vmatpush1.bf16.msra.mxu0 %v1211
  %2789 = vmatprep.subr.bf16.mxu0 %v1216
  %2790 = vmatpush1.bf16.msra.mxu0 %v1215
  %2791 = vmatprep.subr.bf16.mxu0 %v1220
  %2792 = vmatpush1.bf16.msra.mxu0 %v1219
  %2793 = vmatprep.mubr.bf16.mxu0 %v2759
  %2794 = vmatmul.mubr.bf16.gmra.mrb[0].mxu0 %v2758
  %v2795 = vpop.f32.mrb[0].mxu0
  %v2796 = vadd.f32 0.0, %v2795
  %v2797 = vpop.f32.mrb[0].mxu0
  %v2798 = vadd.f32 0.0, %v2797
  %v2799 = vpop.f32.mrb[0].mxu0
  %v2800 = vadd.f32 0.0, %v2799
  %v2801 = vpop.f32.mrb[0].mxu0
  %v2802 = vadd.f32 0.0, %v2801
  %2803 = vdwg.mxu0
  %2804 = vmatprep.subr.bf16.mxu0 %v1224
  %2805 = vmatpush1.bf16.msra.mxu0 %v1223
  %2806 = vmatprep.subr.bf16.mxu0 %v1228
  %2807 = vmatpush1.bf16.msra.mxu0 %v1227
  %2808 = vmatprep.subr.bf16.mxu0 %v1232
  %2809 = vmatpush1.bf16.msra.mxu0 %v1231
  %2810 = vmatprep.subr.bf16.mxu0 %v1236
  %2811 = vmatpush1.bf16.msra.mxu0 %v1235
  %2812 = vmatprep.subr.bf16.mxu0 %v1240
  %2813 = vmatpush1.bf16.msra.mxu0 %v1239
  %2814 = vmatprep.subr.bf16.mxu0 %v1244
  %2815 = vmatpush1.bf16.msra.mxu0 %v1243
  %2816 = vmatprep.subr.bf16.mxu0 %v1248
  %2817 = vmatpush1.bf16.msra.mxu0 %v1247
  %2818 = vmatprep.subr.bf16.mxu0 %v1252
  %2819 = vmatpush1.bf16.msra.mxu0 %v1251
  %2820 = vmatprep.subr.bf16.mxu0 0
  %2821 = vmatpush1.bf16.msra.mxu0 0
  %2822 = vmatprep.subr.bf16.mxu0 0
  %2823 = vmatpush1.bf16.msra.mxu0 0
  %2824 = vmatprep.subr.bf16.mxu0 0
  %2825 = vmatpush1.bf16.msra.mxu0 0
  %2826 = vmatprep.subr.bf16.mxu0 0
  %2827 = vmatpush1.bf16.msra.mxu0 0
  %2828 = vmatprep.subr.bf16.mxu0 0
  %2829 = vmatpush1.bf16.msra.mxu0 0
  %2830 = vmatprep.subr.bf16.mxu0 0
  %2831 = vmatpush1.bf16.msra.mxu0 0
  %2832 = vmatprep.subr.bf16.mxu0 0
  %2833 = vmatpush1.bf16.msra.mxu0 0
  %2834 = vmatprep.subr.bf16.mxu0 0
  %2835 = vmatpush1.bf16.msra.mxu0 0
  %2836 = vmatprep.mubr.bf16.mxu0 0
  %2837 = vmatmul.mubr.bf16.gmra.mrb[0].mxu0 %v2760
  %v2838 = vpop.f32.mrb[0].mxu0
  %v2839 = vadd.f32 %v2796, %v2838
  %v2840 = vpop.f32.mrb[0].mxu0
  %v2841 = vadd.f32 %v2798, %v2840
  %v2842 = vpop.f32.mrb[0].mxu0
  %v2843 = vadd.f32 %v2800, %v2842
  %v2844 = vpop.f32.mrb[0].mxu0
  %v2845 = vadd.f32 %v2802, %v2844
  %2846 = vdwg.mxu0
  %2847 = vmatprep.subr.bf16.mxu0 %v1162
  %2848 = vmatpush1.bf16.msra.mxu0 %v1161
  %2849 = vmatprep.subr.bf16.mxu0 %v1166
  %2850 = vmatpush1.bf16.msra.mxu0 %v1165
  %2851 = vmatprep.subr.bf16.mxu0 %v1170
  %2852 = vmatpush1.bf16.msra.mxu0 %v1169
  %2853 = vmatprep.subr.bf16.mxu0 %v1174
  %2854 = vmatpush1.bf16.msra.mxu0 %v1173
  %2855 = vmatprep.subr.bf16.mxu0 %v1178
  %2856 = vmatpush1.bf16.msra.mxu0 %v1177
  %2857 = vmatprep.subr.bf16.mxu0 %v1182
  %2858 = vmatpush1.bf16.msra.mxu0 %v1181
  %2859 = vmatprep.subr.bf16.mxu0 %v1186
  %2860 = vmatpush1.bf16.msra.mxu0 %v1185
  %2861 = vmatprep.subr.bf16.mxu0 %v1190
  %2862 = vmatpush1.bf16.msra.mxu0 %v1189
  %2863 = vmatprep.subr.bf16.mxu0 %v1194
  %2864 = vmatpush1.bf16.msra.mxu0 %v1193
  %2865 = vmatprep.subr.bf16.mxu0 %v1198
  %2866 = vmatpush1.bf16.msra.mxu0 %v1197
  %2867 = vmatprep.subr.bf16.mxu0 %v1202
  %2868 = vmatpush1.bf16.msra.mxu0 %v1201
  %2869 = vmatprep.subr.bf16.mxu0 %v1206
  %2870 = vmatpush1.bf16.msra.mxu0 %v1205
  %2871 = vmatprep.subr.bf16.mxu0 %v1210
  %2872 = vmatpush1.bf16.msra.mxu0 %v1209
  %2873 = vmatprep.subr.bf16.mxu0 %v1214
  %2874 = vmatpush1.bf16.msra.mxu0 %v1213
  %2875 = vmatprep.subr.bf16.mxu0 %v1218
  %2876 = vmatpush1.bf16.msra.mxu0 %v1217
  %2877 = vmatprep.subr.bf16.mxu0 %v1222
  %2878 = vmatpush1.bf16.msra.mxu0 %v1221
  %2879 = vmatprep.mubr.bf16.mxu0 %v2759
  %2880 = vmatmul.mubr.bf16.gmra.mrb[0].mxu0 %v2758
  %v2881 = vpop.f32.mrb[0].mxu0
  %v2882 = vadd.f32 0.0, %v2881
  %v2883 = vpop.f32.mrb[0].mxu0
  %v2884 = vadd.f32 0.0, %v2883
  %v2885 = vpop.f32.mrb[0].mxu0
  %v2886 = vadd.f32 0.0, %v2885
  %v2887 = vpop.f32.mrb[0].mxu0
  %v2888 = vadd.f32 0.0, %v2887
  %2889 = vdwg.mxu0
  %2890 = vmatprep.subr.bf16.mxu0 %v1226
  %2891 = vmatpush1.bf16.msra.mxu0 %v1225
  %2892 = vmatprep.subr.bf16.mxu0 %v1230
  %2893 = vmatpush1.bf16.msra.mxu0 %v1229
  %2894 = vmatprep.subr.bf16.mxu0 %v1234
  %2895 = vmatpush1.bf16.msra.mxu0 %v1233
  %2896 = vmatprep.subr.bf16.mxu0 %v1238
  %2897 = vmatpush1.bf16.msra.mxu0 %v1237
  %2898 = vmatprep.subr.bf16.mxu0 %v1242
  %2899 = vmatpush1.bf16.msra.mxu0 %v1241
  %2900 = vmatprep.subr.bf16.mxu0 %v1246
  %2901 = vmatpush1.bf16.msra.mxu0 %v1245
  %2902 = vmatprep.subr.bf16.mxu0 %v1250
  %2903 = vmatpush1.bf16.msra.mxu0 %v1249
  %2904 = vmatprep.subr.bf16.mxu0 %v1254
  %2905 = vmatpush1.bf16.msra.mxu0 %v1253
  %2906 = vmatprep.subr.bf16.mxu0 0
  %2907 = vmatpush1.bf16.msra.mxu0 0
  %2908 = vmatprep.subr.bf16.mxu0 0
  %2909 = vmatpush1.bf16.msra.mxu0 0
  %2910 = vmatprep.subr.bf16.mxu0 0
  %2911 = vmatpush1.bf16.msra.mxu0 0
  %2912 = vmatprep.subr.bf16.mxu0 0
  %2913 = vmatpush1.bf16.msra.mxu0 0
  %2914 = vmatprep.subr.bf16.mxu0 0
  %2915 = vmatpush1.bf16.msra.mxu0 0
  %2916 = vmatprep.subr.bf16.mxu0 0
  %2917 = vmatpush1.bf16.msra.mxu0 0
  %2918 = vmatprep.subr.bf16.mxu0 0
  %2919 = vmatpush1.bf16.msra.mxu0 0
  %2920 = vmatprep.subr.bf16.mxu0 0
  %2921 = vmatpush1.bf16.msra.mxu0 0
  %2922 = vmatprep.mubr.bf16.mxu0 0
  %2923 = vmatmul.mubr.bf16.gmra.mrb[0].mxu0 %v2760
  %v2924 = vpop.f32.mrb[0].mxu0
  %v2925 = vadd.f32 %v2882, %v2924
  %v2926 = vpop.f32.mrb[0].mxu0
  %v2927 = vadd.f32 %v2884, %v2926
  %v2928 = vpop.f32.mrb[0].mxu0
  %v2929 = vadd.f32 %v2886, %v2928
  %v2930 = vpop.f32.mrb[0].mxu0
  %v2931 = vadd.f32 %v2888, %v2930
  %2932 = vdwg.mxu0
  %v2933 = vadd.f32 %v2843, %v736
  %v2934 = vadd.f32 %v2845, %v740
  %v2935 = vadd.f32 %v2929, %v744
  %v2936 = vadd.f32 %v2931, %v748
  %v2937 = vxor.u32 %v2933, 2147483648
  %v2938 = vxor.u32 %v2934, 2147483648
  %v2939 = vxor.u32 %v2935, 2147483648
  %v2940 = vmul.f32 %v2937, 1.442695
  %v2941 = vpow.pop %v2940
  %v2942 = vmul.f32 %v2938, 1.442695
  %v2943 = vpow.pop %v2942
  %v2944 = vmul.f32 %v2939, 1.442695
  %v2945 = vpow.pop %v2944
  %v2946 = vadd.f32 %v2941, 1.0
  %v2947 = vadd.f32 %v2943, 1.0
  %v2948 = vadd.f32 %v2945, 1.0
  %v2949 = vrcp.pop %v2946
  %v2950 = vmul.f32 1.0, %v2949
  %v2951 = vrcp.pop %v2947
  %v2952 = vmul.f32 1.0, %v2951
  %v2953 = vrcp.pop %v2948
  %v2954 = vmul.f32 1.0, %v2953
  %v2955 = vtanh.pop %v2936
  %v2956 = vmul.f32 %v2952, %v2723
  %v2957 = vmul.f32 %v2950, %v2955
  %v2958 = vadd.f32 %v2956, %v2957
  %v2959 = vtanh.pop %v2958
  %v2960 = vmul.f32 %v2954, %v2959
  %v2961 = vld [vmem:[#allocation2 + $0xe0] sm:$0xff]
  %v2962 = vld [vmem:[#allocation2 + $0xe8] sm:$0xff]
  %v2963 = vld [vmem:[#allocation2 + $0xf0] sm:$0xff]
  %v2964 = vld [vmem:[#allocation2 + $0xf8] sm:$0xff]
  %v2965 = vadd.f32 %v2961, %v2839
  %v2966 = vadd.f32 %v2962, %v2841
  %v2967 = vadd.f32 %v2963, %v2925
  %v2968 = vadd.f32 %v2964, %v2927
  %v2969 = vxor.u32 %v2965, 2147483648
  %v2970 = vxor.u32 %v2966, 2147483648
  %v2971 = vxor.u32 %v2967, 2147483648
  %v2972 = vmul.f32 %v2969, 1.442695
  %v2973 = vpow.pop %v2972
  %v2974 = vmul.f32 %v2970, 1.442695
  %v2975 = vpow.pop %v2974
  %v2976 = vmul.f32 %v2971, 1.442695
  %v2977 = vpow.pop %v2976
  %v2978 = vadd.f32 %v2973, 1.0
  %v2979 = vadd.f32 %v2975, 1.0
  %v2980 = vadd.f32 %v2977, 1.0
  %v2981 = vrcp.pop %v2978
  %v2982 = vmul.f32 1.0, %v2981
  %v2983 = vrcp.pop %v2979
  %v2984 = vmul.f32 1.0, %v2983
  %v2985 = vrcp.pop %v2980
  %v2986 = vmul.f32 1.0, %v2985
  %v2987 = vtanh.pop %v2968
  %v2988 = vmul.f32 %v2984, %v2755
  %v2989 = vmul.f32 %v2982, %v2987
  %v2990 = vadd.f32 %v2988, %v2989
  %v2991 = vtanh.pop %v2990
  %v2992 = vmul.f32 %v2986, %v2991
  %v2993 = vpack.c.bf16 %v2992, %v2992
  %v2994 = vpack.c.bf16 %v2960, %v2960
  %2995 = vmatprep.subr.bf16.mxu0 %v1192
  %2996 = vmatpush1.bf16.msra.mxu0 %v1191
  %2997 = vmatprep.subr.bf16.mxu0 %v1196
  %2998 = vmatpush1.bf16.msra.mxu0 %v1195
  %2999 = vmatprep.subr.bf16.mxu0 %v1200
  %3000 = vmatpush1.bf16.msra.mxu0 %v1199
  %3001 = vmatprep.subr.bf16.mxu0 %v1204
  %3002 = vmatpush1.bf16.msra.mxu0 %v1203
  %3003 = vmatprep.subr.bf16.mxu0 %v1208
  %3004 = vmatpush1.bf16.msra.mxu0 %v1207
  %3005 = vmatprep.subr.bf16.mxu0 %v1212
  %3006 = vmatpush1.bf16.msra.mxu0 %v1211
  %3007 = vmatprep.subr.bf16.mxu0 %v1216
  %3008 = vmatpush1.bf16.msra.mxu0 %v1215
  %3009 = vmatprep.subr.bf16.mxu0 %v1220
  %3010 = vmatpush1.bf16.msra.mxu0 %v1219
  %3011 = vmatprep.subr.bf16.mxu0 %v1224
  %3012 = vmatpush1.bf16.msra.mxu0 %v1223
  %3013 = vmatprep.subr.bf16.mxu0 %v1228
  %3014 = vmatpush1.bf16.msra.mxu0 %v1227
  %3015 = vmatprep.subr.bf16.mxu0 %v1232
  %3016 = vmatpush1.bf16.msra.mxu0 %v1231
  %3017 = vmatprep.subr.bf16.mxu0 %v1236
  %3018 = vmatpush1.bf16.msra.mxu0 %v1235
  %3019 = vmatprep.subr.bf16.mxu0 %v1240
  %3020 = vmatpush1.bf16.msra.mxu0 %v1239
  %3021 = vmatprep.subr.bf16.mxu0 %v1244
  %3022 = vmatpush1.bf16.msra.mxu0 %v1243
  %3023 = vmatprep.subr.bf16.mxu0 %v1248
  %3024 = vmatpush1.bf16.msra.mxu0 %v1247
  %3025 = vmatprep.subr.bf16.mxu0 %v1252
  %3026 = vmatpush1.bf16.msra.mxu0 %v1251
  %3027 = vmatprep.mubr.bf16.mxu0 %v2994
  %3028 = vmatmul.mubr.bf16.gmra.mrb[0].mxu0 %v2993
  %v3029 = vpop.f32.mrb[0].mxu0
  %v3030 = vadd.f32 %v736, %v3029
  %v3031 = vpop.f32.mrb[0].mxu0
  %v3032 = vadd.f32 %v740, %v3031
  %v3033 = vpop.f32.mrb[0].mxu0
  %v3034 = vpop.f32.mrb[0].mxu0
  %3035 = vdwg.mxu0
  %3036 = vmatprep.subr.bf16.mxu0 %v1194
  %3037 = vmatpush1.bf16.msra.mxu0 %v1193
  %3038 = vmatprep.subr.bf16.mxu0 %v1198
  %3039 = vmatpush1.bf16.msra.mxu0 %v1197
  %3040 = vmatprep.subr.bf16.mxu0 %v1202
  %3041 = vmatpush1.bf16.msra.mxu0 %v1201
  %3042 = vmatprep.subr.bf16.mxu0 %v1206
  %3043 = vmatpush1.bf16.msra.mxu0 %v1205
  %3044 = vmatprep.subr.bf16.mxu0 %v1210
  %3045 = vmatpush1.bf16.msra.mxu0 %v1209
  %3046 = vmatprep.subr.bf16.mxu0 %v1214
  %3047 = vmatpush1.bf16.msra.mxu0 %v1213
  %3048 = vmatprep.subr.bf16.mxu0 %v1218
  %3049 = vmatpush1.bf16.msra.mxu0 %v1217
  %3050 = vmatprep.subr.bf16.mxu0 %v1222
  %3051 = vmatpush1.bf16.msra.mxu0 %v1221
  %3052 = vmatprep.subr.bf16.mxu0 %v1226
  %3053 = vmatpush1.bf16.msra.mxu0 %v1225
  %3054 = vmatprep.subr.bf16.mxu0 %v1230
  %3055 = vmatpush1.bf16.msra.mxu0 %v1229
  %3056 = vmatprep.subr.bf16.mxu0 %v1234
  %3057 = vmatpush1.bf16.msra.mxu0 %v1233
  %3058 = vmatprep.subr.bf16.mxu0 %v1238
  %3059 = vmatpush1.bf16.msra.mxu0 %v1237
  %3060 = vmatprep.subr.bf16.mxu0 %v1242
  %3061 = vmatpush1.bf16.msra.mxu0 %v1241
  %3062 = vmatprep.subr.bf16.mxu0 %v1246
  %3063 = vmatpush1.bf16.msra.mxu0 %v1245
  %3064 = vmatprep.subr.bf16.mxu0 %v1250
  %3065 = vmatpush1.bf16.msra.mxu0 %v1249
  %3066 = vmatprep.subr.bf16.mxu0 %v1254
  %3067 = vmatpush1.bf16.msra.mxu0 %v1253
  %3068 = vmatprep.mubr.bf16.mxu0 %v2994
  %3069 = vmatmul.mubr.bf16.gmra.mrb[0].mxu0 %v2993
  %v3070 = vpop.f32.mrb[0].mxu0
  %v3071 = vadd.f32 %v744, %v3070
  %v3072 = vpop.f32.mrb[0].mxu0
  %v3073 = vadd.f32 %v748, %v3072
  %v3074 = vpop.f32.mrb[0].mxu0
  %v3075 = vpop.f32.mrb[0].mxu0
  %3076 = vdwg.mxu0
  %v3077 = vxor.u32 %v3030, 2147483648
  %v3078 = vxor.u32 %v3032, 2147483648
  %v3079 = vxor.u32 %v3071, 2147483648
  %v3080 = vmul.f32 %v3077, 1.442695
  %v3081 = vpow.pop %v3080
  %v3082 = vmul.f32 %v3078, 1.442695
  %v3083 = vpow.pop %v3082
  %v3084 = vmul.f32 %v3079, 1.442695
  %v3085 = vpow.pop %v3084
  %v3086 = vadd.f32 %v3081, 1.0
  %v3087 = vadd.f32 %v3083, 1.0
  %v3088 = vadd.f32 %v3085, 1.0
  %v3089 = vrcp.pop %v3086
  %v3090 = vmul.f32 1.0, %v3089
  %v3091 = vrcp.pop %v3087
  %v3092 = vmul.f32 1.0, %v3091
  %v3093 = vrcp.pop %v3088
  %v3094 = vmul.f32 1.0, %v3093
  %v3095 = vtanh.pop %v3073
  %v3096 = vmul.f32 %v3092, %v2958
  %v3097 = vmul.f32 %v3090, %v3095
  %v3098 = vadd.f32 %v3096, %v3097
  %v3099 = vtanh.pop %v3098
  %v3100 = vmul.f32 %v3094, %v3099
  %v3101 = vpack.c.bf16 %v3100, %v3100
  %v3102 = vld [vmem:[%s5] sm:$0xf]
  %v3103 = vld [vmem:[%s5 + $0x4] sm:$0xf]
  %v3104 = vld [vmem:[%s5 + $0x8] sm:$0xf]
  %v3105 = vld [vmem:[%s5 + $0xc] sm:$0xf]
  %v3106 = vld [vmem:[%s5 + $0x10] sm:$0xf]
  %v3107 = vld [vmem:[%s5 + $0x14] sm:$0xf]
  %v3108 = vld [vmem:[%s5 + $0x18] sm:$0xf]
  %v3109 = vld [vmem:[%s5 + $0x1c] sm:$0xf]
  %v3110 = vld [vmem:[%s5 + $0x20] sm:$0xf]
  %v3111 = vld [vmem:[%s5 + $0x24] sm:$0xf]
  %v3112 = vld [vmem:[%s5 + $0x28] sm:$0xf]
  %v3113 = vld [vmem:[%s5 + $0x2c] sm:$0xf]
  %v3114 = vld [vmem:[%s5 + $0x30] sm:$0xf]
  %v3115 = vld [vmem:[%s5 + $0x34] sm:$0xf]
  %v3116 = vld [vmem:[%s5 + $0x38] sm:$0xf]
  %v3117 = vld [vmem:[%s5 + $0x3c] sm:$0xf]
  %v3118 = vld [vmem:[%s6] sm:$0x1]
  %v3120 = vlaneseq
  %v3121 = vshrl.u32 %v3120, 7
  %v3122 = vsub.s32 0, %v3121
  %v3123 = vrot.slane %v3118, %v3122
  %v3141 = vunpack.c.l.b16 %v3102
  %v3142 = vunpack.c.l.b16 %v3103
  %v3143 = vunpack.c.l.b16 %v3104
  %v3144 = vunpack.c.l.b16 %v3105
  %v3145 = vunpack.c.l.b16 %v3106
  %v3146 = vunpack.c.l.b16 %v3107
  %v3147 = vunpack.c.l.b16 %v3108
  %v3148 = vunpack.c.l.b16 %v3109
  %v3149 = vunpack.c.l.b16 %v3110
  %v3150 = vunpack.c.l.b16 %v3111
  %v3151 = vunpack.c.l.b16 %v3112
  %v3152 = vunpack.c.l.b16 %v3113
  %v3153 = vunpack.c.l.b16 %v3114
  %v3154 = vunpack.c.l.b16 %v3115
  %v3155 = vunpack.c.l.b16 %v3116
  %v3156 = vunpack.c.l.b16 %v3117
  %v3157 = vpack.c.b16 %v3142, %v3141
  %v3158 = vpack.c.b16 %v3144, %v3143
  %v3159 = vpack.c.b16 %v3146, %v3145
  %v3160 = vpack.c.b16 %v3148, %v3147
  %v3161 = vpack.c.b16 %v3150, %v3149
  %v3162 = vpack.c.b16 %v3152, %v3151
  %v3163 = vpack.c.b16 %v3154, %v3153
  %v3164 = vpack.c.b16 %v3156, %v3155
  %3173 = vmatprep.subr.bf16.mxu0 0
  %3174 = vmatpush1.bf16.msra.mxu0 %v3157
  %3175 = vmatprep.subr.bf16.mxu0 0
  %3176 = vmatpush1.bf16.msra.mxu0 %v3158
  %3177 = vmatprep.subr.bf16.mxu0 0
  %3178 = vmatpush1.bf16.msra.mxu0 %v3159
  %3179 = vmatprep.subr.bf16.mxu0 0
  %3180 = vmatpush1.bf16.msra.mxu0 %v3160
  %3181 = vmatprep.subr.bf16.mxu0 0
  %3182 = vmatpush1.bf16.msra.mxu0 %v3161
  %3183 = vmatprep.subr.bf16.mxu0 0
  %3184 = vmatpush1.bf16.msra.mxu0 %v3162
  %3185 = vmatprep.subr.bf16.mxu0 0
  %3186 = vmatpush1.bf16.msra.mxu0 %v3163
  %3187 = vmatprep.subr.bf16.mxu0 0
  %3188 = vmatpush1.bf16.msra.mxu0 %v3164
  %3189 = vmatprep.subr.bf16.mxu0 0
  %3190 = vmatpush1.bf16.msra.mxu0 0
  %3191 = vmatprep.subr.bf16.mxu0 0
  %3192 = vmatpush1.bf16.msra.mxu0 0
  %3193 = vmatprep.subr.bf16.mxu0 0
  %3194 = vmatpush1.bf16.msra.mxu0 0
  %3195 = vmatprep.subr.bf16.mxu0 0
  %3196 = vmatpush1.bf16.msra.mxu0 0
  %3197 = vmatprep.subr.bf16.mxu0 0
  %3198 = vmatpush1.bf16.msra.mxu0 0
  %3199 = vmatprep.subr.bf16.mxu0 0
  %3200 = vmatpush1.bf16.msra.mxu0 0
  %3201 = vmatprep.subr.bf16.mxu0 0
  %3202 = vmatpush1.bf16.msra.mxu0 0
  %3203 = vmatprep.subr.bf16.mxu0 0
  %3204 = vmatpush1.bf16.msra.mxu0 0
  %3205 = vmatprep.mubr.bf16.mxu0 0
  %3206 = vmatmul.mubr.bf16.gmra.mrb[0].mxu0 %v3101
  %v3207 = vpop.f32.mrb[0].mxu0
  %v3208 = vadd.f32 %v3123, %v3207
  %v3209 = vpop.f32.mrb[0].mxu0
  %v3210 = vpop.f32.mrb[0].mxu0
  %v3211 = vpop.f32.mrb[0].mxu0
  %3212 = vdwg.mxu0
  %3213 = vst [vmem:[%s7] sm:$0xff] %v3208
  // Predicated region
  $region30: #{forward.1} parent=0 // pred_check
    _
  $region31: #{forward.1} parent=0 // pred_check_branch
    %3215 = sbr.rel (0) target = $region33
  $region32: #{forward.1} parent=0 // pred_region
    _
  $region33: #{forward.1} parent=0 // pred_fallthru
    _
  // Predicated region
  $region34: #{forward.1} parent=0 // pred_check
    _
  $region35: #{forward.1} parent=0 // pred_check_branch
    %3217 = sbr.rel (0) target = $region37
  $region36: #{forward.1} parent=0 // pred_region
    _
  $region37: #{forward.1} parent=0 // pred_fallthru
    _

</llo_original>
